<compile_context>
chip_gen: v7x
topology: tpu7x:2x2x1
jax: 0.10.0
libtpu: 0.0.40
codegen_flags: <defaults>
</compile_context>

<pallas_src>
import math
import functools

import jax
import jax.numpy as jnp
from jax import lax
from jax.experimental import pallas as pl
from jax.experimental.pallas import tpu as pltpu


NEG_INF = -1e30  # additive mask fill (applied to f32 scores)


# ---------------------------------------------------------------------------
# In-kernel building blocks (traced inside the Pallas kernel body)
# ---------------------------------------------------------------------------
def _layer_norm(x, gamma, beta, eps=1e-5):
    mean = jnp.mean(x, axis=-1, keepdims=True)
    var = jnp.mean((x - mean) ** 2, axis=-1, keepdims=True)
    return (x - mean) * lax.rsqrt(var + eps) * gamma + beta


def _attention(xq, xkv, w, bq, bk, bv, bo, num_heads, B, Sq, Sk, mask):
    """Multi-head attention, batch folded into the block.

    xq  : (B*Sq, H) f32 query source (flattened)
    xkv : (B*Sk, H) f32 key/value source (flattened)
    w   : (H, 4H) bf16 packed [Wq | Wk | Wv | Wo]
    b*  : (1, H) f32 biases
    mask: additive (Sq, Sk) f32 mask or None
    """
    H = xq.shape[-1]
    dh = H // num_heads
    scale = 1.0 / math.sqrt(dh)

    # Full-width projections, bf16 operands, f32 accumulation.
    xq_b = xq.astype(jnp.bfloat16)
    xkv_b = xkv.astype(jnp.bfloat16)
    q = jnp.dot(xq_b, w[:, 0:H], preferred_element_type=jnp.float32) + bq
    kv = jnp.dot(xkv_b, w[:, H:3 * H], preferred_element_type=jnp.float32)
    k = kv[:, 0:H] + bk
    v = kv[:, H:2 * H] + bv

    # Restore the batch axis (leading-dim split only; lane layout untouched).
    q3 = q.reshape(B, Sq, H)
    k3 = k.reshape(B, Sk, H)
    v3 = v.reshape(B, Sk, H)

    # Per-head static lane slices feed the batched einsums directly
    # (no jnp.stack relayout into a new head axis).
    outs = []
    for h in range(num_heads):
        lo, hi = h * dh, (h + 1) * dh
        qh = q3[:, :, lo:hi].astype(jnp.bfloat16)
        kh = k3[:, :, lo:hi].astype(jnp.bfloat16)
        vh = v3[:, :, lo:hi].astype(jnp.bfloat16)
        s = jnp.einsum("bqd,bkd->bqk", qh, kh,
                       preferred_element_type=jnp.float32) * scale
        if mask is not None:
            s = s + mask[None, :, :]
        s = s - jnp.max(s, axis=-1, keepdims=True)
        p = jnp.exp(s)
        p = p * pl.reciprocal(jnp.sum(p, axis=-1, keepdims=True), approx=True)
        outs.append(jnp.einsum("bqk,bkd->bqd", p.astype(jnp.bfloat16), vh,
                               preferred_element_type=jnp.float32))

    # Reassemble heads along the lane dim and apply one full-width Wo matmul.
    o = jnp.concatenate(outs, axis=-1).reshape(B * Sq, H).astype(jnp.bfloat16)
    return jnp.dot(o, w[:, 3 * H:4 * H], preferred_element_type=jnp.float32) + bo


# ---------------------------------------------------------------------------
# Fused decoder-stack kernel.  grid = (L,): layers sequential; the activation
# lives in a flat (B*S, H) VMEM scratch across the whole layer loop.
# ---------------------------------------------------------------------------
def fused_decoder_kernel(x_ref, enc_ref,
                         w_self_ref, w_cross_ref, w_ff1_ref, w_ff2_ref, vec_ref,
                         out_ref, act_ref,
                         *, num_heads, hidden, ff, batch, seq, seq_enc):
    layer = pl.program_id(0)
    n_layers = pl.num_programs(0)
    H, B, S, Se = hidden, batch, seq, seq_enc

    # First layer: initialise the resident flat activation from the input.
    @pl.when(layer == 0)
    def _():
        act_ref[...] = x_ref[...].reshape(B * S, H)

    x = act_ref[...]                          # (B*S, H) f32, resident
    enc = enc_ref[...].reshape(B * Se, H)     # (B*Se, H) f32

    vec = vec_ref[0]                          # (16, max(H, FF)) packed small vectors
    bq_s, bk_s = vec[0:1, 0:H], vec[1:2, 0:H]
    bv_s, bo_s = vec[2:3, 0:H], vec[3:4, 0:H]
    bq_c, bk_c = vec[4:5, 0:H], vec[5:6, 0:H]
    bv_c, bo_c = vec[6:7, 0:H], vec[7:8, 0:H]
    b1 = vec[8:9, 0:ff]
    b2 = vec[9:10, 0:H]
    g1, be1 = vec[10:11, 0:H], vec[11:12, 0:H]
    g2, be2 = vec[12:13, 0:H], vec[13:14, 0:H]
    g3, be3 = vec[14:15, 0:H], vec[15:16, 0:H]

    # Causal mask built in-kernel (cheap VPU iota/compare/select; no input DMA).
    row = lax.broadcasted_iota(jnp.int32, (S, S), 0)
    col = lax.broadcasted_iota(jnp.int32, (S, S), 1)
    causal = jnp.where(col <= row, 0.0, NEG_INF).astype(jnp.float32)

    # 1) causal self-attention + residual + LayerNorm (dropout = identity, eval)
    sa = _attention(x, x, w_self_ref[0], bq_s, bk_s, bv_s, bo_s,
                    num_heads, B, S, S, causal)
    x = _layer_norm(x + sa, g1, be1)

    # 2) cross-attention over encoder output + residual + LayerNorm
    ca = _attention(x, enc, w_cross_ref[0], bq_c, bk_c, bv_c, bo_c,
                    num_heads, B, S, Se, None)
    x = _layer_norm(x + ca, g2, be2)

    # 3) position-wise feed-forward (ReLU) + residual + LayerNorm
    h = jnp.maximum(
        jnp.dot(x.astype(jnp.bfloat16), w_ff1_ref[0],
                preferred_element_type=jnp.float32) + b1, 0.0)
    ffo = jnp.dot(h.astype(jnp.bfloat16), w_ff2_ref[0],
                  preferred_element_type=jnp.float32) + b2
    x = _layer_norm(x + ffo, g3, be3)

    act_ref[...] = x

    # Final layer: write the output block (single HBM writeback at grid end).
    @pl.when(layer == n_layers - 1)
    def _():
        out_ref[...] = x.reshape(B, S, H)


def decoder_forward(x, enc, params, num_heads):
    """Run the full decoder stack in one pallas_call."""
    w_self, w_cross, w_ff1, w_ff2, vec = params
    B, S, H = x.shape
    _, S_enc, _ = enc.shape
    L = w_self.shape[0]
    ff = w_ff1.shape[-1]
    W = vec.shape[-1]

    kernel = functools.partial(fused_decoder_kernel,
                               num_heads=num_heads, hidden=H, ff=ff,
                               batch=B, seq=S, seq_enc=S_enc)

    return pl.pallas_call(
        kernel,
        out_shape=jax.ShapeDtypeStruct((B, S, H), jnp.float32),
        grid=(L,),
        in_specs=[
            pl.BlockSpec((B, S, H), lambda l: (0, 0, 0)),        # x (resident)
            pl.BlockSpec((B, S_enc, H), lambda l: (0, 0, 0)),    # encoder output (resident)
            pl.BlockSpec((1, H, 4 * H), lambda l: (l, 0, 0)),    # self-attn [Wq|Wk|Wv|Wo] bf16
            pl.BlockSpec((1, H, 4 * H), lambda l: (l, 0, 0)),    # cross-attn [Wq|Wk|Wv|Wo] bf16
            pl.BlockSpec((1, H, ff), lambda l: (l, 0, 0)),       # FFN W1 bf16
            pl.BlockSpec((1, ff, H), lambda l: (l, 0, 0)),       # FFN W2 bf16
            pl.BlockSpec((1, 16, W), lambda l: (l, 0, 0)),       # packed biases / LN params f32
        ],
        out_specs=pl.BlockSpec((B, S, H), lambda l: (0, 0, 0)),
        scratch_shapes=[pltpu.VMEM((B * S, H), jnp.float32)],    # resident activation
        compiler_params=pltpu.CompilerParams(
            dimension_semantics=("arbitrary",),
            vmem_limit_bytes=32 * 1024 * 1024),
    )(x, enc, w_self, w_cross, w_ff1, w_ff2, vec)


# ---------------------------------------------------------------------------
# Deterministic parameter init (no checkpoint load; Linear is y = x @ W + b,
# i.e. W stored as (in, out) — the transpose of PyTorch's (out, in)).
# Weight stacks are bf16 (MXU-native, halves weight DMA); small vectors f32.
# ---------------------------------------------------------------------------
def init_decoder_params(key, num_layers, hidden, ff):
    W = max(hidden, ff)

    def one_layer(k):
        ks = jax.random.split(k, 10)

        def w(kk, din, dout):
            return jax.random.normal(kk, (din, dout), jnp.float32) * 0.02

        # self-attention [Wq | Wk | Wv | Wo]  -> (H, 4H)
        w_self = jnp.concatenate(
            [w(ks[0], hidden, hidden), w(ks[1], hidden, hidden),
             w(ks[2], hidden, hidden), w(ks[3], hidden, hidden)], axis=1)
        # cross-attention [Wq | Wk | Wv | Wo] -> (H, 4H)
        w_cross = jnp.concatenate(
            [w(ks[4], hidden, hidden), w(ks[5], hidden, hidden),
             w(ks[6], hidden, hidden), w(ks[7], hidden, hidden)], axis=1)
        w1 = w(ks[8], hidden, ff)       # (H, FF)
        w2 = w(ks[9], ff, hidden)       # (FF, H)

        # Packed small vectors: rows
        #  0-3: self bq,bk,bv,bo   4-7: cross bq,bk,bv,bo
        #  8:   b1 (FF wide)       9:   b2
        #  10/11: g1/be1  12/13: g2/be2  14/15: g3/be3
        vec = jnp.zeros((16, W), jnp.float32)
        for r in (10, 12, 14):                        # LayerNorm gammas = 1
            vec = vec.at[r, :hidden].set(1.0)
        return (w_self.astype(jnp.bfloat16), w_cross.astype(jnp.bfloat16),
                w1.astype(jnp.bfloat16), w2.astype(jnp.bfloat16), vec)

    keys = jax.random.split(key, num_layers)
    per_layer = [one_layer(k) for k in keys]
    stack = lambda i: jnp.stack([p[i] for p in per_layer], axis=0)
    return stack(0), stack(1), stack(2), stack(3), stack(4)


if __name__ == "__main__":
    B, S, HIDDEN, NUM_HEADS, FF, NUM_LAYERS = 2, 8, 32, 4, 64, 2

    key = jax.random.PRNGKey(0)
    kx, ke, kp = jax.random.split(key, 3)
    x = jax.random.normal(kx, (B, S, HIDDEN), jnp.float32)
    encoder_output = jax.random.normal(ke, (B, S, HIDDEN), jnp.float32)

    params = init_decoder_params(kp, NUM_LAYERS, HIDDEN, FF)

    out = decoder_forward(x, encoder_output, params, NUM_HEADS)
    jax.block_until_ready(out)
    assert out.shape == (B, S, HIDDEN) and out.dtype == jnp.float32
    assert bool(jnp.all(jnp.isfinite(out)))
    print("KERNEL_OK")
</pallas_src>

<mosaic_0001>
module attributes {stable_mosaic.version = 11 : i64} {
  func.func @fused_decoder_kernel(%arg0: i32, %arg1: memref<2x8x32xf32, #tpu.memory_space<vmem>>, %arg2: memref<2x8x32xf32, #tpu.memory_space<vmem>>, %arg3: memref<1x32x128xbf16, #tpu.memory_space<vmem>>, %arg4: memref<1x32x128xbf16, #tpu.memory_space<vmem>>, %arg5: memref<1x32x64xbf16, #tpu.memory_space<vmem>>, %arg6: memref<1x64x32xbf16, #tpu.memory_space<vmem>>, %arg7: memref<1x16x64xf32, #tpu.memory_space<vmem>>, %arg8: memref<2x8x32xf32, #tpu.memory_space<vmem>>, %arg9: memref<16x32xf32, #tpu.memory_space<vmem>>) attributes {dimension_semantics = [#tpu.dimension_semantics<arbitrary>], iteration_bounds = array<i64: 2>, scalar_prefetch = 0 : i64, scratch_operands = 1 : i64, tpu.core_type = #tpu.core_type<tc>, window_params = [{pipeline_mode = #tpu.pipeline_mode<synchronous>, transform_indices = @transform_0, window_bounds = array<i64: 2, 8, 32>}, {pipeline_mode = #tpu.pipeline_mode<synchronous>, transform_indices = @transform_1, window_bounds = array<i64: 2, 8, 32>}, {transform_indices = @transform_2, window_bounds = array<i64: 1, 32, 128>}, {transform_indices = @transform_3, window_bounds = array<i64: 1, 32, 128>}, {transform_indices = @transform_4, window_bounds = array<i64: 1, 32, 64>}, {transform_indices = @transform_5, window_bounds = array<i64: 1, 64, 32>}, {transform_indices = @transform_6, window_bounds = array<i64: 1, 16, 64>}, {pipeline_mode = #tpu.pipeline_mode<synchronous>, transform_indices = @transform_7, window_bounds = array<i64: 2, 8, 32>}]} {
    %c0_i32 = arith.constant 0 : i32
    %0 = arith.cmpi eq, %arg0, %c0_i32 : i32
    %1 = arith.extui %0 : i1 to i32
    %c0_i32_0 = arith.constant 0 : i32
    %2 = arith.cmpi ne, %1, %c0_i32_0 : i32
    scf.if %2 {
      %c0_88 = arith.constant 0 : index
      %c0_89 = arith.constant 0 : index
      %c0_90 = arith.constant 0 : index
      %349 = vector.load %arg1[%c0_88, %c0_89, %c0_90] : memref<2x8x32xf32, #tpu.memory_space<vmem>>, vector<2x8x32xf32>
      %350 = vector.shape_cast %349 : vector<2x8x32xf32> to vector<16x32xf32>
      %c0_91 = arith.constant 0 : index
      %c0_92 = arith.constant 0 : index
      %351 = vector.load %arg9[%c0_91, %c0_92] : memref<16x32xf32, #tpu.memory_space<vmem>>, vector<16x32xf32>
      tpu.vector_store %arg9[%c0_91, %c0_92], %350 {strides = array<i32>} : memref<16x32xf32, #tpu.memory_space<vmem>>, vector<16x32xf32>,
    } else {
    }
    %c0 = arith.constant 0 : index
    %c0_1 = arith.constant 0 : index
    %3 = vector.load %arg9[%c0, %c0_1] : memref<16x32xf32, #tpu.memory_space<vmem>>, vector<16x32xf32>
    %c0_2 = arith.constant 0 : index
    %c0_3 = arith.constant 0 : index
    %c0_4 = arith.constant 0 : index
    %4 = vector.load %arg2[%c0_2, %c0_3, %c0_4] : memref<2x8x32xf32, #tpu.memory_space<vmem>>, vector<2x8x32xf32>
    %5 = vector.shape_cast %4 : vector<2x8x32xf32> to vector<16x32xf32>
    %c0_5 = arith.constant 0 : index
    %c0_6 = arith.constant 0 : index
    %c0_7 = arith.constant 0 : index
    %6 = vector.load %arg7[%c0_5, %c0_6, %c0_7] : memref<1x16x64xf32, #tpu.memory_space<vmem>>, vector<1x16x64xf32>
    %7 = vector.shape_cast %6 : vector<1x16x64xf32> to vector<16x64xf32>
    %8 = vector.extract_strided_slice %7 {offsets = [0, 0], sizes = [1, 32], strides = [1, 1]} : vector<16x64xf32> to vector<1x32xf32>
    %9 = vector.extract_strided_slice %7 {offsets = [1, 0], sizes = [1, 32], strides = [1, 1]} : vector<16x64xf32> to vector<1x32xf32>
    %10 = vector.extract_strided_slice %7 {offsets = [2, 0], sizes = [1, 32], strides = [1, 1]} : vector<16x64xf32> to vector<1x32xf32>
    %11 = vector.extract_strided_slice %7 {offsets = [3, 0], sizes = [1, 32], strides = [1, 1]} : vector<16x64xf32> to vector<1x32xf32>
    %12 = vector.extract_strided_slice %7 {offsets = [4, 0], sizes = [1, 32], strides = [1, 1]} : vector<16x64xf32> to vector<1x32xf32>
    %13 = vector.extract_strided_slice %7 {offsets = [5, 0], sizes = [1, 32], strides = [1, 1]} : vector<16x64xf32> to vector<1x32xf32>
    %14 = vector.extract_strided_slice %7 {offsets = [6, 0], sizes = [1, 32], strides = [1, 1]} : vector<16x64xf32> to vector<1x32xf32>
    %15 = vector.extract_strided_slice %7 {offsets = [7, 0], sizes = [1, 32], strides = [1, 1]} : vector<16x64xf32> to vector<1x32xf32>
    %16 = vector.extract_strided_slice %7 {offsets = [8, 0], sizes = [1, 64], strides = [1, 1]} : vector<16x64xf32> to vector<1x64xf32>
    %17 = vector.extract_strided_slice %7 {offsets = [9, 0], sizes = [1, 32], strides = [1, 1]} : vector<16x64xf32> to vector<1x32xf32>
    %18 = vector.extract_strided_slice %7 {offsets = [10, 0], sizes = [1, 32], strides = [1, 1]} : vector<16x64xf32> to vector<1x32xf32>
    %19 = vector.extract_strided_slice %7 {offsets = [11, 0], sizes = [1, 32], strides = [1, 1]} : vector<16x64xf32> to vector<1x32xf32>
    %20 = vector.extract_strided_slice %7 {offsets = [12, 0], sizes = [1, 32], strides = [1, 1]} : vector<16x64xf32> to vector<1x32xf32>
    %21 = vector.extract_strided_slice %7 {offsets = [13, 0], sizes = [1, 32], strides = [1, 1]} : vector<16x64xf32> to vector<1x32xf32>
    %22 = vector.extract_strided_slice %7 {offsets = [14, 0], sizes = [1, 32], strides = [1, 1]} : vector<16x64xf32> to vector<1x32xf32>
    %23 = vector.extract_strided_slice %7 {offsets = [15, 0], sizes = [1, 32], strides = [1, 1]} : vector<16x64xf32> to vector<1x32xf32>
    %24 = tpu.iota {dimensions = array<i32: 0>} : vector<8x8xi32>
    %25 = tpu.iota {dimensions = array<i32: 1>} : vector<8x8xi32>
    %26 = arith.cmpi sle, %25, %24 : vector<8x8xi32>
    %cst = arith.constant 0.000000e+00 : f32
    %cst_8 = arith.constant -1.000000e+30 : f32
    %27 = vector.broadcast %cst : f32 to vector<8x8xf32>
    %28 = vector.broadcast %cst_8 : f32 to vector<8x8xf32>
    %29 = arith.select %26, %27, %28 : vector<8x8xi1>, vector<8x8xf32>
    %c0_9 = arith.constant 0 : index
    %c0_10 = arith.constant 0 : index
    %c0_11 = arith.constant 0 : index
    %30 = vector.load %arg3[%c0_9, %c0_10, %c0_11] : memref<1x32x128xbf16, #tpu.memory_space<vmem>>, vector<1x32x128xbf16>
    %31 = vector.shape_cast %30 : vector<1x32x128xbf16> to vector<32x128xbf16>
    %32 = arith.truncf %3 : vector<16x32xf32> to vector<16x32xbf16>
    %33 = arith.truncf %3 : vector<16x32xf32> to vector<16x32xbf16>
    %34 = vector.extract_strided_slice %31 {offsets = [0, 0], sizes = [32, 32], strides = [1, 1]} : vector<32x128xbf16> to vector<32x32xbf16>
    %cst_12 = arith.constant dense<0.000000e+00> : vector<16x32xf32>
    %35 = tpu.matmul %32, %34, %cst_12 {dimension_numbers = #tpu.dot_dimension_numbers<[1], [0], [0], [1], [0, 0, 1, 1], [], []>} : vector<16x32xbf16>, vector<32x32xbf16>, vector<16x32xf32> -> vector<16x32xf32>
    %36 = vector.broadcast %8 : vector<1x32xf32> to vector<16x32xf32>
    %37 = arith.addf %35, %36 : vector<16x32xf32>
    %38 = vector.extract_strided_slice %31 {offsets = [0, 32], sizes = [32, 64], strides = [1, 1]} : vector<32x128xbf16> to vector<32x64xbf16>
    %cst_13 = arith.constant dense<0.000000e+00> : vector<16x64xf32>
    %39 = tpu.matmul %33, %38, %cst_13 {dimension_numbers = #tpu.dot_dimension_numbers<[1], [0], [0], [1], [0, 0, 1, 1], [], []>} : vector<16x32xbf16>, vector<32x64xbf16>, vector<16x64xf32> -> vector<16x64xf32>
    %40 = vector.extract_strided_slice %39 {offsets = [0, 0], sizes = [16, 32], strides = [1, 1]} : vector<16x64xf32> to vector<16x32xf32>
    %41 = vector.broadcast %9 : vector<1x32xf32> to vector<16x32xf32>
    %42 = arith.addf %40, %41 : vector<16x32xf32>
    %43 = vector.extract_strided_slice %39 {offsets = [0, 32], sizes = [16, 32], strides = [1, 1]} : vector<16x64xf32> to vector<16x32xf32>
    %44 = vector.broadcast %10 : vector<1x32xf32> to vector<16x32xf32>
    %45 = arith.addf %43, %44 : vector<16x32xf32>
    %46 = vector.shape_cast %37 : vector<16x32xf32> to vector<2x8x32xf32>
    %47 = vector.shape_cast %42 : vector<16x32xf32> to vector<2x8x32xf32>
    %48 = vector.shape_cast %45 : vector<16x32xf32> to vector<2x8x32xf32>
    %49 = vector.extract_strided_slice %46 {offsets = [0, 0, 0], sizes = [2, 8, 8], strides = [1, 1, 1]} : vector<2x8x32xf32> to vector<2x8x8xf32>
    %50 = arith.truncf %49 : vector<2x8x8xf32> to vector<2x8x8xbf16>
    %51 = vector.extract_strided_slice %47 {offsets = [0, 0, 0], sizes = [2, 8, 8], strides = [1, 1, 1]} : vector<2x8x32xf32> to vector<2x8x8xf32>
    %52 = arith.truncf %51 : vector<2x8x8xf32> to vector<2x8x8xbf16>
    %53 = vector.extract_strided_slice %48 {offsets = [0, 0, 0], sizes = [2, 8, 8], strides = [1, 1, 1]} : vector<2x8x32xf32> to vector<2x8x8xf32>
    %54 = arith.truncf %53 : vector<2x8x8xf32> to vector<2x8x8xbf16>
    "tpu.trace_start"() <{level = 10 : i32, message = "bqd,bkd->bqk"}> : () -> ()
    %cst_14 = arith.constant dense<0.000000e+00> : vector<2x8x8xf32>
    %55 = tpu.matmul %50, %52, %cst_14 {dimension_numbers = #tpu.dot_dimension_numbers<[2], [2], [1], [1], [0, 0, 0, 1, 1, 1], [0], [0]>} : vector<2x8x8xbf16>, vector<2x8x8xbf16>, vector<2x8x8xf32> -> vector<2x8x8xf32>
    "tpu.trace_stop"() : () -> ()
    %cst_15 = arith.constant 0.353553385 : f32
    %56 = vector.broadcast %cst_15 : f32 to vector<2x8x8xf32>
    %57 = arith.mulf %55, %56 : vector<2x8x8xf32>
    %58 = vector.shape_cast %29 : vector<8x8xf32> to vector<1x8x8xf32>
    %59 = vector.broadcast %58 : vector<1x8x8xf32> to vector<2x8x8xf32>
    %60 = arith.addf %57, %59 : vector<2x8x8xf32>
    %cst_16 = arith.constant dense<0xFF800000> : vector<2x8xf32>
    %61 = vector.multi_reduction <maximumf>, %60, %cst_16 [2] : vector<2x8x8xf32> to vector<2x8xf32>
    %62 = vector.shape_cast %61 : vector<2x8xf32> to vector<2x8x1xf32>
    %63 = vector.broadcast %62 : vector<2x8x1xf32> to vector<2x8x8xf32>
    %64 = arith.subf %60, %63 : vector<2x8x8xf32>
    %65 = math.exp %64 : vector<2x8x8xf32>
    %cst_17 = arith.constant dense<0.000000e+00> : vector<2x8xf32>
    %66 = vector.multi_reduction <add>, %65, %cst_17 [2] : vector<2x8x8xf32> to vector<2x8xf32>
    %67 = vector.shape_cast %66 : vector<2x8xf32> to vector<2x8x1xf32>
    %68 = tpu.reciprocal %67 {approx = true} : vector<2x8x1xf32> -> vector<2x8x1xf32>
    %69 = vector.broadcast %68 : vector<2x8x1xf32> to vector<2x8x8xf32>
    %70 = arith.mulf %65, %69 : vector<2x8x8xf32>
    %71 = arith.truncf %70 : vector<2x8x8xf32> to vector<2x8x8xbf16>
    "tpu.trace_start"() <{level = 10 : i32, message = "bqk,bkd->bqd"}> : () -> ()
    %cst_18 = arith.constant dense<0.000000e+00> : vector<2x8x8xf32>
    %72 = tpu.matmul %71, %54, %cst_18 {dimension_numbers = #tpu.dot_dimension_numbers<[2], [1], [1], [2], [0, 0, 0, 1, 1, 2], [0], [0]>} : vector<2x8x8xbf16>, vector<2x8x8xbf16>, vector<2x8x8xf32> -> vector<2x8x8xf32>
    "tpu.trace_stop"() : () -> ()
    %73 = vector.extract_strided_slice %46 {offsets = [0, 0, 8], sizes = [2, 8, 8], strides = [1, 1, 1]} : vector<2x8x32xf32> to vector<2x8x8xf32>
    %74 = arith.truncf %73 : vector<2x8x8xf32> to vector<2x8x8xbf16>
    %75 = vector.extract_strided_slice %47 {offsets = [0, 0, 8], sizes = [2, 8, 8], strides = [1, 1, 1]} : vector<2x8x32xf32> to vector<2x8x8xf32>
    %76 = arith.truncf %75 : vector<2x8x8xf32> to vector<2x8x8xbf16>
    %77 = vector.extract_strided_slice %48 {offsets = [0, 0, 8], sizes = [2, 8, 8], strides = [1, 1, 1]} : vector<2x8x32xf32> to vector<2x8x8xf32>
    %78 = arith.truncf %77 : vector<2x8x8xf32> to vector<2x8x8xbf16>
    "tpu.trace_start"() <{level = 10 : i32, message = "bqd,bkd->bqk"}> : () -> ()
    %cst_19 = arith.constant dense<0.000000e+00> : vector<2x8x8xf32>
    %79 = tpu.matmul %74, %76, %cst_19 {dimension_numbers = #tpu.dot_dimension_numbers<[2], [2], [1], [1], [0, 0, 0, 1, 1, 1], [0], [0]>} : vector<2x8x8xbf16>, vector<2x8x8xbf16>, vector<2x8x8xf32> -> vector<2x8x8xf32>
    "tpu.trace_stop"() : () -> ()
    %cst_20 = arith.constant 0.353553385 : f32
    %80 = vector.broadcast %cst_20 : f32 to vector<2x8x8xf32>
    %81 = arith.mulf %79, %80 : vector<2x8x8xf32>
    %82 = vector.shape_cast %29 : vector<8x8xf32> to vector<1x8x8xf32>
    %83 = vector.broadcast %82 : vector<1x8x8xf32> to vector<2x8x8xf32>
    %84 = arith.addf %81, %83 : vector<2x8x8xf32>
    %cst_21 = arith.constant dense<0xFF800000> : vector<2x8xf32>
    %85 = vector.multi_reduction <maximumf>, %84, %cst_21 [2] : vector<2x8x8xf32> to vector<2x8xf32>
    %86 = vector.shape_cast %85 : vector<2x8xf32> to vector<2x8x1xf32>
    %87 = vector.broadcast %86 : vector<2x8x1xf32> to vector<2x8x8xf32>
    %88 = arith.subf %84, %87 : vector<2x8x8xf32>
    %89 = math.exp %88 : vector<2x8x8xf32>
    %cst_22 = arith.constant dense<0.000000e+00> : vector<2x8xf32>
    %90 = vector.multi_reduction <add>, %89, %cst_22 [2] : vector<2x8x8xf32> to vector<2x8xf32>
    %91 = vector.shape_cast %90 : vector<2x8xf32> to vector<2x8x1xf32>
    %92 = tpu.reciprocal %91 {approx = true} : vector<2x8x1xf32> -> vector<2x8x1xf32>
    %93 = vector.broadcast %92 : vector<2x8x1xf32> to vector<2x8x8xf32>
    %94 = arith.mulf %89, %93 : vector<2x8x8xf32>
    %95 = arith.truncf %94 : vector<2x8x8xf32> to vector<2x8x8xbf16>
    "tpu.trace_start"() <{level = 10 : i32, message = "bqk,bkd->bqd"}> : () -> ()
    %cst_23 = arith.constant dense<0.000000e+00> : vector<2x8x8xf32>
    %96 = tpu.matmul %95, %78, %cst_23 {dimension_numbers = #tpu.dot_dimension_numbers<[2], [1], [1], [2], [0, 0, 0, 1, 1, 2], [0], [0]>} : vector<2x8x8xbf16>, vector<2x8x8xbf16>, vector<2x8x8xf32> -> vector<2x8x8xf32>
    "tpu.trace_stop"() : () -> ()
    %97 = vector.extract_strided_slice %46 {offsets = [0, 0, 16], sizes = [2, 8, 8], strides = [1, 1, 1]} : vector<2x8x32xf32> to vector<2x8x8xf32>
    %98 = arith.truncf %97 : vector<2x8x8xf32> to vector<2x8x8xbf16>
    %99 = vector.extract_strided_slice %47 {offsets = [0, 0, 16], sizes = [2, 8, 8], strides = [1, 1, 1]} : vector<2x8x32xf32> to vector<2x8x8xf32>
    %100 = arith.truncf %99 : vector<2x8x8xf32> to vector<2x8x8xbf16>
    %101 = vector.extract_strided_slice %48 {offsets = [0, 0, 16], sizes = [2, 8, 8], strides = [1, 1, 1]} : vector<2x8x32xf32> to vector<2x8x8xf32>
    %102 = arith.truncf %101 : vector<2x8x8xf32> to vector<2x8x8xbf16>
    "tpu.trace_start"() <{level = 10 : i32, message = "bqd,bkd->bqk"}> : () -> ()
    %cst_24 = arith.constant dense<0.000000e+00> : vector<2x8x8xf32>
    %103 = tpu.matmul %98, %100, %cst_24 {dimension_numbers = #tpu.dot_dimension_numbers<[2], [2], [1], [1], [0, 0, 0, 1, 1, 1], [0], [0]>} : vector<2x8x8xbf16>, vector<2x8x8xbf16>, vector<2x8x8xf32> -> vector<2x8x8xf32>
    "tpu.trace_stop"() : () -> ()
    %cst_25 = arith.constant 0.353553385 : f32
    %104 = vector.broadcast %cst_25 : f32 to vector<2x8x8xf32>
    %105 = arith.mulf %103, %104 : vector<2x8x8xf32>
    %106 = vector.shape_cast %29 : vector<8x8xf32> to vector<1x8x8xf32>
    %107 = vector.broadcast %106 : vector<1x8x8xf32> to vector<2x8x8xf32>
    %108 = arith.addf %105, %107 : vector<2x8x8xf32>
    %cst_26 = arith.constant dense<0xFF800000> : vector<2x8xf32>
    %109 = vector.multi_reduction <maximumf>, %108, %cst_26 [2] : vector<2x8x8xf32> to vector<2x8xf32>
    %110 = vector.shape_cast %109 : vector<2x8xf32> to vector<2x8x1xf32>
    %111 = vector.broadcast %110 : vector<2x8x1xf32> to vector<2x8x8xf32>
    %112 = arith.subf %108, %111 : vector<2x8x8xf32>
    %113 = math.exp %112 : vector<2x8x8xf32>
    %cst_27 = arith.constant dense<0.000000e+00> : vector<2x8xf32>
    %114 = vector.multi_reduction <add>, %113, %cst_27 [2] : vector<2x8x8xf32> to vector<2x8xf32>
    %115 = vector.shape_cast %114 : vector<2x8xf32> to vector<2x8x1xf32>
    %116 = tpu.reciprocal %115 {approx = true} : vector<2x8x1xf32> -> vector<2x8x1xf32>
    %117 = vector.broadcast %116 : vector<2x8x1xf32> to vector<2x8x8xf32>
    %118 = arith.mulf %113, %117 : vector<2x8x8xf32>
    %119 = arith.truncf %118 : vector<2x8x8xf32> to vector<2x8x8xbf16>
    "tpu.trace_start"() <{level = 10 : i32, message = "bqk,bkd->bqd"}> : () -> ()
    %cst_28 = arith.constant dense<0.000000e+00> : vector<2x8x8xf32>
    %120 = tpu.matmul %119, %102, %cst_28 {dimension_numbers = #tpu.dot_dimension_numbers<[2], [1], [1], [2], [0, 0, 0, 1, 1, 2], [0], [0]>} : vector<2x8x8xbf16>, vector<2x8x8xbf16>, vector<2x8x8xf32> -> vector<2x8x8xf32>
    "tpu.trace_stop"() : () -> ()
    %121 = vector.extract_strided_slice %46 {offsets = [0, 0, 24], sizes = [2, 8, 8], strides = [1, 1, 1]} : vector<2x8x32xf32> to vector<2x8x8xf32>
    %122 = arith.truncf %121 : vector<2x8x8xf32> to vector<2x8x8xbf16>
    %123 = vector.extract_strided_slice %47 {offsets = [0, 0, 24], sizes = [2, 8, 8], strides = [1, 1, 1]} : vector<2x8x32xf32> to vector<2x8x8xf32>
    %124 = arith.truncf %123 : vector<2x8x8xf32> to vector<2x8x8xbf16>
    %125 = vector.extract_strided_slice %48 {offsets = [0, 0, 24], sizes = [2, 8, 8], strides = [1, 1, 1]} : vector<2x8x32xf32> to vector<2x8x8xf32>
    %126 = arith.truncf %125 : vector<2x8x8xf32> to vector<2x8x8xbf16>
    "tpu.trace_start"() <{level = 10 : i32, message = "bqd,bkd->bqk"}> : () -> ()
    %cst_29 = arith.constant dense<0.000000e+00> : vector<2x8x8xf32>
    %127 = tpu.matmul %122, %124, %cst_29 {dimension_numbers = #tpu.dot_dimension_numbers<[2], [2], [1], [1], [0, 0, 0, 1, 1, 1], [0], [0]>} : vector<2x8x8xbf16>, vector<2x8x8xbf16>, vector<2x8x8xf32> -> vector<2x8x8xf32>
    "tpu.trace_stop"() : () -> ()
    %cst_30 = arith.constant 0.353553385 : f32
    %128 = vector.broadcast %cst_30 : f32 to vector<2x8x8xf32>
    %129 = arith.mulf %127, %128 : vector<2x8x8xf32>
    %130 = vector.shape_cast %29 : vector<8x8xf32> to vector<1x8x8xf32>
    %131 = vector.broadcast %130 : vector<1x8x8xf32> to vector<2x8x8xf32>
    %132 = arith.addf %129, %131 : vector<2x8x8xf32>
    %cst_31 = arith.constant dense<0xFF800000> : vector<2x8xf32>
    %133 = vector.multi_reduction <maximumf>, %132, %cst_31 [2] : vector<2x8x8xf32> to vector<2x8xf32>
    %134 = vector.shape_cast %133 : vector<2x8xf32> to vector<2x8x1xf32>
    %135 = vector.broadcast %134 : vector<2x8x1xf32> to vector<2x8x8xf32>
    %136 = arith.subf %132, %135 : vector<2x8x8xf32>
    %137 = math.exp %136 : vector<2x8x8xf32>
    %cst_32 = arith.constant dense<0.000000e+00> : vector<2x8xf32>
    %138 = vector.multi_reduction <add>, %137, %cst_32 [2] : vector<2x8x8xf32> to vector<2x8xf32>
    %139 = vector.shape_cast %138 : vector<2x8xf32> to vector<2x8x1xf32>
    %140 = tpu.reciprocal %139 {approx = true} : vector<2x8x1xf32> -> vector<2x8x1xf32>
    %141 = vector.broadcast %140 : vector<2x8x1xf32> to vector<2x8x8xf32>
    %142 = arith.mulf %137, %141 : vector<2x8x8xf32>
    %143 = arith.truncf %142 : vector<2x8x8xf32> to vector<2x8x8xbf16>
    "tpu.trace_start"() <{level = 10 : i32, message = "bqk,bkd->bqd"}> : () -> ()
    %cst_33 = arith.constant dense<0.000000e+00> : vector<2x8x8xf32>
    %144 = tpu.matmul %143, %126, %cst_33 {dimension_numbers = #tpu.dot_dimension_numbers<[2], [1], [1], [2], [0, 0, 0, 1, 1, 2], [0], [0]>} : vector<2x8x8xbf16>, vector<2x8x8xbf16>, vector<2x8x8xf32> -> vector<2x8x8xf32>
    "tpu.trace_stop"() : () -> ()
    %145 = tpu.concatenate %72, %96, %120, %144 in 2 : vector<2x8x8xf32>, vector<2x8x8xf32>, vector<2x8x8xf32>, vector<2x8x8xf32> -> vector<2x8x32xf32>
    %146 = vector.shape_cast %145 : vector<2x8x32xf32> to vector<16x32xf32>
    %147 = arith.truncf %146 : vector<16x32xf32> to vector<16x32xbf16>
    %148 = vector.extract_strided_slice %31 {offsets = [0, 96], sizes = [32, 32], strides = [1, 1]} : vector<32x128xbf16> to vector<32x32xbf16>
    %cst_34 = arith.constant dense<0.000000e+00> : vector<16x32xf32>
    %149 = tpu.matmul %147, %148, %cst_34 {dimension_numbers = #tpu.dot_dimension_numbers<[1], [0], [0], [1], [0, 0, 1, 1], [], []>} : vector<16x32xbf16>, vector<32x32xbf16>, vector<16x32xf32> -> vector<16x32xf32>
    %150 = vector.broadcast %11 : vector<1x32xf32> to vector<16x32xf32>
    %151 = arith.addf %149, %150 : vector<16x32xf32>
    %152 = arith.addf %3, %151 : vector<16x32xf32>
    %cst_35 = arith.constant dense<0.000000e+00> : vector<16xf32>
    %153 = vector.multi_reduction <add>, %152, %cst_35 [1] : vector<16x32xf32> to vector<16xf32>
    %154 = vector.shape_cast %153 : vector<16xf32> to vector<16x1xf32>
    %cst_36 = arith.constant 3.200000e+01 : f32
    %155 = vector.broadcast %cst_36 : f32 to vector<16x1xf32>
    %156 = arith.divf %154, %155 : vector<16x1xf32>
    %157 = vector.broadcast %156 : vector<16x1xf32> to vector<16x32xf32>
    %158 = arith.subf %152, %157 : vector<16x32xf32>
    %159 = arith.mulf %158, %158 : vector<16x32xf32>
    %cst_37 = arith.constant dense<0.000000e+00> : vector<16xf32>
    %160 = vector.multi_reduction <add>, %159, %cst_37 [1] : vector<16x32xf32> to vector<16xf32>
    %161 = vector.shape_cast %160 : vector<16xf32> to vector<16x1xf32>
    %cst_38 = arith.constant 3.200000e+01 : f32
    %162 = vector.broadcast %cst_38 : f32 to vector<16x1xf32>
    %163 = arith.divf %161, %162 : vector<16x1xf32>
    %164 = vector.broadcast %156 : vector<16x1xf32> to vector<16x32xf32>
    %165 = arith.subf %152, %164 : vector<16x32xf32>
    %cst_39 = arith.constant 9.99999974E-6 : f32
    %166 = vector.broadcast %cst_39 : f32 to vector<16x1xf32>
    %167 = arith.addf %163, %166 : vector<16x1xf32>
    %168 = math.rsqrt %167 : vector<16x1xf32>
    %169 = vector.broadcast %168 : vector<16x1xf32> to vector<16x32xf32>
    %170 = arith.mulf %165, %169 : vector<16x32xf32>
    %171 = vector.broadcast %18 : vector<1x32xf32> to vector<16x32xf32>
    %172 = arith.mulf %170, %171 : vector<16x32xf32>
    %173 = vector.broadcast %19 : vector<1x32xf32> to vector<16x32xf32>
    %174 = arith.addf %172, %173 : vector<16x32xf32>
    %c0_40 = arith.constant 0 : index
    %c0_41 = arith.constant 0 : index
    %c0_42 = arith.constant 0 : index
    %175 = vector.load %arg4[%c0_40, %c0_41, %c0_42] : memref<1x32x128xbf16, #tpu.memory_space<vmem>>, vector<1x32x128xbf16>
    %176 = vector.shape_cast %175 : vector<1x32x128xbf16> to vector<32x128xbf16>
    %177 = arith.truncf %174 : vector<16x32xf32> to vector<16x32xbf16>
    %178 = arith.truncf %5 : vector<16x32xf32> to vector<16x32xbf16>
    %179 = vector.extract_strided_slice %176 {offsets = [0, 0], sizes = [32, 32], strides = [1, 1]} : vector<32x128xbf16> to vector<32x32xbf16>
    %cst_43 = arith.constant dense<0.000000e+00> : vector<16x32xf32>
    %180 = tpu.matmul %177, %179, %cst_43 {dimension_numbers = #tpu.dot_dimension_numbers<[1], [0], [0], [1], [0, 0, 1, 1], [], []>} : vector<16x32xbf16>, vector<32x32xbf16>, vector<16x32xf32> -> vector<16x32xf32>
    %181 = vector.broadcast %12 : vector<1x32xf32> to vector<16x32xf32>
    %182 = arith.addf %180, %181 : vector<16x32xf32>
    %183 = vector.extract_strided_slice %176 {offsets = [0, 32], sizes = [32, 64], strides = [1, 1]} : vector<32x128xbf16> to vector<32x64xbf16>
    %cst_44 = arith.constant dense<0.000000e+00> : vector<16x64xf32>
    %184 = tpu.matmul %178, %183, %cst_44 {dimension_numbers = #tpu.dot_dimension_numbers<[1], [0], [0], [1], [0, 0, 1, 1], [], []>} : vector<16x32xbf16>, vector<32x64xbf16>, vector<16x64xf32> -> vector<16x64xf32>
    %185 = vector.extract_strided_slice %184 {offsets = [0, 0], sizes = [16, 32], strides = [1, 1]} : vector<16x64xf32> to vector<16x32xf32>
    %186 = vector.broadcast %13 : vector<1x32xf32> to vector<16x32xf32>
    %187 = arith.addf %185, %186 : vector<16x32xf32>
    %188 = vector.extract_strided_slice %184 {offsets = [0, 32], sizes = [16, 32], strides = [1, 1]} : vector<16x64xf32> to vector<16x32xf32>
    %189 = vector.broadcast %14 : vector<1x32xf32> to vector<16x32xf32>
    %190 = arith.addf %188, %189 : vector<16x32xf32>
    %191 = vector.shape_cast %182 : vector<16x32xf32> to vector<2x8x32xf32>
    %192 = vector.shape_cast %187 : vector<16x32xf32> to vector<2x8x32xf32>
    %193 = vector.shape_cast %190 : vector<16x32xf32> to vector<2x8x32xf32>
    %194 = vector.extract_strided_slice %191 {offsets = [0, 0, 0], sizes = [2, 8, 8], strides = [1, 1, 1]} : vector<2x8x32xf32> to vector<2x8x8xf32>
    %195 = arith.truncf %194 : vector<2x8x8xf32> to vector<2x8x8xbf16>
    %196 = vector.extract_strided_slice %192 {offsets = [0, 0, 0], sizes = [2, 8, 8], strides = [1, 1, 1]} : vector<2x8x32xf32> to vector<2x8x8xf32>
    %197 = arith.truncf %196 : vector<2x8x8xf32> to vector<2x8x8xbf16>
    %198 = vector.extract_strided_slice %193 {offsets = [0, 0, 0], sizes = [2, 8, 8], strides = [1, 1, 1]} : vector<2x8x32xf32> to vector<2x8x8xf32>
    %199 = arith.truncf %198 : vector<2x8x8xf32> to vector<2x8x8xbf16>
    "tpu.trace_start"() <{level = 10 : i32, message = "bqd,bkd->bqk"}> : () -> ()
    %cst_45 = arith.constant dense<0.000000e+00> : vector<2x8x8xf32>
    %200 = tpu.matmul %195, %197, %cst_45 {dimension_numbers = #tpu.dot_dimension_numbers<[2], [2], [1], [1], [0, 0, 0, 1, 1, 1], [0], [0]>} : vector<2x8x8xbf16>, vector<2x8x8xbf16>, vector<2x8x8xf32> -> vector<2x8x8xf32>
    "tpu.trace_stop"() : () -> ()
    %cst_46 = arith.constant 0.353553385 : f32
    %201 = vector.broadcast %cst_46 : f32 to vector<2x8x8xf32>
    %202 = arith.mulf %200, %201 : vector<2x8x8xf32>
    %cst_47 = arith.constant dense<0xFF800000> : vector<2x8xf32>
    %203 = vector.multi_reduction <maximumf>, %202, %cst_47 [2] : vector<2x8x8xf32> to vector<2x8xf32>
    %204 = vector.shape_cast %203 : vector<2x8xf32> to vector<2x8x1xf32>
    %205 = vector.broadcast %204 : vector<2x8x1xf32> to vector<2x8x8xf32>
    %206 = arith.subf %202, %205 : vector<2x8x8xf32>
    %207 = math.exp %206 : vector<2x8x8xf32>
    %cst_48 = arith.constant dense<0.000000e+00> : vector<2x8xf32>
    %208 = vector.multi_reduction <add>, %207, %cst_48 [2] : vector<2x8x8xf32> to vector<2x8xf32>
    %209 = vector.shape_cast %208 : vector<2x8xf32> to vector<2x8x1xf32>
    %210 = tpu.reciprocal %209 {approx = true} : vector<2x8x1xf32> -> vector<2x8x1xf32>
    %211 = vector.broadcast %210 : vector<2x8x1xf32> to vector<2x8x8xf32>
    %212 = arith.mulf %207, %211 : vector<2x8x8xf32>
    %213 = arith.truncf %212 : vector<2x8x8xf32> to vector<2x8x8xbf16>
    "tpu.trace_start"() <{level = 10 : i32, message = "bqk,bkd->bqd"}> : () -> ()
    %cst_49 = arith.constant dense<0.000000e+00> : vector<2x8x8xf32>
    %214 = tpu.matmul %213, %199, %cst_49 {dimension_numbers = #tpu.dot_dimension_numbers<[2], [1], [1], [2], [0, 0, 0, 1, 1, 2], [0], [0]>} : vector<2x8x8xbf16>, vector<2x8x8xbf16>, vector<2x8x8xf32> -> vector<2x8x8xf32>
    "tpu.trace_stop"() : () -> ()
    %215 = vector.extract_strided_slice %191 {offsets = [0, 0, 8], sizes = [2, 8, 8], strides = [1, 1, 1]} : vector<2x8x32xf32> to vector<2x8x8xf32>
    %216 = arith.truncf %215 : vector<2x8x8xf32> to vector<2x8x8xbf16>
    %217 = vector.extract_strided_slice %192 {offsets = [0, 0, 8], sizes = [2, 8, 8], strides = [1, 1, 1]} : vector<2x8x32xf32> to vector<2x8x8xf32>
    %218 = arith.truncf %217 : vector<2x8x8xf32> to vector<2x8x8xbf16>
    %219 = vector.extract_strided_slice %193 {offsets = [0, 0, 8], sizes = [2, 8, 8], strides = [1, 1, 1]} : vector<2x8x32xf32> to vector<2x8x8xf32>
    %220 = arith.truncf %219 : vector<2x8x8xf32> to vector<2x8x8xbf16>
    "tpu.trace_start"() <{level = 10 : i32, message = "bqd,bkd->bqk"}> : () -> ()
    %cst_50 = arith.constant dense<0.000000e+00> : vector<2x8x8xf32>
    %221 = tpu.matmul %216, %218, %cst_50 {dimension_numbers = #tpu.dot_dimension_numbers<[2], [2], [1], [1], [0, 0, 0, 1, 1, 1], [0], [0]>} : vector<2x8x8xbf16>, vector<2x8x8xbf16>, vector<2x8x8xf32> -> vector<2x8x8xf32>
    "tpu.trace_stop"() : () -> ()
    %cst_51 = arith.constant 0.353553385 : f32
    %222 = vector.broadcast %cst_51 : f32 to vector<2x8x8xf32>
    %223 = arith.mulf %221, %222 : vector<2x8x8xf32>
    %cst_52 = arith.constant dense<0xFF800000> : vector<2x8xf32>
    %224 = vector.multi_reduction <maximumf>, %223, %cst_52 [2] : vector<2x8x8xf32> to vector<2x8xf32>
    %225 = vector.shape_cast %224 : vector<2x8xf32> to vector<2x8x1xf32>
    %226 = vector.broadcast %225 : vector<2x8x1xf32> to vector<2x8x8xf32>
    %227 = arith.subf %223, %226 : vector<2x8x8xf32>
    %228 = math.exp %227 : vector<2x8x8xf32>
    %cst_53 = arith.constant dense<0.000000e+00> : vector<2x8xf32>
    %229 = vector.multi_reduction <add>, %228, %cst_53 [2] : vector<2x8x8xf32> to vector<2x8xf32>
    %230 = vector.shape_cast %229 : vector<2x8xf32> to vector<2x8x1xf32>
    %231 = tpu.reciprocal %230 {approx = true} : vector<2x8x1xf32> -> vector<2x8x1xf32>
    %232 = vector.broadcast %231 : vector<2x8x1xf32> to vector<2x8x8xf32>
    %233 = arith.mulf %228, %232 : vector<2x8x8xf32>
    %234 = arith.truncf %233 : vector<2x8x8xf32> to vector<2x8x8xbf16>
    "tpu.trace_start"() <{level = 10 : i32, message = "bqk,bkd->bqd"}> : () -> ()
    %cst_54 = arith.constant dense<0.000000e+00> : vector<2x8x8xf32>
    %235 = tpu.matmul %234, %220, %cst_54 {dimension_numbers = #tpu.dot_dimension_numbers<[2], [1], [1], [2], [0, 0, 0, 1, 1, 2], [0], [0]>} : vector<2x8x8xbf16>, vector<2x8x8xbf16>, vector<2x8x8xf32> -> vector<2x8x8xf32>
    "tpu.trace_stop"() : () -> ()
    %236 = vector.extract_strided_slice %191 {offsets = [0, 0, 16], sizes = [2, 8, 8], strides = [1, 1, 1]} : vector<2x8x32xf32> to vector<2x8x8xf32>
    %237 = arith.truncf %236 : vector<2x8x8xf32> to vector<2x8x8xbf16>
    %238 = vector.extract_strided_slice %192 {offsets = [0, 0, 16], sizes = [2, 8, 8], strides = [1, 1, 1]} : vector<2x8x32xf32> to vector<2x8x8xf32>
    %239 = arith.truncf %238 : vector<2x8x8xf32> to vector<2x8x8xbf16>
    %240 = vector.extract_strided_slice %193 {offsets = [0, 0, 16], sizes = [2, 8, 8], strides = [1, 1, 1]} : vector<2x8x32xf32> to vector<2x8x8xf32>
    %241 = arith.truncf %240 : vector<2x8x8xf32> to vector<2x8x8xbf16>
    "tpu.trace_start"() <{level = 10 : i32, message = "bqd,bkd->bqk"}> : () -> ()
    %cst_55 = arith.constant dense<0.000000e+00> : vector<2x8x8xf32>
    %242 = tpu.matmul %237, %239, %cst_55 {dimension_numbers = #tpu.dot_dimension_numbers<[2], [2], [1], [1], [0, 0, 0, 1, 1, 1], [0], [0]>} : vector<2x8x8xbf16>, vector<2x8x8xbf16>, vector<2x8x8xf32> -> vector<2x8x8xf32>
    "tpu.trace_stop"() : () -> ()
    %cst_56 = arith.constant 0.353553385 : f32
    %243 = vector.broadcast %cst_56 : f32 to vector<2x8x8xf32>
    %244 = arith.mulf %242, %243 : vector<2x8x8xf32>
    %cst_57 = arith.constant dense<0xFF800000> : vector<2x8xf32>
    %245 = vector.multi_reduction <maximumf>, %244, %cst_57 [2] : vector<2x8x8xf32> to vector<2x8xf32>
    %246 = vector.shape_cast %245 : vector<2x8xf32> to vector<2x8x1xf32>
    %247 = vector.broadcast %246 : vector<2x8x1xf32> to vector<2x8x8xf32>
    %248 = arith.subf %244, %247 : vector<2x8x8xf32>
    %249 = math.exp %248 : vector<2x8x8xf32>
    %cst_58 = arith.constant dense<0.000000e+00> : vector<2x8xf32>
    %250 = vector.multi_reduction <add>, %249, %cst_58 [2] : vector<2x8x8xf32> to vector<2x8xf32>
    %251 = vector.shape_cast %250 : vector<2x8xf32> to vector<2x8x1xf32>
    %252 = tpu.reciprocal %251 {approx = true} : vector<2x8x1xf32> -> vector<2x8x1xf32>
    %253 = vector.broadcast %252 : vector<2x8x1xf32> to vector<2x8x8xf32>
    %254 = arith.mulf %249, %253 : vector<2x8x8xf32>
    %255 = arith.truncf %254 : vector<2x8x8xf32> to vector<2x8x8xbf16>
    "tpu.trace_start"() <{level = 10 : i32, message = "bqk,bkd->bqd"}> : () -> ()
    %cst_59 = arith.constant dense<0.000000e+00> : vector<2x8x8xf32>
    %256 = tpu.matmul %255, %241, %cst_59 {dimension_numbers = #tpu.dot_dimension_numbers<[2], [1], [1], [2], [0, 0, 0, 1, 1, 2], [0], [0]>} : vector<2x8x8xbf16>, vector<2x8x8xbf16>, vector<2x8x8xf32> -> vector<2x8x8xf32>
    "tpu.trace_stop"() : () -> ()
    %257 = vector.extract_strided_slice %191 {offsets = [0, 0, 24], sizes = [2, 8, 8], strides = [1, 1, 1]} : vector<2x8x32xf32> to vector<2x8x8xf32>
    %258 = arith.truncf %257 : vector<2x8x8xf32> to vector<2x8x8xbf16>
    %259 = vector.extract_strided_slice %192 {offsets = [0, 0, 24], sizes = [2, 8, 8], strides = [1, 1, 1]} : vector<2x8x32xf32> to vector<2x8x8xf32>
    %260 = arith.truncf %259 : vector<2x8x8xf32> to vector<2x8x8xbf16>
    %261 = vector.extract_strided_slice %193 {offsets = [0, 0, 24], sizes = [2, 8, 8], strides = [1, 1, 1]} : vector<2x8x32xf32> to vector<2x8x8xf32>
    %262 = arith.truncf %261 : vector<2x8x8xf32> to vector<2x8x8xbf16>
    "tpu.trace_start"() <{level = 10 : i32, message = "bqd,bkd->bqk"}> : () -> ()
    %cst_60 = arith.constant dense<0.000000e+00> : vector<2x8x8xf32>
    %263 = tpu.matmul %258, %260, %cst_60 {dimension_numbers = #tpu.dot_dimension_numbers<[2], [2], [1], [1], [0, 0, 0, 1, 1, 1], [0], [0]>} : vector<2x8x8xbf16>, vector<2x8x8xbf16>, vector<2x8x8xf32> -> vector<2x8x8xf32>
    "tpu.trace_stop"() : () -> ()
    %cst_61 = arith.constant 0.353553385 : f32
    %264 = vector.broadcast %cst_61 : f32 to vector<2x8x8xf32>
    %265 = arith.mulf %263, %264 : vector<2x8x8xf32>
    %cst_62 = arith.constant dense<0xFF800000> : vector<2x8xf32>
    %266 = vector.multi_reduction <maximumf>, %265, %cst_62 [2] : vector<2x8x8xf32> to vector<2x8xf32>
    %267 = vector.shape_cast %266 : vector<2x8xf32> to vector<2x8x1xf32>
    %268 = vector.broadcast %267 : vector<2x8x1xf32> to vector<2x8x8xf32>
    %269 = arith.subf %265, %268 : vector<2x8x8xf32>
    %270 = math.exp %269 : vector<2x8x8xf32>
    %cst_63 = arith.constant dense<0.000000e+00> : vector<2x8xf32>
    %271 = vector.multi_reduction <add>, %270, %cst_63 [2] : vector<2x8x8xf32> to vector<2x8xf32>
    %272 = vector.shape_cast %271 : vector<2x8xf32> to vector<2x8x1xf32>
    %273 = tpu.reciprocal %272 {approx = true} : vector<2x8x1xf32> -> vector<2x8x1xf32>
    %274 = vector.broadcast %273 : vector<2x8x1xf32> to vector<2x8x8xf32>
    %275 = arith.mulf %270, %274 : vector<2x8x8xf32>
    %276 = arith.truncf %275 : vector<2x8x8xf32> to vector<2x8x8xbf16>
    "tpu.trace_start"() <{level = 10 : i32, message = "bqk,bkd->bqd"}> : () -> ()
    %cst_64 = arith.constant dense<0.000000e+00> : vector<2x8x8xf32>
    %277 = tpu.matmul %276, %262, %cst_64 {dimension_numbers = #tpu.dot_dimension_numbers<[2], [1], [1], [2], [0, 0, 0, 1, 1, 2], [0], [0]>} : vector<2x8x8xbf16>, vector<2x8x8xbf16>, vector<2x8x8xf32> -> vector<2x8x8xf32>
    "tpu.trace_stop"() : () -> ()
    %278 = tpu.concatenate %214, %235, %256, %277 in 2 : vector<2x8x8xf32>, vector<2x8x8xf32>, vector<2x8x8xf32>, vector<2x8x8xf32> -> vector<2x8x32xf32>
    %279 = vector.shape_cast %278 : vector<2x8x32xf32> to vector<16x32xf32>
    %280 = arith.truncf %279 : vector<16x32xf32> to vector<16x32xbf16>
    %281 = vector.extract_strided_slice %176 {offsets = [0, 96], sizes = [32, 32], strides = [1, 1]} : vector<32x128xbf16> to vector<32x32xbf16>
    %cst_65 = arith.constant dense<0.000000e+00> : vector<16x32xf32>
    %282 = tpu.matmul %280, %281, %cst_65 {dimension_numbers = #tpu.dot_dimension_numbers<[1], [0], [0], [1], [0, 0, 1, 1], [], []>} : vector<16x32xbf16>, vector<32x32xbf16>, vector<16x32xf32> -> vector<16x32xf32>
    %283 = vector.broadcast %15 : vector<1x32xf32> to vector<16x32xf32>
    %284 = arith.addf %282, %283 : vector<16x32xf32>
    %285 = arith.addf %174, %284 : vector<16x32xf32>
    %cst_66 = arith.constant dense<0.000000e+00> : vector<16xf32>
    %286 = vector.multi_reduction <add>, %285, %cst_66 [1] : vector<16x32xf32> to vector<16xf32>
    %287 = vector.shape_cast %286 : vector<16xf32> to vector<16x1xf32>
    %cst_67 = arith.constant 3.200000e+01 : f32
    %288 = vector.broadcast %cst_67 : f32 to vector<16x1xf32>
    %289 = arith.divf %287, %288 : vector<16x1xf32>
    %290 = vector.broadcast %289 : vector<16x1xf32> to vector<16x32xf32>
    %291 = arith.subf %285, %290 : vector<16x32xf32>
    %292 = arith.mulf %291, %291 : vector<16x32xf32>
    %cst_68 = arith.constant dense<0.000000e+00> : vector<16xf32>
    %293 = vector.multi_reduction <add>, %292, %cst_68 [1] : vector<16x32xf32> to vector<16xf32>
    %294 = vector.shape_cast %293 : vector<16xf32> to vector<16x1xf32>
    %cst_69 = arith.constant 3.200000e+01 : f32
    %295 = vector.broadcast %cst_69 : f32 to vector<16x1xf32>
    %296 = arith.divf %294, %295 : vector<16x1xf32>
    %297 = vector.broadcast %289 : vector<16x1xf32> to vector<16x32xf32>
    %298 = arith.subf %285, %297 : vector<16x32xf32>
    %cst_70 = arith.constant 9.99999974E-6 : f32
    %299 = vector.broadcast %cst_70 : f32 to vector<16x1xf32>
    %300 = arith.addf %296, %299 : vector<16x1xf32>
    %301 = math.rsqrt %300 : vector<16x1xf32>
    %302 = vector.broadcast %301 : vector<16x1xf32> to vector<16x32xf32>
    %303 = arith.mulf %298, %302 : vector<16x32xf32>
    %304 = vector.broadcast %20 : vector<1x32xf32> to vector<16x32xf32>
    %305 = arith.mulf %303, %304 : vector<16x32xf32>
    %306 = vector.broadcast %21 : vector<1x32xf32> to vector<16x32xf32>
    %307 = arith.addf %305, %306 : vector<16x32xf32>
    %308 = arith.truncf %307 : vector<16x32xf32> to vector<16x32xbf16>
    %c0_71 = arith.constant 0 : index
    %c0_72 = arith.constant 0 : index
    %c0_73 = arith.constant 0 : index
    %309 = vector.load %arg5[%c0_71, %c0_72, %c0_73] : memref<1x32x64xbf16, #tpu.memory_space<vmem>>, vector<1x32x64xbf16>
    %310 = vector.shape_cast %309 : vector<1x32x64xbf16> to vector<32x64xbf16>
    %cst_74 = arith.constant dense<0.000000e+00> : vector<16x64xf32>
    %311 = tpu.matmul %308, %310, %cst_74 {dimension_numbers = #tpu.dot_dimension_numbers<[1], [0], [0], [1], [0, 0, 1, 1], [], []>} : vector<16x32xbf16>, vector<32x64xbf16>, vector<16x64xf32> -> vector<16x64xf32>
    %312 = vector.broadcast %16 : vector<1x64xf32> to vector<16x64xf32>
    %313 = arith.addf %311, %312 : vector<16x64xf32>
    %cst_75 = arith.constant 0.000000e+00 : f32
    %314 = vector.broadcast %cst_75 : f32 to vector<16x64xf32>
    %315 = arith.maximumf %313, %314 : vector<16x64xf32>
    %316 = arith.truncf %315 : vector<16x64xf32> to vector<16x64xbf16>
    %c0_76 = arith.constant 0 : index
    %c0_77 = arith.constant 0 : index
    %c0_78 = arith.constant 0 : index
    %317 = vector.load %arg6[%c0_76, %c0_77, %c0_78] : memref<1x64x32xbf16, #tpu.memory_space<vmem>>, vector<1x64x32xbf16>
    %318 = vector.shape_cast %317 : vector<1x64x32xbf16> to vector<64x32xbf16>
    %cst_79 = arith.constant dense<0.000000e+00> : vector<16x32xf32>
    %319 = tpu.matmul %316, %318, %cst_79 {dimension_numbers = #tpu.dot_dimension_numbers<[1], [0], [0], [1], [0, 0, 1, 1], [], []>} : vector<16x64xbf16>, vector<64x32xbf16>, vector<16x32xf32> -> vector<16x32xf32>
    %320 = vector.broadcast %17 : vector<1x32xf32> to vector<16x32xf32>
    %321 = arith.addf %319, %320 : vector<16x32xf32>
    %322 = arith.addf %307, %321 : vector<16x32xf32>
    %cst_80 = arith.constant dense<0.000000e+00> : vector<16xf32>
    %323 = vector.multi_reduction <add>, %322, %cst_80 [1] : vector<16x32xf32> to vector<16xf32>
    %324 = vector.shape_cast %323 : vector<16xf32> to vector<16x1xf32>
    %cst_81 = arith.constant 3.200000e+01 : f32
    %325 = vector.broadcast %cst_81 : f32 to vector<16x1xf32>
    %326 = arith.divf %324, %325 : vector<16x1xf32>
    %327 = vector.broadcast %326 : vector<16x1xf32> to vector<16x32xf32>
    %328 = arith.subf %322, %327 : vector<16x32xf32>
    %329 = arith.mulf %328, %328 : vector<16x32xf32>
    %cst_82 = arith.constant dense<0.000000e+00> : vector<16xf32>
    %330 = vector.multi_reduction <add>, %329, %cst_82 [1] : vector<16x32xf32> to vector<16xf32>
    %331 = vector.shape_cast %330 : vector<16xf32> to vector<16x1xf32>
    %cst_83 = arith.constant 3.200000e+01 : f32
    %332 = vector.broadcast %cst_83 : f32 to vector<16x1xf32>
    %333 = arith.divf %331, %332 : vector<16x1xf32>
    %334 = vector.broadcast %326 : vector<16x1xf32> to vector<16x32xf32>
    %335 = arith.subf %322, %334 : vector<16x32xf32>
    %cst_84 = arith.constant 9.99999974E-6 : f32
    %336 = vector.broadcast %cst_84 : f32 to vector<16x1xf32>
    %337 = arith.addf %333, %336 : vector<16x1xf32>
    %338 = math.rsqrt %337 : vector<16x1xf32>
    %339 = vector.broadcast %338 : vector<16x1xf32> to vector<16x32xf32>
    %340 = arith.mulf %335, %339 : vector<16x32xf32>
    %341 = vector.broadcast %22 : vector<1x32xf32> to vector<16x32xf32>
    %342 = arith.mulf %340, %341 : vector<16x32xf32>
    %343 = vector.broadcast %23 : vector<1x32xf32> to vector<16x32xf32>
    %344 = arith.addf %342, %343 : vector<16x32xf32>
    %c0_85 = arith.constant 0 : index
    %c0_86 = arith.constant 0 : index
    %345 = vector.load %arg9[%c0_85, %c0_86] : memref<16x32xf32, #tpu.memory_space<vmem>>, vector<16x32xf32>
    tpu.vector_store %arg9[%c0_85, %c0_86], %344 {strides = array<i32>} : memref<16x32xf32, #tpu.memory_space<vmem>>, vector<16x32xf32>,
    %c1_i32 = arith.constant 1 : i32
    %346 = arith.cmpi eq, %arg0, %c1_i32 : i32
    %347 = arith.extui %346 : i1 to i32
    %c0_i32_87 = arith.constant 0 : i32
    %348 = arith.cmpi ne, %347, %c0_i32_87 : i32
    scf.if %348 {
      %349 = vector.shape_cast %344 : vector<16x32xf32> to vector<2x8x32xf32>
      %c0_88 = arith.constant 0 : index
      %c0_89 = arith.constant 0 : index
      %c0_90 = arith.constant 0 : index
      %350 = vector.load %arg8[%c0_88, %c0_89, %c0_90] : memref<2x8x32xf32, #tpu.memory_space<vmem>>, vector<2x8x32xf32>
      tpu.vector_store %arg8[%c0_88, %c0_89, %c0_90], %349 {strides = array<i32>} : memref<2x8x32xf32, #tpu.memory_space<vmem>>, vector<2x8x32xf32>,
    } else {
    }
    return
  }
  func.func @transform_0(%arg0: i32) -> (i32, i32, i32) {
    %c0_i32 = arith.constant 0 : i32
    %c0_i32_0 = arith.constant 0 : i32
    %c0_i32_1 = arith.constant 0 : i32
    %c0_i32_2 = arith.constant 0 : i32
    return %c0_i32, %c0_i32_0, %c0_i32_1 : i32, i32, i32
  }
  func.func @transform_1(%arg0: i32) -> (i32, i32, i32) {
    %c0_i32 = arith.constant 0 : i32
    %c0_i32_0 = arith.constant 0 : i32
    %c0_i32_1 = arith.constant 0 : i32
    %c0_i32_2 = arith.constant 0 : i32
    return %c0_i32, %c0_i32_0, %c0_i32_1 : i32, i32, i32
  }
  func.func @transform_2(%arg0: i32) -> (i32, i32, i32) {
    %c0_i32 = arith.constant 0 : i32
    %c0_i32_0 = arith.constant 0 : i32
    %c0_i32_1 = arith.constant 0 : i32
    return %arg0, %c0_i32, %c0_i32_0 : i32, i32, i32
  }
  func.func @transform_3(%arg0: i32) -> (i32, i32, i32) {
    %c0_i32 = arith.constant 0 : i32
    %c0_i32_0 = arith.constant 0 : i32
    %c0_i32_1 = arith.constant 0 : i32
    return %arg0, %c0_i32, %c0_i32_0 : i32, i32, i32
  }
  func.func @transform_4(%arg0: i32) -> (i32, i32, i32) {
    %c0_i32 = arith.constant 0 : i32
    %c0_i32_0 = arith.constant 0 : i32
    %c0_i32_1 = arith.constant 0 : i32
    return %arg0, %c0_i32, %c0_i32_0 : i32, i32, i32
  }
  func.func @transform_5(%arg0: i32) -> (i32, i32, i32) {
    %c0_i32 = arith.constant 0 : i32
    %c0_i32_0 = arith.constant 0 : i32
    %c0_i32_1 = arith.constant 0 : i32
    return %arg0, %c0_i32, %c0_i32_0 : i32, i32, i32
  }
  func.func @transform_6(%arg0: i32) -> (i32, i32, i32) {
    %c0_i32 = arith.constant 0 : i32
    %c0_i32_0 = arith.constant 0 : i32
    %c0_i32_1 = arith.constant 0 : i32
    return %arg0, %c0_i32, %c0_i32_0 : i32, i32, i32
  }
  func.func @transform_7(%arg0: i32) -> (i32, i32, i32) {
    %c0_i32 = arith.constant 0 : i32
    %c0_i32_0 = arith.constant 0 : i32
    %c0_i32_1 = arith.constant 0 : i32
    %c0_i32_2 = arith.constant 0 : i32
    return %c0_i32, %c0_i32_0, %c0_i32_1 : i32, i32, i32
  }
}

</mosaic_0001>

<llo_original>
// kernel: tpu_custom_call.1
$region0: #{tpu_custom_call.1}
  #allocation0 [shape = 'u32[]', space=smem, size = 0x4, offset = 0x4, fixed_abs, tag = 'smem constant byte address 0x4 - core index']
  #allocation1 [shape = 'u32[144,128]{1,0:T(1,128)}', space=vmem, size = 0x12000, scoped, tag = 'internal scratch']
  #allocation2 [shape = 'f32[16,32]{1,0:T(8,128)}', space=vmem, size = 0x2000, scoped, tag = 'scratch operand']
  %s0 = inlined_call_operand.hbm [shape: f32[2,8,32], index: 0, kind: input, shape index: {}]
  %s1 = inlined_call_operand.hbm [shape: f32[2,8,32], index: 1, kind: input, shape index: {}]
  %s2 = inlined_call_operand.vmem [shape: bf16[2,32,128], index: 2, kind: input, shape index: {}]
  %s3 = inlined_call_operand.vmem [shape: bf16[2,32,128], index: 3, kind: input, shape index: {}]
  %s4 = inlined_call_operand.vmem [shape: bf16[2,32,64], index: 4, kind: input, shape index: {}]
  %s5 = inlined_call_operand.vmem [shape: bf16[2,64,32], index: 5, kind: input, shape index: {}]
  %s6 = inlined_call_operand.hbm [shape: f32[2,16,64], index: 6, kind: input, shape index: {}]
  %s7 = inlined_call_operand.hbm [shape: f32[2,8,32], index: 7, kind: output, shape index: {}]
  %s8 = sld [smem:[#allocation0]]
  $region81: #{tpu_custom_call.1} parent=0
    _
  %s10 = ssub.s32 1, %s8
  %s11 = scalar_select 0, %s10, %s8
  $region1: #{tpu_custom_call.1} parent=0
    #allocation3 [shape = 'u8[8192]{0}', space=vmem, size = 0x2000, scoped, tag = 'input window, operand 0, single buffered']
    #allocation4 [shape = 's32[2]{0}', space=sflag, size = 0x8, scoped, tag = 'scoped memory for tpu_custom_call.1']
    #allocation5 [shape = 's32[2]{0}', space=sflag, size = 0x8, scoped, tag = 'scoped memory for tpu_custom_call.1']
    #allocation6 [shape = 'u8[8192]{0}', space=vmem, size = 0x2000, scoped, tag = 'input window, operand 1, single buffered']
    #allocation7 [shape = 's32[1]{0}', space=sflag, size = 0x4, scoped, tag = 'scoped memory for tpu_custom_call.1']
    #allocation8 [shape = 'u8[16384]{0}', space=vmem, size = 0x4000, scoped, tag = 'input window, operand 6']
    #allocation9 [shape = 'u8[8192]{0}', space=vmem, size = 0x2000, scoped, tag = 'output window, operand 0, single buffered']
    %12 = vsyncpa [#allocation4], 0
    %13 = vsyncpa [#allocation7], 0
    %14 = vsyncpa [#allocation5], 0
    loop: start=0, step=1, limit=4
    $region2: #{tpu_custom_call.1} parent=1 // loop_pre_header
      _
    $region3: #{tpu_custom_call.1} parent=1 // loop_header
      %s16 = sphi 0, %s20
      %p17 = scmp.ge.s32.totalorder %s16, 4
      %s24 = sphi 0, %s24
      %s26 = sphi 0, %s24
      %s27 = sphi 0, %s26
      %s41 = sphi 0, %s27
      %s45 = sphi 0, %s45
      %s47 = sphi 0, %s45
      %s48 = sphi 0, %s47
      %s62 = sphi 0, %s48
      %s68 = sphi 0, %s70
      %s71 = sphi 0, %s68
      %s72 = sphi 0, %s71
      %s88 = sphi 0, %s72
      %s94 = sphi 0, %s96
      %s97 = sphi 0, %s94
      %s98 = sphi 0, %s97
      %s114 = sphi 0, %s98
      %s120 = sphi 0, %s122
      %s123 = sphi 0, %s120
      %s124 = sphi 0, %s123
      %s140 = sphi 0, %s124
      %s146 = sphi 0, %s148
      %s149 = sphi 0, %s146
      %s150 = sphi 0, %s149
      %s166 = sphi 0, %s150
      %s172 = sphi 0, %s174
      %s175 = sphi 0, %s172
      %s176 = sphi 0, %s175
      %s192 = sphi 0, %s176
      %s196 = sphi 0, %s196
      %s198 = sphi 0, %s196
      %s199 = sphi 0, %s198
      %s213 = sphi 0, %s199
    $region4: #{tpu_custom_call.1} parent=1 // loop_header_branch
      %19 = sbr.rel (%p17) target = $region8
    $region5: #{tpu_custom_call.1} parent=1 // loop_body
      %s21 = ssub.s32 %s16, 1
      %s22 = ssub.s32 %s16, 2
      %s23 = sadd.s32 %s16, 1
      %s25 = sadd.s32 %s24, 1
      %p28 = scmp.eq.s32.totalorder %s16, 1
      %p29 = scmp.ne.s32.totalorder %s24, %s26
      %p30 = scmp.eq.s32.totalorder %s16, 0
      %p31 = por %p29, %p30
      %p32 = scmp.ne.s32.totalorder %s24, %s26
      %p33 = scmp.eq.s32.totalorder %s21, 1
      %p34 = por %p32, %p33
      %p35 = scmp.ne.s32.totalorder %s26, %s27
      %p36 = scmp.eq.s32.totalorder %s21, 0
      %p37 = por %p35, %p36
      %p38 = scmp.ne.s32.totalorder %s26, %s27
      %p39 = scmp.eq.s32.totalorder %s22, 1
      %p40 = por %p38, %p39
      %p42 = scmp.ne.s32.totalorder %s27, %s41
      %p43 = scmp.eq.s32.totalorder %s22, 0
      %p44 = por %p42, %p43
      %s46 = sadd.s32 %s45, 1
      %p49 = scmp.eq.s32.totalorder %s16, 1
      %p50 = scmp.ne.s32.totalorder %s45, %s47
      %p51 = scmp.eq.s32.totalorder %s16, 0
      %p52 = por %p50, %p51
      %p53 = scmp.ne.s32.totalorder %s45, %s47
      %p54 = scmp.eq.s32.totalorder %s21, 1
      %p55 = por %p53, %p54
      %p56 = scmp.ne.s32.totalorder %s47, %s48
      %p57 = scmp.eq.s32.totalorder %s21, 0
      %p58 = por %p56, %p57
      %p59 = scmp.ne.s32.totalorder %s47, %s48
      %p60 = scmp.eq.s32.totalorder %s22, 1
      %p61 = por %p59, %p60
      %p63 = scmp.ne.s32.totalorder %s48, %s62
      %p64 = scmp.eq.s32.totalorder %s22, 0
      %p65 = por %p63, %p64
      %s66 = ssub.s32 %s16, %s23
      %p67 = scmp.eq.s32.totalorder %s66, 0
      %s69 = sadd.s32 %s68, 1
      %s70 = scalar_select %p67, %s68, %s69
      %p73 = pneg %p67
      %p74 = scmp.eq.s32.totalorder %s16, 1
      %p75 = por %p73, %p74
      %p76 = scmp.ne.s32.totalorder %s68, %s71
      %p77 = scmp.eq.s32.totalorder %s16, 0
      %p78 = por %p76, %p77
      %p79 = scmp.ne.s32.totalorder %s68, %s71
      %p80 = scmp.eq.s32.totalorder %s21, 1
      %p81 = por %p79, %p80
      %p82 = scmp.ne.s32.totalorder %s71, %s72
      %p83 = scmp.eq.s32.totalorder %s21, 0
      %p84 = por %p82, %p83
      %p85 = scmp.ne.s32.totalorder %s71, %s72
      %p86 = scmp.eq.s32.totalorder %s22, 1
      %p87 = por %p85, %p86
      %p89 = scmp.ne.s32.totalorder %s72, %s88
      %p90 = scmp.eq.s32.totalorder %s22, 0
      %p91 = por %p89, %p90
      %s92 = ssub.s32 %s16, %s23
      %p93 = scmp.eq.s32.totalorder %s92, 0
      %s95 = sadd.s32 %s94, 1
      %s96 = scalar_select %p93, %s94, %s95
      %p99 = pneg %p93
      %p100 = scmp.eq.s32.totalorder %s16, 1
      %p101 = por %p99, %p100
      %p102 = scmp.ne.s32.totalorder %s94, %s97
      %p103 = scmp.eq.s32.totalorder %s16, 0
      %p104 = por %p102, %p103
      %p105 = scmp.ne.s32.totalorder %s94, %s97
      %p106 = scmp.eq.s32.totalorder %s21, 1
      %p107 = por %p105, %p106
      %p108 = scmp.ne.s32.totalorder %s97, %s98
      %p109 = scmp.eq.s32.totalorder %s21, 0
      %p110 = por %p108, %p109
      %p111 = scmp.ne.s32.totalorder %s97, %s98
      %p112 = scmp.eq.s32.totalorder %s22, 1
      %p113 = por %p111, %p112
      %p115 = scmp.ne.s32.totalorder %s98, %s114
      %p116 = scmp.eq.s32.totalorder %s22, 0
      %p117 = por %p115, %p116
      %s118 = ssub.s32 %s16, %s23
      %p119 = scmp.eq.s32.totalorder %s118, 0
      %s121 = sadd.s32 %s120, 1
      %s122 = scalar_select %p119, %s120, %s121
      %p125 = pneg %p119
      %p126 = scmp.eq.s32.totalorder %s16, 1
      %p127 = por %p125, %p126
      %p128 = scmp.ne.s32.totalorder %s120, %s123
      %p129 = scmp.eq.s32.totalorder %s16, 0
      %p130 = por %p128, %p129
      %p131 = scmp.ne.s32.totalorder %s120, %s123
      %p132 = scmp.eq.s32.totalorder %s21, 1
      %p133 = por %p131, %p132
      %p134 = scmp.ne.s32.totalorder %s123, %s124
      %p135 = scmp.eq.s32.totalorder %s21, 0
      %p136 = por %p134, %p135
      %p137 = scmp.ne.s32.totalorder %s123, %s124
      %p138 = scmp.eq.s32.totalorder %s22, 1
      %p139 = por %p137, %p138
      %p141 = scmp.ne.s32.totalorder %s124, %s140
      %p142 = scmp.eq.s32.totalorder %s22, 0
      %p143 = por %p141, %p142
      %s144 = ssub.s32 %s16, %s23
      %p145 = scmp.eq.s32.totalorder %s144, 0
      %s147 = sadd.s32 %s146, 1
      %s148 = scalar_select %p145, %s146, %s147
      %p151 = pneg %p145
      %p152 = scmp.eq.s32.totalorder %s16, 1
      %p153 = por %p151, %p152
      %p154 = scmp.ne.s32.totalorder %s146, %s149
      %p155 = scmp.eq.s32.totalorder %s16, 0
      %p156 = por %p154, %p155
      %p157 = scmp.ne.s32.totalorder %s146, %s149
      %p158 = scmp.eq.s32.totalorder %s21, 1
      %p159 = por %p157, %p158
      %p160 = scmp.ne.s32.totalorder %s149, %s150
      %p161 = scmp.eq.s32.totalorder %s21, 0
      %p162 = por %p160, %p161
      %p163 = scmp.ne.s32.totalorder %s149, %s150
      %p164 = scmp.eq.s32.totalorder %s22, 1
      %p165 = por %p163, %p164
      %p167 = scmp.ne.s32.totalorder %s150, %s166
      %p168 = scmp.eq.s32.totalorder %s22, 0
      %p169 = por %p167, %p168
      %s170 = ssub.s32 %s16, %s23
      %p171 = scmp.eq.s32.totalorder %s170, 0
      %s173 = sadd.s32 %s172, 1
      %s174 = scalar_select %p171, %s172, %s173
      %p177 = pneg %p171
      %p178 = scmp.eq.s32.totalorder %s16, 1
      %p179 = por %p177, %p178
      %p180 = scmp.ne.s32.totalorder %s172, %s175
      %p181 = scmp.eq.s32.totalorder %s16, 0
      %p182 = por %p180, %p181
      %p183 = scmp.ne.s32.totalorder %s172, %s175
      %p184 = scmp.eq.s32.totalorder %s21, 1
      %p185 = por %p183, %p184
      %p186 = scmp.ne.s32.totalorder %s175, %s176
      %p187 = scmp.eq.s32.totalorder %s21, 0
      %p188 = por %p186, %p187
      %p189 = scmp.ne.s32.totalorder %s175, %s176
      %p190 = scmp.eq.s32.totalorder %s22, 1
      %p191 = por %p189, %p190
      %p193 = scmp.ne.s32.totalorder %s176, %s192
      %p194 = scmp.eq.s32.totalorder %s22, 0
      %p195 = por %p193, %p194
      %s197 = sadd.s32 %s196, 1
      %p200 = scmp.eq.s32.totalorder %s16, 1
      %p201 = scmp.ne.s32.totalorder %s196, %s198
      %p202 = scmp.eq.s32.totalorder %s16, 0
      %p203 = por %p201, %p202
      %p204 = scmp.ne.s32.totalorder %s196, %s198
      %p205 = scmp.eq.s32.totalorder %s21, 1
      %p206 = por %p204, %p205
      %p207 = scmp.ne.s32.totalorder %s198, %s199
      %p208 = scmp.eq.s32.totalorder %s21, 0
      %p209 = por %p207, %p208
      %p210 = scmp.ne.s32.totalorder %s198, %s199
      %p211 = scmp.eq.s32.totalorder %s22, 1
      %p212 = por %p210, %p211
      %p214 = scmp.ne.s32.totalorder %s199, %s213
      %p215 = scmp.eq.s32.totalorder %s22, 0
      %p216 = por %p214, %p215
      %p217 = scmp.le.s32.totalorder 1, %s16
      %p218 = scmp.lt.s32.totalorder %s16, 3
      %p219 = pnand %p217, %p218
      %p220 = pneg %p219
      // Predicated region
      $region9: #{tpu_custom_call.1} parent=5 // pred_check
        _
      $region10: #{tpu_custom_call.1} parent=5 // pred_check_branch
        %222 = sbr.rel (%p219) target = $region12
      $region11: #{tpu_custom_call.1} parent=5 // pred_region
        %s223 = ssub.s32 %s16, 1
        // Predicated region
        $region13: #{tpu_custom_call.1} parent=11 // pred_check
          %p224 = pneg %p37
        $region14: #{tpu_custom_call.1} parent=11 // pred_check_branch
          %226 = sbr.rel (%p224) target = $region16
        $region15: #{tpu_custom_call.1} parent=11 // pred_region
          %s228 = ssub.s32 256, 256
          %229 = vsyncadd [#allocation4], %s228
          %s230 = sshll.u32 [#allocation3], 4
          %s231 = int_to_ptr.vmem [resolvable:$true] %s230
          %236 = dma.hbm_to_vmem [thread:$0]  %s0, 256, %s231, [#allocation4], 128, 128, 8
        $region16: #{tpu_custom_call.1} parent=11 // pred_fallthru
          _
        // Predicated region
        $region17: #{tpu_custom_call.1} parent=11 // pred_check
          %p237 = pneg %p58
        $region18: #{tpu_custom_call.1} parent=11 // pred_check_branch
          %239 = sbr.rel (%p237) target = $region20
        $region19: #{tpu_custom_call.1} parent=11 // pred_region
          %s241 = ssub.s32 256, 256
          %242 = vsyncadd [#allocation7], %s241
          %s243 = sshll.u32 [#allocation6], 4
          %s244 = int_to_ptr.vmem [resolvable:$true] %s243
          %249 = dma.hbm_to_vmem [thread:$0]  %s1, 256, %s244, [#allocation7], 128, 128, 8
        $region20: #{tpu_custom_call.1} parent=11 // pred_fallthru
          _
      $region12: #{tpu_custom_call.1} parent=5 // pred_fallthru
        _
      %p250 = scmp.lt.s32.totalorder %s16, 2
      // Predicated region
      $region21: #{tpu_custom_call.1} parent=5 // pred_check
        %p251 = pneg %p250
      $region22: #{tpu_custom_call.1} parent=5 // pred_check_branch
        %253 = sbr.rel (%p251) target = $region24
      $region23: #{tpu_custom_call.1} parent=5 // pred_region
        // Predicated region
        $region25: #{tpu_custom_call.1} parent=23 // pred_check
          %p254 = pneg %p78
        $region26: #{tpu_custom_call.1} parent=23 // pred_check_branch
          %256 = sbr.rel (%p254) target = $region28
        $region27: #{tpu_custom_call.1} parent=23 // pred_region
          %p257 = scmp.lt.s32.totalorder %s16, 1
          %s258 = scalar_select %p257, %s16, 1
          %s259 = smul.addr %s258, 4
          %s260 = smul.addr %s259, 4
          %s261 = scalar_lea.vmem %s2, %s260
        $region28: #{tpu_custom_call.1} parent=23 // pred_fallthru
          _
        // Predicated region
        $region29: #{tpu_custom_call.1} parent=23 // pred_check
          %p262 = pneg %p104
        $region30: #{tpu_custom_call.1} parent=23 // pred_check_branch
          %264 = sbr.rel (%p262) target = $region32
        $region31: #{tpu_custom_call.1} parent=23 // pred_region
          %p265 = scmp.lt.s32.totalorder %s16, 1
          %s266 = scalar_select %p265, %s16, 1
          %s267 = smul.addr %s266, 4
          %s268 = smul.addr %s267, 4
          %s269 = scalar_lea.vmem %s3, %s268
        $region32: #{tpu_custom_call.1} parent=23 // pred_fallthru
          _
        // Predicated region
        $region33: #{tpu_custom_call.1} parent=23 // pred_check
          %p270 = pneg %p130
        $region34: #{tpu_custom_call.1} parent=23 // pred_check_branch
          %272 = sbr.rel (%p270) target = $region36
        $region35: #{tpu_custom_call.1} parent=23 // pred_region
          %p273 = scmp.lt.s32.totalorder %s16, 1
          %s274 = scalar_select %p273, %s16, 1
          %s275 = smul.addr %s274, 4
          %s276 = smul.addr %s275, 4
          %s277 = scalar_lea.vmem %s4, %s276
        $region36: #{tpu_custom_call.1} parent=23 // pred_fallthru
          _
        // Predicated region
        $region37: #{tpu_custom_call.1} parent=23 // pred_check
          %p278 = pneg %p156
        $region38: #{tpu_custom_call.1} parent=23 // pred_check_branch
          %280 = sbr.rel (%p278) target = $region40
        $region39: #{tpu_custom_call.1} parent=23 // pred_region
          %p281 = scmp.lt.s32.totalorder %s16, 1
          %s282 = scalar_select %p281, %s16, 1
          %s283 = smul.addr %s282, 8
          %s284 = smul.addr %s283, 4
          %s285 = scalar_lea.vmem %s5, %s284
        $region40: #{tpu_custom_call.1} parent=23 // pred_fallthru
          _
        // Predicated region
        $region41: #{tpu_custom_call.1} parent=23 // pred_check
          %p286 = pneg %p182
        $region42: #{tpu_custom_call.1} parent=23 // pred_check_branch
          %288 = sbr.rel (%p286) target = $region44
        $region43: #{tpu_custom_call.1} parent=23 // pred_region
          %s289 = sand.u32 %s16, 1
          %s290 = scalar_lea.sflag [#allocation4], %s289
          %s291 = sand.u32 %s172, 1
          %s292 = smul.addr %s291, 16
          %s293 = scalar_lea.vmem [#allocation8], %s292
          %s295 = ssub.s32 256, 256
          %296 = vsyncadd %s290, %s295
          %s297 = smul.addr %s16, 2
          %s298 = smul.addr %s297, 128
          %s299 = scalar_lea.hbm %s6, %s298
          %s300 = sshll.u32 %s293, 4
          %s301 = int_to_ptr.vmem [resolvable:$true] %s300
          %306 = dma.hbm_to_vmem [thread:$0]  %s299, 256, %s301, %s290, 128, 128, 8
        $region44: #{tpu_custom_call.1} parent=23 // pred_fallthru
          _
      $region24: #{tpu_custom_call.1} parent=5 // pred_fallthru
        _
      %p307 = scmp.le.s32.totalorder 1, %s16
      %p308 = scmp.lt.s32.totalorder %s16, 3
      %p309 = pnand %p307, %p308
      %p310 = pneg %p309
      // Predicated region
      $region45: #{tpu_custom_call.1} parent=5 // pred_check
        _
      $region46: #{tpu_custom_call.1} parent=5 // pred_check_branch
        %312 = sbr.rel (%p309) target = $region48
      $region47: #{tpu_custom_call.1} parent=5 // pred_region
        %s313 = ssub.s32 %s16, 1
        // Predicated region
        $region49: #{tpu_custom_call.1} parent=47 // pred_check
          %p314 = pneg %p37
        $region50: #{tpu_custom_call.1} parent=47 // pred_check_branch
          %316 = sbr.rel (%p314) target = $region52
        $region51: #{tpu_custom_call.1} parent=47 // pred_region
          %317 = dma.done [#allocation4], 256
        $region52: #{tpu_custom_call.1} parent=47 // pred_fallthru
          _
        // Predicated region
        $region53: #{tpu_custom_call.1} parent=47 // pred_check
          %p318 = pneg %p58
        $region54: #{tpu_custom_call.1} parent=47 // pred_check_branch
          %320 = sbr.rel (%p318) target = $region56
        $region55: #{tpu_custom_call.1} parent=47 // pred_region
          %321 = dma.done [#allocation7], 256
        $region56: #{tpu_custom_call.1} parent=47 // pred_fallthru
          _
        %s322 = sand.u32 %s21, 1
        %s323 = scalar_lea.sflag [#allocation4], %s322
        %s324 = sand.u32 %s175, 1
        %s325 = smul.addr %s324, 16
        %s326 = scalar_lea.vmem [#allocation8], %s325
        // Predicated region
        $region57: #{tpu_custom_call.1} parent=47 // pred_check
          %p327 = pneg %p188
        $region58: #{tpu_custom_call.1} parent=47 // pred_check_branch
          %329 = sbr.rel (%p327) target = $region60
        $region59: #{tpu_custom_call.1} parent=47 // pred_region
          %330 = dma.done %s323, 256
        $region60: #{tpu_custom_call.1} parent=47 // pred_fallthru
          _
        %p331 = pneg %p37
        %p332 = pneg %p34
        %p333 = pneg %p58
        %p334 = pneg %p55
        %p335 = scmp.lt.s32.totalorder %s21, 1
        %s336 = scalar_select %p335, %s21, 1
        %s337 = smul.addr %s336, 4
        %s338 = smul.addr %s337, 4
        %s339 = scalar_lea.vmem %s2, %s338
        %p340 = pneg %p84
        %p341 = pneg %p81
        %p342 = scmp.lt.s32.totalorder %s21, 1
        %s343 = scalar_select %p342, %s21, 1
        %s344 = smul.addr %s343, 4
        %s345 = smul.addr %s344, 4
        %s346 = scalar_lea.vmem %s3, %s345
        %p347 = pneg %p110
        %p348 = pneg %p107
        %p349 = scmp.lt.s32.totalorder %s21, 1
        %s350 = scalar_select %p349, %s21, 1
        %s351 = smul.addr %s350, 4
        %s352 = smul.addr %s351, 4
        %s353 = scalar_lea.vmem %s4, %s352
        %p354 = pneg %p136
        %p355 = pneg %p133
        %p356 = scmp.lt.s32.totalorder %s21, 1
        %s357 = scalar_select %p356, %s21, 1
        %s358 = smul.addr %s357, 8
        %s359 = smul.addr %s358, 4
        %s360 = scalar_lea.vmem %s5, %s359
        %p361 = pneg %p162
        %p362 = pneg %p159
        %s363 = sand.u32 %s21, 1
        %s364 = scalar_lea.sflag [#allocation4], %s363
        %s365 = sand.u32 %s175, 1
        %s366 = smul.addr %s365, 16
        %s367 = scalar_lea.vmem [#allocation8], %s366
        %p368 = pneg %p188
        %p369 = pneg %p185
        %p370 = pneg %p209
        %p371 = pneg %p206
        %p372 = scmp.lt.s32.totalorder %s21, 1
        %s373 = scalar_select %p372, %s21, 1
        %s374 = smul.addr %s373, 4
        %s375 = smul.addr %s374, 4
        %s376 = scalar_lea.vmem %s2, %s375
        %p377 = scmp.lt.s32.totalorder %s21, 1
        %s378 = scalar_select %p377, %s21, 1
        %s379 = smul.addr %s378, 4
        %s380 = smul.addr %s379, 4
        %s381 = scalar_lea.vmem %s3, %s380
        %p382 = scmp.lt.s32.totalorder %s21, 1
        %s383 = scalar_select %p382, %s21, 1
        %s384 = smul.addr %s383, 4
        %s385 = smul.addr %s384, 4
        %s386 = scalar_lea.vmem %s4, %s385
        %p387 = scmp.lt.s32.totalorder %s21, 1
        %s388 = scalar_select %p387, %s21, 1
        %s389 = smul.addr %s388, 8
        %s390 = smul.addr %s389, 4
        %s391 = scalar_lea.vmem %s5, %s390
        %p393 = scmp.eq.s32.totalorder %s21, 0
        // Predicated region
        $region61: #{tpu_custom_call.1} parent=47 // pred_check
          %p394 = pneg %p393
        $region62: #{tpu_custom_call.1} parent=47 // pred_check_branch
          %396 = sbr.rel (%p394) target = $region64
        $region63: #{tpu_custom_call.1} parent=47 // pred_region
          %v397 = vld [vmem:[#allocation3] sm:$0xff]
          %v398 = vld [vmem:[#allocation3 + $0x8] sm:$0xff]
          %vm399 = vcmask 261120
          %400 = vst.msk [vmem:[#allocation2] sm:$0xff] %vm399, %v397
          %401 = vst.msk [vmem:[#allocation2 + $0x8] sm:$0xff] %vm399, %v398
        $region64: #{tpu_custom_call.1} parent=47 // pred_fallthru
          _
        %v402 = vld [vmem:[#allocation2] sm:$0xff]
        %v403 = vld [vmem:[#allocation2 + $0x8] sm:$0xff]
        %v404 = vld [vmem:[#allocation6] sm:$0xff]
        %v405 = vld [vmem:[#allocation6 + $0x8] sm:$0xff]
        %v406 = vld [vmem:[%s326] sm:$0xff]
        %v407 = vld [vmem:[%s326 + $0x8] sm:$0xff]
        %v408 = vlaneseq
        %v409 = vshrl.u32 %v408, 7
        %v410 = vlaneseq
        %v411 = vand.u32 %v410, 127
        %vm412 = vcmp.le.s32.totalorder %v411, %v409
        %v413 = vsel %vm412, 0.0, -1e+30
        %v414 = vld [vmem:[%s376] sm:$0xf]
        %v415 = vld [vmem:[%s376 + $0x4] sm:$0xf]
        %v416 = vld [vmem:[%s376 + $0x8] sm:$0xf]
        %v417 = vld [vmem:[%s376 + $0xc] sm:$0xf]
        %v418 = vpack.c.bf16 %v403, %v402
        %v419 = vlaneseq
        %v420 = vshrl.u32 %v419, 7
        %v421 = vsub.s32 0, %v420
        %v422 = vrot.slane %v406, %v421
        %v427 = vunpack.c.l.b16 %v414
        %v428 = vunpack.c.l.b16 %v415
        %v429 = vunpack.c.l.b16 %v416
        %v430 = vunpack.c.l.b16 %v417
        %v431 = vpack.c.b16 %v428, %v427
        %v432 = vpack.c.b16 %v430, %v429
        %vm435 = vcmask 261120
        %v437 = vsel %vm435, %v418, 0
        %439 = vmatprep.subr.bf16.mxu0 0
        %440 = vmatpush1.bf16.msra.mxu0 %v431
        %441 = vmatprep.subr.bf16.mxu0 0
        %442 = vmatpush1.bf16.msra.mxu0 %v432
        %443 = vmatprep.subr.bf16.mxu0 0
        %444 = vmatpush1.bf16.msra.mxu0 0
        %445 = vmatprep.subr.bf16.mxu0 0
        %446 = vmatpush1.bf16.msra.mxu0 0
        %447 = vmatprep.subr.bf16.mxu0 0
        %448 = vmatpush1.bf16.msra.mxu0 0
        %449 = vmatprep.subr.bf16.mxu0 0
        %450 = vmatpush1.bf16.msra.mxu0 0
        %451 = vmatprep.subr.bf16.mxu0 0
        %452 = vmatpush1.bf16.msra.mxu0 0
        %453 = vmatprep.subr.bf16.mxu0 0
        %454 = vmatpush1.bf16.msra.mxu0 0
        %455 = vmatprep.subr.bf16.mxu0 0
        %456 = vmatpush1.bf16.msra.mxu0 0
        %457 = vmatprep.subr.bf16.mxu0 0
        %458 = vmatpush1.bf16.msra.mxu0 0
        %459 = vmatprep.subr.bf16.mxu0 0
        %460 = vmatpush1.bf16.msra.mxu0 0
        %461 = vmatprep.subr.bf16.mxu0 0
        %462 = vmatpush1.bf16.msra.mxu0 0
        %463 = vmatprep.subr.bf16.mxu0 0
        %464 = vmatpush1.bf16.msra.mxu0 0
        %465 = vmatprep.subr.bf16.mxu0 0
        %466 = vmatpush1.bf16.msra.mxu0 0
        %467 = vmatprep.subr.bf16.mxu0 0
        %468 = vmatpush1.bf16.msra.mxu0 0
        %469 = vmatprep.subr.bf16.mxu0 0
        %470 = vmatpush1.bf16.msra.mxu0 0
        %471 = vmatprep.mubr.bf16.mxu0 0
        %472 = vmatmul.mubr.bf16.gmra.mrb[0].mxu0 %v437
        %v473 = vpop.f32.mrb[0].mxu0
        %v474 = vadd.f32 %v422, %v473
        %v475 = vpop.f32.mrb[0].mxu0
        %v476 = vpop.f32.mrb[0].mxu0
        %v477 = vadd.f32 %v422, %v476
        %v478 = vpop.f32.mrb[0].mxu0
        %479 = vdwg.mxu0
        %480 = vrot.lane.b32.xlu0 %v431, 96
        %v481 = vpop.permute.xlu0 %480
        %482 = vrot.lane.b32.xlu0 %v432, 96
        %v483 = vpop.permute.xlu0 %482
        %486 = vmatprep.subr.bf16.mxu0 0
        %487 = vmatpush1.bf16.msra.mxu0 %v481
        %488 = vmatprep.subr.bf16.mxu0 0
        %489 = vmatpush1.bf16.msra.mxu0 %v483
        %490 = vmatprep.subr.bf16.mxu0 0
        %491 = vmatpush1.bf16.msra.mxu0 0
        %492 = vmatprep.subr.bf16.mxu0 0
        %493 = vmatpush1.bf16.msra.mxu0 0
        %494 = vmatprep.subr.bf16.mxu0 0
        %495 = vmatpush1.bf16.msra.mxu0 0
        %496 = vmatprep.subr.bf16.mxu0 0
        %497 = vmatpush1.bf16.msra.mxu0 0
        %498 = vmatprep.subr.bf16.mxu0 0
        %499 = vmatpush1.bf16.msra.mxu0 0
        %500 = vmatprep.subr.bf16.mxu0 0
        %501 = vmatpush1.bf16.msra.mxu0 0
        %502 = vmatprep.subr.bf16.mxu0 0
        %503 = vmatpush1.bf16.msra.mxu0 0
        %504 = vmatprep.subr.bf16.mxu0 0
        %505 = vmatpush1.bf16.msra.mxu0 0
        %506 = vmatprep.subr.bf16.mxu0 0
        %507 = vmatpush1.bf16.msra.mxu0 0
        %508 = vmatprep.subr.bf16.mxu0 0
        %509 = vmatpush1.bf16.msra.mxu0 0
        %510 = vmatprep.subr.bf16.mxu0 0
        %511 = vmatpush1.bf16.msra.mxu0 0
        %512 = vmatprep.subr.bf16.mxu0 0
        %513 = vmatpush1.bf16.msra.mxu0 0
        %514 = vmatprep.subr.bf16.mxu0 0
        %515 = vmatpush1.bf16.msra.mxu0 0
        %516 = vmatprep.subr.bf16.mxu0 0
        %517 = vmatpush1.bf16.msra.mxu0 0
        %518 = vmatprep.mubr.bf16.mxu0 0
        %519 = vmatmul.mubr.bf16.gmra.mrb[0].mxu0 %v437
        %v520 = vpop.f32.mrb[0].mxu0
        %v521 = vadd.f32 0.0, %v520
        %v522 = vpop.f32.mrb[0].mxu0
        %v523 = vpop.f32.mrb[0].mxu0
        %v524 = vadd.f32 0.0, %v523
        %v525 = vpop.f32.mrb[0].mxu0
        %526 = vdwg.mxu0
        %v527 = vlaneseq
        %v528 = vshrl.u32 %v527, 7
        %v529 = vsub.s32 1, %v528
        %v530 = vrot.slane %v406, %v529
        %v531 = vadd.f32 %v521, %v530
        %v532 = vadd.f32 %v524, %v530
        %v533 = vlaneseq
        %v534 = vshrl.u32 %v533, 7
        %v535 = vsub.s32 2, %v534
        %v536 = vrot.slane %v406, %v535
        %538 = vrot.lane.b32.xlu0 %v536, 32
        %v539 = vpop.permute.xlu0 %538
        %v541 = vadd.f32 %v521, %v539
        %v542 = vadd.f32 %v524, %v539
        %v543 = vpack.c.bf16 %v474, %v474
        %v544 = vpack.c.bf16 %v477, %v477
        %v545 = vpack.c.bf16 %v531, %v531
        %v546 = vpack.c.bf16 %v532, %v532
        %v547 = vpack.c.bf16 %v541, %v541
        %v548 = vpack.c.bf16 %v542, %v542
        %vm549 = vcmask 64512
        %v551 = vsel %vm549, %v543, 0
        %v554 = vsel %vm549, %v545, 0
        %556 = vmatprep.subr.bf16.mxu0 0
        %557 = vmatpush1.bf16.xpose.msra.mxu0 %v554
        %558 = vmatprep.subr.bf16.mxu0 0
        %559 = vmatpush1.bf16.xpose.msra.mxu0 0
        %560 = vmatprep.subr.bf16.mxu0 0
        %561 = vmatpush1.bf16.xpose.msra.mxu0 0
        %562 = vmatprep.subr.bf16.mxu0 0
        %563 = vmatpush1.bf16.xpose.msra.mxu0 0
        %564 = vmatprep.subr.bf16.mxu0 0
        %565 = vmatpush1.bf16.xpose.msra.mxu0 0
        %566 = vmatprep.subr.bf16.mxu0 0
        %567 = vmatpush1.bf16.xpose.msra.mxu0 0
        %568 = vmatprep.subr.bf16.mxu0 0
        %569 = vmatpush1.bf16.xpose.msra.mxu0 0
        %570 = vmatprep.subr.bf16.mxu0 0
        %571 = vmatpush1.bf16.xpose.msra.mxu0 0
        %572 = vmatprep.subr.bf16.mxu0 0
        %573 = vmatpush1.bf16.xpose.msra.mxu0 0
        %574 = vmatprep.subr.bf16.mxu0 0
        %575 = vmatpush1.bf16.xpose.msra.mxu0 0
        %576 = vmatprep.subr.bf16.mxu0 0
        %577 = vmatpush1.bf16.xpose.msra.mxu0 0
        %578 = vmatprep.subr.bf16.mxu0 0
        %579 = vmatpush1.bf16.xpose.msra.mxu0 0
        %580 = vmatprep.subr.bf16.mxu0 0
        %581 = vmatpush1.bf16.xpose.msra.mxu0 0
        %582 = vmatprep.subr.bf16.mxu0 0
        %583 = vmatpush1.bf16.xpose.msra.mxu0 0
        %584 = vmatprep.subr.bf16.mxu0 0
        %585 = vmatpush1.bf16.xpose.msra.mxu0 0
        %586 = vmatprep.subr.bf16.mxu0 0
        %587 = vmatpush1.bf16.xpose.msra.mxu0 0
        %588 = vmatprep.mubr.bf16.mxu0 0
        %589 = vmatmul.mubr.bf16.gmra.mrb[0].mxu0 %v551
        %v590 = vpop.f32.mrb[0].mxu0
        %v591 = vadd.f32 0.0, %v590
        %v592 = vpop.f32.mrb[0].mxu0
        %v593 = vpop.f32.mrb[0].mxu0
        %v594 = vpop.f32.mrb[0].mxu0
        %595 = vdwg.mxu0
        %v597 = vsel %vm549, %v544, 0
        %v600 = vsel %vm549, %v546, 0
        %602 = vmatprep.subr.bf16.mxu0 0
        %603 = vmatpush1.bf16.xpose.msra.mxu0 %v600
        %604 = vmatprep.subr.bf16.mxu0 0
        %605 = vmatpush1.bf16.xpose.msra.mxu0 0
        %606 = vmatprep.subr.bf16.mxu0 0
        %607 = vmatpush1.bf16.xpose.msra.mxu0 0
        %608 = vmatprep.subr.bf16.mxu0 0
        %609 = vmatpush1.bf16.xpose.msra.mxu0 0
        %610 = vmatprep.subr.bf16.mxu0 0
        %611 = vmatpush1.bf16.xpose.msra.mxu0 0
        %612 = vmatprep.subr.bf16.mxu0 0
        %613 = vmatpush1.bf16.xpose.msra.mxu0 0
        %614 = vmatprep.subr.bf16.mxu0 0
        %615 = vmatpush1.bf16.xpose.msra.mxu0 0
        %616 = vmatprep.subr.bf16.mxu0 0
        %617 = vmatpush1.bf16.xpose.msra.mxu0 0
        %618 = vmatprep.subr.bf16.mxu0 0
        %619 = vmatpush1.bf16.xpose.msra.mxu0 0
        %620 = vmatprep.subr.bf16.mxu0 0
        %621 = vmatpush1.bf16.xpose.msra.mxu0 0
        %622 = vmatprep.subr.bf16.mxu0 0
        %623 = vmatpush1.bf16.xpose.msra.mxu0 0
        %624 = vmatprep.subr.bf16.mxu0 0
        %625 = vmatpush1.bf16.xpose.msra.mxu0 0
        %626 = vmatprep.subr.bf16.mxu0 0
        %627 = vmatpush1.bf16.xpose.msra.mxu0 0
        %628 = vmatprep.subr.bf16.mxu0 0
        %629 = vmatpush1.bf16.xpose.msra.mxu0 0
        %630 = vmatprep.subr.bf16.mxu0 0
        %631 = vmatpush1.bf16.xpose.msra.mxu0 0
        %632 = vmatprep.subr.bf16.mxu0 0
        %633 = vmatpush1.bf16.xpose.msra.mxu0 0
        %634 = vmatprep.mubr.bf16.mxu0 0
        %635 = vmatmul.mubr.bf16.gmra.mrb[0].mxu0 %v597
        %v636 = vpop.f32.mrb[0].mxu0
        %v637 = vadd.f32 0.0, %v636
        %v638 = vpop.f32.mrb[0].mxu0
        %v639 = vpop.f32.mrb[0].mxu0
        %v640 = vpop.f32.mrb[0].mxu0
        %641 = vdwg.mxu0
        %v642 = vmul.f32 %v591, 0.35355338
        %v643 = vmul.f32 %v637, 0.35355338
        %v644 = vadd.f32 %v642, %v413
        %v645 = vadd.f32 %v643, %v413
        %v646 = vsel %vm549, %v644, -inf
        %647 = vmax.xlane.f32.xlu0 %v646
        %v648 = vpop.xlane.xlu0 %647
        %v649 = vsel %vm549, %v645, -inf
        %650 = vmax.xlane.f32.xlu0 %v649
        %v651 = vpop.xlane.xlu0 %650
        %v652 = vsub.f32 %v644, %v648
        %v653 = vsub.f32 %v645, %v651
        %v654 = vmul.f32 %v652, 1.442695
        %v655 = vpow.pop %v654
        %v656 = vmul.f32 %v653, 1.442695
        %v657 = vpow.pop %v656
        %v658 = vsel %vm549, %v655, 0.0
        %659 = vadd.xlane.f32.xlu0 %v658
        %v660 = vpop.xlane.xlu0 %659
        %v661 = vsel %vm549, %v657, 0.0
        %662 = vadd.xlane.f32.xlu0 %v661
        %v663 = vpop.xlane.xlu0 %662
        %v664 = vrcp.pop %v660
        %v665 = vrcp.pop %v663
        %v666 = vmul.f32 %v655, %v664
        %v667 = vmul.f32 %v657, %v665
        %v668 = vpack.c.bf16 %v666, %v666
        %v669 = vpack.c.bf16 %v667, %v667
        %671 = vrot.lane.b32.xlu0 %v547, 96
        %v672 = vpop.permute.xlu0 %671
        %v674 = vsel %vm549, %v668, 0
        %vm676 = vcmask 1043456
        %v678 = vsel %vm676, %v672, 0
        %680 = vmatprep.subr.bf16.mxu0 0
        %681 = vmatpush1.bf16.msra.mxu0 %v678
        %682 = vmatprep.subr.bf16.mxu0 0
        %683 = vmatpush1.bf16.msra.mxu0 0
        %684 = vmatprep.subr.bf16.mxu0 0
        %685 = vmatpush1.bf16.msra.mxu0 0
        %686 = vmatprep.subr.bf16.mxu0 0
        %687 = vmatpush1.bf16.msra.mxu0 0
        %688 = vmatprep.subr.bf16.mxu0 0
        %689 = vmatpush1.bf16.msra.mxu0 0
        %690 = vmatprep.subr.bf16.mxu0 0
        %691 = vmatpush1.bf16.msra.mxu0 0
        %692 = vmatprep.subr.bf16.mxu0 0
        %693 = vmatpush1.bf16.msra.mxu0 0
        %694 = vmatprep.subr.bf16.mxu0 0
        %695 = vmatpush1.bf16.msra.mxu0 0
        %696 = vmatprep.subr.bf16.mxu0 0
        %697 = vmatpush1.bf16.msra.mxu0 0
        %698 = vmatprep.subr.bf16.mxu0 0
        %699 = vmatpush1.bf16.msra.mxu0 0
        %700 = vmatprep.subr.bf16.mxu0 0
        %701 = vmatpush1.bf16.msra.mxu0 0
        %702 = vmatprep.subr.bf16.mxu0 0
        %703 = vmatpush1.bf16.msra.mxu0 0
        %704 = vmatprep.subr.bf16.mxu0 0
        %705 = vmatpush1.bf16.msra.mxu0 0
        %706 = vmatprep.subr.bf16.mxu0 0
        %707 = vmatpush1.bf16.msra.mxu0 0
        %708 = vmatprep.subr.bf16.mxu0 0
        %709 = vmatpush1.bf16.msra.mxu0 0
        %710 = vmatprep.subr.bf16.mxu0 0
        %711 = vmatpush1.bf16.msra.mxu0 0
        %712 = vmatprep.mubr.bf16.mxu0 0
        %713 = vmatmul.mubr.bf16.gmra.mrb[0].mxu0 %v674
        %v714 = vpop.f32.mrb[0].mxu0
        %v715 = vadd.f32 0.0, %v714
        %v716 = vpop.f32.mrb[0].mxu0
        %v717 = vpop.f32.mrb[0].mxu0
        %v718 = vpop.f32.mrb[0].mxu0
        %719 = vdwg.mxu0
        %721 = vrot.lane.b32.xlu0 %v548, 96
        %v722 = vpop.permute.xlu0 %721
        %v724 = vsel %vm549, %v669, 0
        %v727 = vsel %vm676, %v722, 0
        %729 = vmatprep.subr.bf16.mxu0 0
        %730 = vmatpush1.bf16.msra.mxu0 %v727
        %731 = vmatprep.subr.bf16.mxu0 0
        %732 = vmatpush1.bf16.msra.mxu0 0
        %733 = vmatprep.subr.bf16.mxu0 0
        %734 = vmatpush1.bf16.msra.mxu0 0
        %735 = vmatprep.subr.bf16.mxu0 0
        %736 = vmatpush1.bf16.msra.mxu0 0
        %737 = vmatprep.subr.bf16.mxu0 0
        %738 = vmatpush1.bf16.msra.mxu0 0
        %739 = vmatprep.subr.bf16.mxu0 0
        %740 = vmatpush1.bf16.msra.mxu0 0
        %741 = vmatprep.subr.bf16.mxu0 0
        %742 = vmatpush1.bf16.msra.mxu0 0
        %743 = vmatprep.subr.bf16.mxu0 0
        %744 = vmatpush1.bf16.msra.mxu0 0
        %745 = vmatprep.subr.bf16.mxu0 0
        %746 = vmatpush1.bf16.msra.mxu0 0
        %747 = vmatprep.subr.bf16.mxu0 0
        %748 = vmatpush1.bf16.msra.mxu0 0
        %749 = vmatprep.subr.bf16.mxu0 0
        %750 = vmatpush1.bf16.msra.mxu0 0
        %751 = vmatprep.subr.bf16.mxu0 0
        %752 = vmatpush1.bf16.msra.mxu0 0
        %753 = vmatprep.subr.bf16.mxu0 0
        %754 = vmatpush1.bf16.msra.mxu0 0
        %755 = vmatprep.subr.bf16.mxu0 0
        %756 = vmatpush1.bf16.msra.mxu0 0
        %757 = vmatprep.subr.bf16.mxu0 0
        %758 = vmatpush1.bf16.msra.mxu0 0
        %759 = vmatprep.subr.bf16.mxu0 0
        %760 = vmatpush1.bf16.msra.mxu0 0
        %761 = vmatprep.mubr.bf16.mxu0 0
        %762 = vmatmul.mubr.bf16.gmra.mrb[0].mxu0 %v724
        %v763 = vpop.f32.mrb[0].mxu0
        %v764 = vadd.f32 0.0, %v763
        %v765 = vpop.f32.mrb[0].mxu0
        %v766 = vpop.f32.mrb[0].mxu0
        %v767 = vpop.f32.mrb[0].mxu0
        %768 = vdwg.mxu0
        %770 = vrot.lane.b32.xlu0 %v543, 120
        %v771 = vpop.permute.xlu0 %770
        %773 = vrot.lane.b32.xlu0 %v545, 120
        %v774 = vpop.permute.xlu0 %773
        %v776 = vsel %vm549, %v771, 0
        %v779 = vsel %vm549, %v774, 0
        %781 = vmatprep.subr.bf16.mxu0 0
        %782 = vmatpush1.bf16.xpose.msra.mxu0 %v779
        %783 = vmatprep.subr.bf16.mxu0 0
        %784 = vmatpush1.bf16.xpose.msra.mxu0 0
        %785 = vmatprep.subr.bf16.mxu0 0
        %786 = vmatpush1.bf16.xpose.msra.mxu0 0
        %787 = vmatprep.subr.bf16.mxu0 0
        %788 = vmatpush1.bf16.xpose.msra.mxu0 0
        %789 = vmatprep.subr.bf16.mxu0 0
        %790 = vmatpush1.bf16.xpose.msra.mxu0 0
        %791 = vmatprep.subr.bf16.mxu0 0
        %792 = vmatpush1.bf16.xpose.msra.mxu0 0
        %793 = vmatprep.subr.bf16.mxu0 0
        %794 = vmatpush1.bf16.xpose.msra.mxu0 0
        %795 = vmatprep.subr.bf16.mxu0 0
        %796 = vmatpush1.bf16.xpose.msra.mxu0 0
        %797 = vmatprep.subr.bf16.mxu0 0
        %798 = vmatpush1.bf16.xpose.msra.mxu0 0
        %799 = vmatprep.subr.bf16.mxu0 0
        %800 = vmatpush1.bf16.xpose.msra.mxu0 0
        %801 = vmatprep.subr.bf16.mxu0 0
        %802 = vmatpush1.bf16.xpose.msra.mxu0 0
        %803 = vmatprep.subr.bf16.mxu0 0
        %804 = vmatpush1.bf16.xpose.msra.mxu0 0
        %805 = vmatprep.subr.bf16.mxu0 0
        %806 = vmatpush1.bf16.xpose.msra.mxu0 0
        %807 = vmatprep.subr.bf16.mxu0 0
        %808 = vmatpush1.bf16.xpose.msra.mxu0 0
        %809 = vmatprep.subr.bf16.mxu0 0
        %810 = vmatpush1.bf16.xpose.msra.mxu0 0
        %811 = vmatprep.subr.bf16.mxu0 0
        %812 = vmatpush1.bf16.xpose.msra.mxu0 0
        %813 = vmatprep.mubr.bf16.mxu0 0
        %814 = vmatmul.mubr.bf16.gmra.mrb[0].mxu0 %v776
        %v815 = vpop.f32.mrb[0].mxu0
        %v816 = vadd.f32 0.0, %v815
        %v817 = vpop.f32.mrb[0].mxu0
        %v818 = vpop.f32.mrb[0].mxu0
        %v819 = vpop.f32.mrb[0].mxu0
        %820 = vdwg.mxu0
        %822 = vrot.lane.b32.xlu0 %v544, 120
        %v823 = vpop.permute.xlu0 %822
        %825 = vrot.lane.b32.xlu0 %v546, 120
        %v826 = vpop.permute.xlu0 %825
        %v828 = vsel %vm549, %v823, 0
        %v831 = vsel %vm549, %v826, 0
        %833 = vmatprep.subr.bf16.mxu0 0
        %834 = vmatpush1.bf16.xpose.msra.mxu0 %v831
        %835 = vmatprep.subr.bf16.mxu0 0
        %836 = vmatpush1.bf16.xpose.msra.mxu0 0
        %837 = vmatprep.subr.bf16.mxu0 0
        %838 = vmatpush1.bf16.xpose.msra.mxu0 0
        %839 = vmatprep.subr.bf16.mxu0 0
        %840 = vmatpush1.bf16.xpose.msra.mxu0 0
        %841 = vmatprep.subr.bf16.mxu0 0
        %842 = vmatpush1.bf16.xpose.msra.mxu0 0
        %843 = vmatprep.subr.bf16.mxu0 0
        %844 = vmatpush1.bf16.xpose.msra.mxu0 0
        %845 = vmatprep.subr.bf16.mxu0 0
        %846 = vmatpush1.bf16.xpose.msra.mxu0 0
        %847 = vmatprep.subr.bf16.mxu0 0
        %848 = vmatpush1.bf16.xpose.msra.mxu0 0
        %849 = vmatprep.subr.bf16.mxu0 0
        %850 = vmatpush1.bf16.xpose.msra.mxu0 0
        %851 = vmatprep.subr.bf16.mxu0 0
        %852 = vmatpush1.bf16.xpose.msra.mxu0 0
        %853 = vmatprep.subr.bf16.mxu0 0
        %854 = vmatpush1.bf16.xpose.msra.mxu0 0
        %855 = vmatprep.subr.bf16.mxu0 0
        %856 = vmatpush1.bf16.xpose.msra.mxu0 0
        %857 = vmatprep.subr.bf16.mxu0 0
        %858 = vmatpush1.bf16.xpose.msra.mxu0 0
        %859 = vmatprep.subr.bf16.mxu0 0
        %860 = vmatpush1.bf16.xpose.msra.mxu0 0
        %861 = vmatprep.subr.bf16.mxu0 0
        %862 = vmatpush1.bf16.xpose.msra.mxu0 0
        %863 = vmatprep.subr.bf16.mxu0 0
        %864 = vmatpush1.bf16.xpose.msra.mxu0 0
        %865 = vmatprep.mubr.bf16.mxu0 0
        %866 = vmatmul.mubr.bf16.gmra.mrb[0].mxu0 %v828
        %v867 = vpop.f32.mrb[0].mxu0
        %v868 = vadd.f32 0.0, %v867
        %v869 = vpop.f32.mrb[0].mxu0
        %v870 = vpop.f32.mrb[0].mxu0
        %v871 = vpop.f32.mrb[0].mxu0
        %872 = vdwg.mxu0
        %v873 = vmul.f32 %v816, 0.35355338
        %v874 = vmul.f32 %v868, 0.35355338
        %v875 = vadd.f32 %v873, %v413
        %v876 = vadd.f32 %v874, %v413
        %v877 = vsel %vm549, %v875, -inf
        %878 = vmax.xlane.f32.xlu0 %v877
        %v879 = vpop.xlane.xlu0 %878
        %v880 = vsel %vm549, %v876, -inf
        %881 = vmax.xlane.f32.xlu0 %v880
        %v882 = vpop.xlane.xlu0 %881
        %v883 = vsub.f32 %v875, %v879
        %v884 = vsub.f32 %v876, %v882
        %v885 = vmul.f32 %v883, 1.442695
        %v886 = vpow.pop %v885
        %v887 = vmul.f32 %v884, 1.442695
        %v888 = vpow.pop %v887
        %v889 = vsel %vm549, %v886, 0.0
        %890 = vadd.xlane.f32.xlu0 %v889
        %v891 = vpop.xlane.xlu0 %890
        %v892 = vsel %vm549, %v888, 0.0
        %893 = vadd.xlane.f32.xlu0 %v892
        %v894 = vpop.xlane.xlu0 %893
        %v895 = vrcp.pop %v891
        %v896 = vrcp.pop %v894
        %v897 = vmul.f32 %v886, %v895
        %v898 = vmul.f32 %v888, %v896
        %v899 = vpack.c.bf16 %v897, %v897
        %v900 = vpack.c.bf16 %v898, %v898
        %901 = vrot.lane.b32.xlu0 %v547, 88
        %v902 = vpop.permute.xlu0 %901
        %v904 = vsel %vm549, %v899, 0
        %v907 = vsel %vm676, %v902, 0
        %909 = vmatprep.subr.bf16.mxu0 0
        %910 = vmatpush1.bf16.msra.mxu0 %v907
        %911 = vmatprep.subr.bf16.mxu0 0
        %912 = vmatpush1.bf16.msra.mxu0 0
        %913 = vmatprep.subr.bf16.mxu0 0
        %914 = vmatpush1.bf16.msra.mxu0 0
        %915 = vmatprep.subr.bf16.mxu0 0
        %916 = vmatpush1.bf16.msra.mxu0 0
        %917 = vmatprep.subr.bf16.mxu0 0
        %918 = vmatpush1.bf16.msra.mxu0 0
        %919 = vmatprep.subr.bf16.mxu0 0
        %920 = vmatpush1.bf16.msra.mxu0 0
        %921 = vmatprep.subr.bf16.mxu0 0
        %922 = vmatpush1.bf16.msra.mxu0 0
        %923 = vmatprep.subr.bf16.mxu0 0
        %924 = vmatpush1.bf16.msra.mxu0 0
        %925 = vmatprep.subr.bf16.mxu0 0
        %926 = vmatpush1.bf16.msra.mxu0 0
        %927 = vmatprep.subr.bf16.mxu0 0
        %928 = vmatpush1.bf16.msra.mxu0 0
        %929 = vmatprep.subr.bf16.mxu0 0
        %930 = vmatpush1.bf16.msra.mxu0 0
        %931 = vmatprep.subr.bf16.mxu0 0
        %932 = vmatpush1.bf16.msra.mxu0 0
        %933 = vmatprep.subr.bf16.mxu0 0
        %934 = vmatpush1.bf16.msra.mxu0 0
        %935 = vmatprep.subr.bf16.mxu0 0
        %936 = vmatpush1.bf16.msra.mxu0 0
        %937 = vmatprep.subr.bf16.mxu0 0
        %938 = vmatpush1.bf16.msra.mxu0 0
        %939 = vmatprep.subr.bf16.mxu0 0
        %940 = vmatpush1.bf16.msra.mxu0 0
        %941 = vmatprep.mubr.bf16.mxu0 0
        %942 = vmatmul.mubr.bf16.gmra.mrb[0].mxu0 %v904
        %v943 = vpop.f32.mrb[0].mxu0
        %v944 = vadd.f32 0.0, %v943
        %v945 = vpop.f32.mrb[0].mxu0
        %v946 = vpop.f32.mrb[0].mxu0
        %v947 = vpop.f32.mrb[0].mxu0
        %948 = vdwg.mxu0
        %949 = vrot.lane.b32.xlu0 %v548, 88
        %v950 = vpop.permute.xlu0 %949
        %v952 = vsel %vm549, %v900, 0
        %v955 = vsel %vm676, %v950, 0
        %957 = vmatprep.subr.bf16.mxu0 0
        %958 = vmatpush1.bf16.msra.mxu0 %v955
        %959 = vmatprep.subr.bf16.mxu0 0
        %960 = vmatpush1.bf16.msra.mxu0 0
        %961 = vmatprep.subr.bf16.mxu0 0
        %962 = vmatpush1.bf16.msra.mxu0 0
        %963 = vmatprep.subr.bf16.mxu0 0
        %964 = vmatpush1.bf16.msra.mxu0 0
        %965 = vmatprep.subr.bf16.mxu0 0
        %966 = vmatpush1.bf16.msra.mxu0 0
        %967 = vmatprep.subr.bf16.mxu0 0
        %968 = vmatpush1.bf16.msra.mxu0 0
        %969 = vmatprep.subr.bf16.mxu0 0
        %970 = vmatpush1.bf16.msra.mxu0 0
        %971 = vmatprep.subr.bf16.mxu0 0
        %972 = vmatpush1.bf16.msra.mxu0 0
        %973 = vmatprep.subr.bf16.mxu0 0
        %974 = vmatpush1.bf16.msra.mxu0 0
        %975 = vmatprep.subr.bf16.mxu0 0
        %976 = vmatpush1.bf16.msra.mxu0 0
        %977 = vmatprep.subr.bf16.mxu0 0
        %978 = vmatpush1.bf16.msra.mxu0 0
        %979 = vmatprep.subr.bf16.mxu0 0
        %980 = vmatpush1.bf16.msra.mxu0 0
        %981 = vmatprep.subr.bf16.mxu0 0
        %982 = vmatpush1.bf16.msra.mxu0 0
        %983 = vmatprep.subr.bf16.mxu0 0
        %984 = vmatpush1.bf16.msra.mxu0 0
        %985 = vmatprep.subr.bf16.mxu0 0
        %986 = vmatpush1.bf16.msra.mxu0 0
        %987 = vmatprep.subr.bf16.mxu0 0
        %988 = vmatpush1.bf16.msra.mxu0 0
        %989 = vmatprep.mubr.bf16.mxu0 0
        %990 = vmatmul.mubr.bf16.gmra.mrb[0].mxu0 %v952
        %v991 = vpop.f32.mrb[0].mxu0
        %v992 = vadd.f32 0.0, %v991
        %v993 = vpop.f32.mrb[0].mxu0
        %v994 = vpop.f32.mrb[0].mxu0
        %v995 = vpop.f32.mrb[0].mxu0
        %996 = vdwg.mxu0
        %997 = vrot.lane.b32.xlu0 %v543, 112
        %v998 = vpop.permute.xlu0 %997
        %999 = vrot.lane.b32.xlu0 %v545, 112
        %v1000 = vpop.permute.xlu0 %999
        %v1002 = vsel %vm549, %v998, 0
        %v1005 = vsel %vm549, %v1000, 0
        %1007 = vmatprep.subr.bf16.mxu0 0
        %1008 = vmatpush1.bf16.xpose.msra.mxu0 %v1005
        %1009 = vmatprep.subr.bf16.mxu0 0
        %1010 = vmatpush1.bf16.xpose.msra.mxu0 0
        %1011 = vmatprep.subr.bf16.mxu0 0
        %1012 = vmatpush1.bf16.xpose.msra.mxu0 0
        %1013 = vmatprep.subr.bf16.mxu0 0
        %1014 = vmatpush1.bf16.xpose.msra.mxu0 0
        %1015 = vmatprep.subr.bf16.mxu0 0
        %1016 = vmatpush1.bf16.xpose.msra.mxu0 0
        %1017 = vmatprep.subr.bf16.mxu0 0
        %1018 = vmatpush1.bf16.xpose.msra.mxu0 0
        %1019 = vmatprep.subr.bf16.mxu0 0
        %1020 = vmatpush1.bf16.xpose.msra.mxu0 0
        %1021 = vmatprep.subr.bf16.mxu0 0
        %1022 = vmatpush1.bf16.xpose.msra.mxu0 0
        %1023 = vmatprep.subr.bf16.mxu0 0
        %1024 = vmatpush1.bf16.xpose.msra.mxu0 0
        %1025 = vmatprep.subr.bf16.mxu0 0
        %1026 = vmatpush1.bf16.xpose.msra.mxu0 0
        %1027 = vmatprep.subr.bf16.mxu0 0
        %1028 = vmatpush1.bf16.xpose.msra.mxu0 0
        %1029 = vmatprep.subr.bf16.mxu0 0
        %1030 = vmatpush1.bf16.xpose.msra.mxu0 0
        %1031 = vmatprep.subr.bf16.mxu0 0
        %1032 = vmatpush1.bf16.xpose.msra.mxu0 0
        %1033 = vmatprep.subr.bf16.mxu0 0
        %1034 = vmatpush1.bf16.xpose.msra.mxu0 0
        %1035 = vmatprep.subr.bf16.mxu0 0
        %1036 = vmatpush1.bf16.xpose.msra.mxu0 0
        %1037 = vmatprep.subr.bf16.mxu0 0
        %1038 = vmatpush1.bf16.xpose.msra.mxu0 0
        %1039 = vmatprep.mubr.bf16.mxu0 0
        %1040 = vmatmul.mubr.bf16.gmra.mrb[0].mxu0 %v1002
        %v1041 = vpop.f32.mrb[0].mxu0
        %v1042 = vadd.f32 0.0, %v1041
        %v1043 = vpop.f32.mrb[0].mxu0
        %v1044 = vpop.f32.mrb[0].mxu0
        %v1045 = vpop.f32.mrb[0].mxu0
        %1046 = vdwg.mxu0
        %1047 = vrot.lane.b32.xlu0 %v544, 112
        %v1048 = vpop.permute.xlu0 %1047
        %1049 = vrot.lane.b32.xlu0 %v546, 112
        %v1050 = vpop.permute.xlu0 %1049
        %v1052 = vsel %vm549, %v1048, 0
        %v1055 = vsel %vm549, %v1050, 0
        %1057 = vmatprep.subr.bf16.mxu0 0
        %1058 = vmatpush1.bf16.xpose.msra.mxu0 %v1055
        %1059 = vmatprep.subr.bf16.mxu0 0
        %1060 = vmatpush1.bf16.xpose.msra.mxu0 0
        %1061 = vmatprep.subr.bf16.mxu0 0
        %1062 = vmatpush1.bf16.xpose.msra.mxu0 0
        %1063 = vmatprep.subr.bf16.mxu0 0
        %1064 = vmatpush1.bf16.xpose.msra.mxu0 0
        %1065 = vmatprep.subr.bf16.mxu0 0
        %1066 = vmatpush1.bf16.xpose.msra.mxu0 0
        %1067 = vmatprep.subr.bf16.mxu0 0
        %1068 = vmatpush1.bf16.xpose.msra.mxu0 0
        %1069 = vmatprep.subr.bf16.mxu0 0
        %1070 = vmatpush1.bf16.xpose.msra.mxu0 0
        %1071 = vmatprep.subr.bf16.mxu0 0
        %1072 = vmatpush1.bf16.xpose.msra.mxu0 0
        %1073 = vmatprep.subr.bf16.mxu0 0
        %1074 = vmatpush1.bf16.xpose.msra.mxu0 0
        %1075 = vmatprep.subr.bf16.mxu0 0
        %1076 = vmatpush1.bf16.xpose.msra.mxu0 0
        %1077 = vmatprep.subr.bf16.mxu0 0
        %1078 = vmatpush1.bf16.xpose.msra.mxu0 0
        %1079 = vmatprep.subr.bf16.mxu0 0
        %1080 = vmatpush1.bf16.xpose.msra.mxu0 0
        %1081 = vmatprep.subr.bf16.mxu0 0
        %1082 = vmatpush1.bf16.xpose.msra.mxu0 0
        %1083 = vmatprep.subr.bf16.mxu0 0
        %1084 = vmatpush1.bf16.xpose.msra.mxu0 0
        %1085 = vmatprep.subr.bf16.mxu0 0
        %1086 = vmatpush1.bf16.xpose.msra.mxu0 0
        %1087 = vmatprep.subr.bf16.mxu0 0
        %1088 = vmatpush1.bf16.xpose.msra.mxu0 0
        %1089 = vmatprep.mubr.bf16.mxu0 0
        %1090 = vmatmul.mubr.bf16.gmra.mrb[0].mxu0 %v1052
        %v1091 = vpop.f32.mrb[0].mxu0
        %v1092 = vadd.f32 0.0, %v1091
        %v1093 = vpop.f32.mrb[0].mxu0
        %v1094 = vpop.f32.mrb[0].mxu0
        %v1095 = vpop.f32.mrb[0].mxu0
        %1096 = vdwg.mxu0
        %v1097 = vmul.f32 %v1042, 0.35355338
        %v1098 = vmul.f32 %v1092, 0.35355338
        %v1099 = vadd.f32 %v1097, %v413
        %v1100 = vadd.f32 %v1098, %v413
        %v1101 = vsel %vm549, %v1099, -inf
        %1102 = vmax.xlane.f32.xlu0 %v1101
        %v1103 = vpop.xlane.xlu0 %1102
        %v1104 = vsel %vm549, %v1100, -inf
        %1105 = vmax.xlane.f32.xlu0 %v1104
        %v1106 = vpop.xlane.xlu0 %1105
        %v1107 = vsub.f32 %v1099, %v1103
        %v1108 = vsub.f32 %v1100, %v1106
        %v1109 = vmul.f32 %v1107, 1.442695
        %v1110 = vpow.pop %v1109
        %v1111 = vmul.f32 %v1108, 1.442695
        %v1112 = vpow.pop %v1111
        %v1113 = vsel %vm549, %v1110, 0.0
        %1114 = vadd.xlane.f32.xlu0 %v1113
        %v1115 = vpop.xlane.xlu0 %1114
        %v1116 = vsel %vm549, %v1112, 0.0
        %1117 = vadd.xlane.f32.xlu0 %v1116
        %v1118 = vpop.xlane.xlu0 %1117
        %v1119 = vrcp.pop %v1115
        %v1120 = vrcp.pop %v1118
        %v1121 = vmul.f32 %v1110, %v1119
        %v1122 = vmul.f32 %v1112, %v1120
        %v1123 = vpack.c.bf16 %v1121, %v1121
        %v1124 = vpack.c.bf16 %v1122, %v1122
        %1125 = vrot.lane.b32.xlu0 %v547, 80
        %v1126 = vpop.permute.xlu0 %1125
        %v1128 = vsel %vm549, %v1123, 0
        %v1131 = vsel %vm676, %v1126, 0
        %1133 = vmatprep.subr.bf16.mxu0 0
        %1134 = vmatpush1.bf16.msra.mxu0 %v1131
        %1135 = vmatprep.subr.bf16.mxu0 0
        %1136 = vmatpush1.bf16.msra.mxu0 0
        %1137 = vmatprep.subr.bf16.mxu0 0
        %1138 = vmatpush1.bf16.msra.mxu0 0
        %1139 = vmatprep.subr.bf16.mxu0 0
        %1140 = vmatpush1.bf16.msra.mxu0 0
        %1141 = vmatprep.subr.bf16.mxu0 0
        %1142 = vmatpush1.bf16.msra.mxu0 0
        %1143 = vmatprep.subr.bf16.mxu0 0
        %1144 = vmatpush1.bf16.msra.mxu0 0
        %1145 = vmatprep.subr.bf16.mxu0 0
        %1146 = vmatpush1.bf16.msra.mxu0 0
        %1147 = vmatprep.subr.bf16.mxu0 0
        %1148 = vmatpush1.bf16.msra.mxu0 0
        %1149 = vmatprep.subr.bf16.mxu0 0
        %1150 = vmatpush1.bf16.msra.mxu0 0
        %1151 = vmatprep.subr.bf16.mxu0 0
        %1152 = vmatpush1.bf16.msra.mxu0 0
        %1153 = vmatprep.subr.bf16.mxu0 0
        %1154 = vmatpush1.bf16.msra.mxu0 0
        %1155 = vmatprep.subr.bf16.mxu0 0
        %1156 = vmatpush1.bf16.msra.mxu0 0
        %1157 = vmatprep.subr.bf16.mxu0 0
        %1158 = vmatpush1.bf16.msra.mxu0 0
        %1159 = vmatprep.subr.bf16.mxu0 0
        %1160 = vmatpush1.bf16.msra.mxu0 0
        %1161 = vmatprep.subr.bf16.mxu0 0
        %1162 = vmatpush1.bf16.msra.mxu0 0
        %1163 = vmatprep.subr.bf16.mxu0 0
        %1164 = vmatpush1.bf16.msra.mxu0 0
        %1165 = vmatprep.mubr.bf16.mxu0 0
        %1166 = vmatmul.mubr.bf16.gmra.mrb[0].mxu0 %v1128
        %v1167 = vpop.f32.mrb[0].mxu0
        %v1168 = vadd.f32 0.0, %v1167
        %v1169 = vpop.f32.mrb[0].mxu0
        %v1170 = vpop.f32.mrb[0].mxu0
        %v1171 = vpop.f32.mrb[0].mxu0
        %1172 = vdwg.mxu0
        %1173 = vrot.lane.b32.xlu0 %v548, 80
        %v1174 = vpop.permute.xlu0 %1173
        %v1176 = vsel %vm549, %v1124, 0
        %v1179 = vsel %vm676, %v1174, 0
        %1181 = vmatprep.subr.bf16.mxu0 0
        %1182 = vmatpush1.bf16.msra.mxu0 %v1179
        %1183 = vmatprep.subr.bf16.mxu0 0
        %1184 = vmatpush1.bf16.msra.mxu0 0
        %1185 = vmatprep.subr.bf16.mxu0 0
        %1186 = vmatpush1.bf16.msra.mxu0 0
        %1187 = vmatprep.subr.bf16.mxu0 0
        %1188 = vmatpush1.bf16.msra.mxu0 0
        %1189 = vmatprep.subr.bf16.mxu0 0
        %1190 = vmatpush1.bf16.msra.mxu0 0
        %1191 = vmatprep.subr.bf16.mxu0 0
        %1192 = vmatpush1.bf16.msra.mxu0 0
        %1193 = vmatprep.subr.bf16.mxu0 0
        %1194 = vmatpush1.bf16.msra.mxu0 0
        %1195 = vmatprep.subr.bf16.mxu0 0
        %1196 = vmatpush1.bf16.msra.mxu0 0
        %1197 = vmatprep.subr.bf16.mxu0 0
        %1198 = vmatpush1.bf16.msra.mxu0 0
        %1199 = vmatprep.subr.bf16.mxu0 0
        %1200 = vmatpush1.bf16.msra.mxu0 0
        %1201 = vmatprep.subr.bf16.mxu0 0
        %1202 = vmatpush1.bf16.msra.mxu0 0
        %1203 = vmatprep.subr.bf16.mxu0 0
        %1204 = vmatpush1.bf16.msra.mxu0 0
        %1205 = vmatprep.subr.bf16.mxu0 0
        %1206 = vmatpush1.bf16.msra.mxu0 0
        %1207 = vmatprep.subr.bf16.mxu0 0
        %1208 = vmatpush1.bf16.msra.mxu0 0
        %1209 = vmatprep.subr.bf16.mxu0 0
        %1210 = vmatpush1.bf16.msra.mxu0 0
        %1211 = vmatprep.subr.bf16.mxu0 0
        %1212 = vmatpush1.bf16.msra.mxu0 0
        %1213 = vmatprep.mubr.bf16.mxu0 0
        %1214 = vmatmul.mubr.bf16.gmra.mrb[0].mxu0 %v1176
        %v1215 = vpop.f32.mrb[0].mxu0
        %v1216 = vadd.f32 0.0, %v1215
        %v1217 = vpop.f32.mrb[0].mxu0
        %v1218 = vpop.f32.mrb[0].mxu0
        %v1219 = vpop.f32.mrb[0].mxu0
        %1220 = vdwg.mxu0
        %1221 = vrot.lane.b32.xlu0 %v543, 104
        %v1222 = vpop.permute.xlu0 %1221
        %1223 = vrot.lane.b32.xlu0 %v545, 104
        %v1224 = vpop.permute.xlu0 %1223
        %v1226 = vsel %vm549, %v1222, 0
        %v1229 = vsel %vm549, %v1224, 0
        %1231 = vmatprep.subr.bf16.mxu0 0
        %1232 = vmatpush1.bf16.xpose.msra.mxu0 %v1229
        %1233 = vmatprep.subr.bf16.mxu0 0
        %1234 = vmatpush1.bf16.xpose.msra.mxu0 0
        %1235 = vmatprep.subr.bf16.mxu0 0
        %1236 = vmatpush1.bf16.xpose.msra.mxu0 0
        %1237 = vmatprep.subr.bf16.mxu0 0
        %1238 = vmatpush1.bf16.xpose.msra.mxu0 0
        %1239 = vmatprep.subr.bf16.mxu0 0
        %1240 = vmatpush1.bf16.xpose.msra.mxu0 0
        %1241 = vmatprep.subr.bf16.mxu0 0
        %1242 = vmatpush1.bf16.xpose.msra.mxu0 0
        %1243 = vmatprep.subr.bf16.mxu0 0
        %1244 = vmatpush1.bf16.xpose.msra.mxu0 0
        %1245 = vmatprep.subr.bf16.mxu0 0
        %1246 = vmatpush1.bf16.xpose.msra.mxu0 0
        %1247 = vmatprep.subr.bf16.mxu0 0
        %1248 = vmatpush1.bf16.xpose.msra.mxu0 0
        %1249 = vmatprep.subr.bf16.mxu0 0
        %1250 = vmatpush1.bf16.xpose.msra.mxu0 0
        %1251 = vmatprep.subr.bf16.mxu0 0
        %1252 = vmatpush1.bf16.xpose.msra.mxu0 0
        %1253 = vmatprep.subr.bf16.mxu0 0
        %1254 = vmatpush1.bf16.xpose.msra.mxu0 0
        %1255 = vmatprep.subr.bf16.mxu0 0
        %1256 = vmatpush1.bf16.xpose.msra.mxu0 0
        %1257 = vmatprep.subr.bf16.mxu0 0
        %1258 = vmatpush1.bf16.xpose.msra.mxu0 0
        %1259 = vmatprep.subr.bf16.mxu0 0
        %1260 = vmatpush1.bf16.xpose.msra.mxu0 0
        %1261 = vmatprep.subr.bf16.mxu0 0
        %1262 = vmatpush1.bf16.xpose.msra.mxu0 0
        %1263 = vmatprep.mubr.bf16.mxu0 0
        %1264 = vmatmul.mubr.bf16.gmra.mrb[0].mxu0 %v1226
        %v1265 = vpop.f32.mrb[0].mxu0
        %v1266 = vadd.f32 0.0, %v1265
        %v1267 = vpop.f32.mrb[0].mxu0
        %v1268 = vpop.f32.mrb[0].mxu0
        %v1269 = vpop.f32.mrb[0].mxu0
        %1270 = vdwg.mxu0
        %1271 = vrot.lane.b32.xlu0 %v544, 104
        %v1272 = vpop.permute.xlu0 %1271
        %1273 = vrot.lane.b32.xlu0 %v546, 104
        %v1274 = vpop.permute.xlu0 %1273
        %v1276 = vsel %vm549, %v1272, 0
        %v1279 = vsel %vm549, %v1274, 0
        %1281 = vmatprep.subr.bf16.mxu0 0
        %1282 = vmatpush1.bf16.xpose.msra.mxu0 %v1279
        %1283 = vmatprep.subr.bf16.mxu0 0
        %1284 = vmatpush1.bf16.xpose.msra.mxu0 0
        %1285 = vmatprep.subr.bf16.mxu0 0
        %1286 = vmatpush1.bf16.xpose.msra.mxu0 0
        %1287 = vmatprep.subr.bf16.mxu0 0
        %1288 = vmatpush1.bf16.xpose.msra.mxu0 0
        %1289 = vmatprep.subr.bf16.mxu0 0
        %1290 = vmatpush1.bf16.xpose.msra.mxu0 0
        %1291 = vmatprep.subr.bf16.mxu0 0
        %1292 = vmatpush1.bf16.xpose.msra.mxu0 0
        %1293 = vmatprep.subr.bf16.mxu0 0
        %1294 = vmatpush1.bf16.xpose.msra.mxu0 0
        %1295 = vmatprep.subr.bf16.mxu0 0
        %1296 = vmatpush1.bf16.xpose.msra.mxu0 0
        %1297 = vmatprep.subr.bf16.mxu0 0
        %1298 = vmatpush1.bf16.xpose.msra.mxu0 0
        %1299 = vmatprep.subr.bf16.mxu0 0
        %1300 = vmatpush1.bf16.xpose.msra.mxu0 0
        %1301 = vmatprep.subr.bf16.mxu0 0
        %1302 = vmatpush1.bf16.xpose.msra.mxu0 0
        %1303 = vmatprep.subr.bf16.mxu0 0
        %1304 = vmatpush1.bf16.xpose.msra.mxu0 0
        %1305 = vmatprep.subr.bf16.mxu0 0
        %1306 = vmatpush1.bf16.xpose.msra.mxu0 0
        %1307 = vmatprep.subr.bf16.mxu0 0
        %1308 = vmatpush1.bf16.xpose.msra.mxu0 0
        %1309 = vmatprep.subr.bf16.mxu0 0
        %1310 = vmatpush1.bf16.xpose.msra.mxu0 0
        %1311 = vmatprep.subr.bf16.mxu0 0
        %1312 = vmatpush1.bf16.xpose.msra.mxu0 0
        %1313 = vmatprep.mubr.bf16.mxu0 0
        %1314 = vmatmul.mubr.bf16.gmra.mrb[0].mxu0 %v1276
        %v1315 = vpop.f32.mrb[0].mxu0
        %v1316 = vadd.f32 0.0, %v1315
        %v1317 = vpop.f32.mrb[0].mxu0
        %v1318 = vpop.f32.mrb[0].mxu0
        %v1319 = vpop.f32.mrb[0].mxu0
        %1320 = vdwg.mxu0
        %v1321 = vmul.f32 %v1266, 0.35355338
        %v1322 = vmul.f32 %v1316, 0.35355338
        %v1323 = vadd.f32 %v1321, %v413
        %v1324 = vadd.f32 %v1322, %v413
        %v1325 = vsel %vm549, %v1323, -inf
        %1326 = vmax.xlane.f32.xlu0 %v1325
        %v1327 = vpop.xlane.xlu0 %1326
        %v1328 = vsel %vm549, %v1324, -inf
        %1329 = vmax.xlane.f32.xlu0 %v1328
        %v1330 = vpop.xlane.xlu0 %1329
        %v1331 = vsub.f32 %v1323, %v1327
        %v1332 = vsub.f32 %v1324, %v1330
        %v1333 = vmul.f32 %v1331, 1.442695
        %v1334 = vpow.pop %v1333
        %v1335 = vmul.f32 %v1332, 1.442695
        %v1336 = vpow.pop %v1335
        %v1337 = vsel %vm549, %v1334, 0.0
        %1338 = vadd.xlane.f32.xlu0 %v1337
        %v1339 = vpop.xlane.xlu0 %1338
        %v1340 = vsel %vm549, %v1336, 0.0
        %1341 = vadd.xlane.f32.xlu0 %v1340
        %v1342 = vpop.xlane.xlu0 %1341
        %v1343 = vrcp.pop %v1339
        %v1344 = vrcp.pop %v1342
        %v1345 = vmul.f32 %v1334, %v1343
        %v1346 = vmul.f32 %v1336, %v1344
        %v1347 = vpack.c.bf16 %v1345, %v1345
        %v1348 = vpack.c.bf16 %v1346, %v1346
        %1349 = vrot.lane.b32.xlu0 %v547, 72
        %v1350 = vpop.permute.xlu0 %1349
        %v1352 = vsel %vm549, %v1347, 0
        %v1355 = vsel %vm676, %v1350, 0
        %1357 = vmatprep.subr.bf16.mxu0 0
        %1358 = vmatpush1.bf16.msra.mxu0 %v1355
        %1359 = vmatprep.subr.bf16.mxu0 0
        %1360 = vmatpush1.bf16.msra.mxu0 0
        %1361 = vmatprep.subr.bf16.mxu0 0
        %1362 = vmatpush1.bf16.msra.mxu0 0
        %1363 = vmatprep.subr.bf16.mxu0 0
        %1364 = vmatpush1.bf16.msra.mxu0 0
        %1365 = vmatprep.subr.bf16.mxu0 0
        %1366 = vmatpush1.bf16.msra.mxu0 0
        %1367 = vmatprep.subr.bf16.mxu0 0
        %1368 = vmatpush1.bf16.msra.mxu0 0
        %1369 = vmatprep.subr.bf16.mxu0 0
        %1370 = vmatpush1.bf16.msra.mxu0 0
        %1371 = vmatprep.subr.bf16.mxu0 0
        %1372 = vmatpush1.bf16.msra.mxu0 0
        %1373 = vmatprep.subr.bf16.mxu0 0
        %1374 = vmatpush1.bf16.msra.mxu0 0
        %1375 = vmatprep.subr.bf16.mxu0 0
        %1376 = vmatpush1.bf16.msra.mxu0 0
        %1377 = vmatprep.subr.bf16.mxu0 0
        %1378 = vmatpush1.bf16.msra.mxu0 0
        %1379 = vmatprep.subr.bf16.mxu0 0
        %1380 = vmatpush1.bf16.msra.mxu0 0
        %1381 = vmatprep.subr.bf16.mxu0 0
        %1382 = vmatpush1.bf16.msra.mxu0 0
        %1383 = vmatprep.subr.bf16.mxu0 0
        %1384 = vmatpush1.bf16.msra.mxu0 0
        %1385 = vmatprep.subr.bf16.mxu0 0
        %1386 = vmatpush1.bf16.msra.mxu0 0
        %1387 = vmatprep.subr.bf16.mxu0 0
        %1388 = vmatpush1.bf16.msra.mxu0 0
        %1389 = vmatprep.mubr.bf16.mxu0 0
        %1390 = vmatmul.mubr.bf16.gmra.mrb[0].mxu0 %v1352
        %v1391 = vpop.f32.mrb[0].mxu0
        %v1392 = vadd.f32 0.0, %v1391
        %v1393 = vpop.f32.mrb[0].mxu0
        %v1394 = vpop.f32.mrb[0].mxu0
        %v1395 = vpop.f32.mrb[0].mxu0
        %1396 = vdwg.mxu0
        %1397 = vrot.lane.b32.xlu0 %v548, 72
        %v1398 = vpop.permute.xlu0 %1397
        %v1400 = vsel %vm549, %v1348, 0
        %v1403 = vsel %vm676, %v1398, 0
        %1405 = vmatprep.subr.bf16.mxu0 0
        %1406 = vmatpush1.bf16.msra.mxu0 %v1403
        %1407 = vmatprep.subr.bf16.mxu0 0
        %1408 = vmatpush1.bf16.msra.mxu0 0
        %1409 = vmatprep.subr.bf16.mxu0 0
        %1410 = vmatpush1.bf16.msra.mxu0 0
        %1411 = vmatprep.subr.bf16.mxu0 0
        %1412 = vmatpush1.bf16.msra.mxu0 0
        %1413 = vmatprep.subr.bf16.mxu0 0
        %1414 = vmatpush1.bf16.msra.mxu0 0
        %1415 = vmatprep.subr.bf16.mxu0 0
        %1416 = vmatpush1.bf16.msra.mxu0 0
        %1417 = vmatprep.subr.bf16.mxu0 0
        %1418 = vmatpush1.bf16.msra.mxu0 0
        %1419 = vmatprep.subr.bf16.mxu0 0
        %1420 = vmatpush1.bf16.msra.mxu0 0
        %1421 = vmatprep.subr.bf16.mxu0 0
        %1422 = vmatpush1.bf16.msra.mxu0 0
        %1423 = vmatprep.subr.bf16.mxu0 0
        %1424 = vmatpush1.bf16.msra.mxu0 0
        %1425 = vmatprep.subr.bf16.mxu0 0
        %1426 = vmatpush1.bf16.msra.mxu0 0
        %1427 = vmatprep.subr.bf16.mxu0 0
        %1428 = vmatpush1.bf16.msra.mxu0 0
        %1429 = vmatprep.subr.bf16.mxu0 0
        %1430 = vmatpush1.bf16.msra.mxu0 0
        %1431 = vmatprep.subr.bf16.mxu0 0
        %1432 = vmatpush1.bf16.msra.mxu0 0
        %1433 = vmatprep.subr.bf16.mxu0 0
        %1434 = vmatpush1.bf16.msra.mxu0 0
        %1435 = vmatprep.subr.bf16.mxu0 0
        %1436 = vmatpush1.bf16.msra.mxu0 0
        %1437 = vmatprep.mubr.bf16.mxu0 0
        %1438 = vmatmul.mubr.bf16.gmra.mrb[0].mxu0 %v1400
        %v1439 = vpop.f32.mrb[0].mxu0
        %v1440 = vadd.f32 0.0, %v1439
        %v1441 = vpop.f32.mrb[0].mxu0
        %v1442 = vpop.f32.mrb[0].mxu0
        %v1443 = vpop.f32.mrb[0].mxu0
        %1444 = vdwg.mxu0
        %1447 = vrot.lane.b32.xlu0 %v944, 8
        %v1448 = vpop.permute.xlu0 %1447
        %1449 = vrot.lane.b32.xlu0 %v992, 8
        %v1450 = vpop.permute.xlu0 %1449
        %1455 = vrot.lane.b32.xlu0 %v1168, 16
        %v1456 = vpop.permute.xlu0 %1455
        %1457 = vrot.lane.b32.xlu0 %v1216, 16
        %v1458 = vpop.permute.xlu0 %1457
        %1463 = vrot.lane.b32.xlu0 %v1392, 24
        %v1464 = vpop.permute.xlu0 %1463
        %1465 = vrot.lane.b32.xlu0 %v1440, 24
        %v1466 = vpop.permute.xlu0 %1465
        %v1469 = vsel %vm549, %v715, %v1448
        %v1470 = vsel %vm549, %v764, %v1450
        %vm1471 = vcmask 130048
        %v1472 = vsel %vm1471, %v1469, %v1456
        %v1473 = vsel %vm1471, %v1470, %v1458
        %vm1474 = vcmask 195584
        %v1475 = vsel %vm1474, %v1472, %v1464
        %v1476 = vsel %vm1474, %v1473, %v1466
        %v1477 = vpack.c.bf16 %v1476, %v1475
        %v1478 = vlaneseq
        %v1479 = vshrl.u32 %v1478, 7
        %v1480 = vsub.s32 3, %v1479
        %v1481 = vrot.slane %v406, %v1480
        %1482 = vrot.lane.b32.xlu0 %v431, 32
        %v1483 = vpop.permute.xlu0 %1482
        %1484 = vrot.lane.b32.xlu0 %v432, 32
        %v1485 = vpop.permute.xlu0 %1484
        %v1489 = vsel %vm435, %v1477, 0
        %1491 = vmatprep.subr.bf16.mxu0 0
        %1492 = vmatpush1.bf16.msra.mxu0 %v1483
        %1493 = vmatprep.subr.bf16.mxu0 0
        %1494 = vmatpush1.bf16.msra.mxu0 %v1485
        %1495 = vmatprep.subr.bf16.mxu0 0
        %1496 = vmatpush1.bf16.msra.mxu0 0
        %1497 = vmatprep.subr.bf16.mxu0 0
        %1498 = vmatpush1.bf16.msra.mxu0 0
        %1499 = vmatprep.subr.bf16.mxu0 0
        %1500 = vmatpush1.bf16.msra.mxu0 0
        %1501 = vmatprep.subr.bf16.mxu0 0
        %1502 = vmatpush1.bf16.msra.mxu0 0
        %1503 = vmatprep.subr.bf16.mxu0 0
        %1504 = vmatpush1.bf16.msra.mxu0 0
        %1505 = vmatprep.subr.bf16.mxu0 0
        %1506 = vmatpush1.bf16.msra.mxu0 0
        %1507 = vmatprep.subr.bf16.mxu0 0
        %1508 = vmatpush1.bf16.msra.mxu0 0
        %1509 = vmatprep.subr.bf16.mxu0 0
        %1510 = vmatpush1.bf16.msra.mxu0 0
        %1511 = vmatprep.subr.bf16.mxu0 0
        %1512 = vmatpush1.bf16.msra.mxu0 0
        %1513 = vmatprep.subr.bf16.mxu0 0
        %1514 = vmatpush1.bf16.msra.mxu0 0
        %1515 = vmatprep.subr.bf16.mxu0 0
        %1516 = vmatpush1.bf16.msra.mxu0 0
        %1517 = vmatprep.subr.bf16.mxu0 0
        %1518 = vmatpush1.bf16.msra.mxu0 0
        %1519 = vmatprep.subr.bf16.mxu0 0
        %1520 = vmatpush1.bf16.msra.mxu0 0
        %1521 = vmatprep.subr.bf16.mxu0 0
        %1522 = vmatpush1.bf16.msra.mxu0 0
        %1523 = vmatprep.mubr.bf16.mxu0 0
        %1524 = vmatmul.mubr.bf16.gmra.mrb[0].mxu0 %v1489
        %v1525 = vpop.f32.mrb[0].mxu0
        %v1526 = vadd.f32 %v1481, %v1525
        %v1527 = vpop.f32.mrb[0].mxu0
        %v1528 = vpop.f32.mrb[0].mxu0
        %v1529 = vadd.f32 %v1481, %v1528
        %v1530 = vpop.f32.mrb[0].mxu0
        %1531 = vdwg.mxu0
        %v1532 = vadd.f32 %v402, %v1526
        %v1533 = vadd.f32 %v403, %v1529
        %v1534 = vsel %vm435, %v1532, 0.0
        %1535 = vadd.xlane.f32.xlu0 %v1534
        %v1536 = vpop.xlane.xlu0 %1535
        %v1537 = vsel %vm435, %v1533, 0.0
        %1538 = vadd.xlane.f32.xlu0 %v1537
        %v1539 = vpop.xlane.xlu0 %1538
        %v1540 = vrcp.pop 32.0
        %v1541 = vmul.f32 %v1536, %v1540
        %v1542 = vmul.f32 %v1539, %v1540
        %v1543 = vsub.f32 %v1532, %v1541
        %v1544 = vsub.f32 %v1533, %v1542
        %v1545 = vmul.f32 %v1543, %v1543
        %v1546 = vmul.f32 %v1544, %v1544
        %v1547 = vsel %vm435, %v1545, 0.0
        %1548 = vadd.xlane.f32.xlu0 %v1547
        %v1549 = vpop.xlane.xlu0 %1548
        %v1550 = vsel %vm435, %v1546, 0.0
        %1551 = vadd.xlane.f32.xlu0 %v1550
        %v1552 = vpop.xlane.xlu0 %1551
        %v1553 = vmul.f32 %v1549, %v1540
        %v1554 = vmul.f32 %v1552, %v1540
        %v1555 = vadd.f32 %v1553, 1e-05
        %v1556 = vadd.f32 %v1554, 1e-05
        %v1557 = vrsqrt.pop %v1555
        %v1558 = vrsqrt.pop %v1556
        %v1559 = vmul.f32 %v1543, %v1557
        %v1560 = vmul.f32 %v1544, %v1558
        %v1561 = vlaneseq
        %v1562 = vshrl.u32 %v1561, 7
        %v1563 = vsub.s32 2, %v1562
        %v1564 = vrot.slane %v407, %v1563
        %v1565 = vmul.f32 %v1559, %v1564
        %v1566 = vmul.f32 %v1560, %v1564
        %v1567 = vlaneseq
        %v1568 = vshrl.u32 %v1567, 7
        %v1569 = vsub.s32 3, %v1568
        %v1570 = vrot.slane %v407, %v1569
        %v1571 = vadd.f32 %v1565, %v1570
        %v1572 = vadd.f32 %v1566, %v1570
        %v1573 = vld [vmem:[%s381] sm:$0xf]
        %v1574 = vld [vmem:[%s381 + $0x4] sm:$0xf]
        %v1575 = vld [vmem:[%s381 + $0x8] sm:$0xf]
        %v1576 = vld [vmem:[%s381 + $0xc] sm:$0xf]
        %v1577 = vpack.c.bf16 %v1572, %v1571
        %v1578 = vpack.c.bf16 %v405, %v404
        %v1579 = vlaneseq
        %v1580 = vshrl.u32 %v1579, 7
        %v1581 = vsub.s32 4, %v1580
        %v1582 = vrot.slane %v406, %v1581
        %v1587 = vunpack.c.l.b16 %v1573
        %v1588 = vunpack.c.l.b16 %v1574
        %v1589 = vunpack.c.l.b16 %v1575
        %v1590 = vunpack.c.l.b16 %v1576
        %v1591 = vpack.c.b16 %v1588, %v1587
        %v1592 = vpack.c.b16 %v1590, %v1589
        %v1596 = vsel %vm435, %v1577, 0
        %1598 = vmatprep.subr.bf16.mxu0 0
        %1599 = vmatpush1.bf16.msra.mxu0 %v1591
        %1600 = vmatprep.subr.bf16.mxu0 0
        %1601 = vmatpush1.bf16.msra.mxu0 %v1592
        %1602 = vmatprep.subr.bf16.mxu0 0
        %1603 = vmatpush1.bf16.msra.mxu0 0
        %1604 = vmatprep.subr.bf16.mxu0 0
        %1605 = vmatpush1.bf16.msra.mxu0 0
        %1606 = vmatprep.subr.bf16.mxu0 0
        %1607 = vmatpush1.bf16.msra.mxu0 0
        %1608 = vmatprep.subr.bf16.mxu0 0
        %1609 = vmatpush1.bf16.msra.mxu0 0
        %1610 = vmatprep.subr.bf16.mxu0 0
        %1611 = vmatpush1.bf16.msra.mxu0 0
        %1612 = vmatprep.subr.bf16.mxu0 0
        %1613 = vmatpush1.bf16.msra.mxu0 0
        %1614 = vmatprep.subr.bf16.mxu0 0
        %1615 = vmatpush1.bf16.msra.mxu0 0
        %1616 = vmatprep.subr.bf16.mxu0 0
        %1617 = vmatpush1.bf16.msra.mxu0 0
        %1618 = vmatprep.subr.bf16.mxu0 0
        %1619 = vmatpush1.bf16.msra.mxu0 0
        %1620 = vmatprep.subr.bf16.mxu0 0
        %1621 = vmatpush1.bf16.msra.mxu0 0
        %1622 = vmatprep.subr.bf16.mxu0 0
        %1623 = vmatpush1.bf16.msra.mxu0 0
        %1624 = vmatprep.subr.bf16.mxu0 0
        %1625 = vmatpush1.bf16.msra.mxu0 0
        %1626 = vmatprep.subr.bf16.mxu0 0
        %1627 = vmatpush1.bf16.msra.mxu0 0
        %1628 = vmatprep.subr.bf16.mxu0 0
        %1629 = vmatpush1.bf16.msra.mxu0 0
        %1630 = vmatprep.mubr.bf16.mxu0 0
        %1631 = vmatmul.mubr.bf16.gmra.mrb[0].mxu0 %v1596
        %v1632 = vpop.f32.mrb[0].mxu0
        %v1633 = vadd.f32 %v1582, %v1632
        %v1634 = vpop.f32.mrb[0].mxu0
        %v1635 = vpop.f32.mrb[0].mxu0
        %v1636 = vadd.f32 %v1582, %v1635
        %v1637 = vpop.f32.mrb[0].mxu0
        %1638 = vdwg.mxu0
        %1639 = vrot.lane.b32.xlu0 %v1591, 96
        %v1640 = vpop.permute.xlu0 %1639
        %1641 = vrot.lane.b32.xlu0 %v1592, 96
        %v1642 = vpop.permute.xlu0 %1641
        %v1646 = vsel %vm435, %v1578, 0
        %1648 = vmatprep.subr.bf16.mxu0 0
        %1649 = vmatpush1.bf16.msra.mxu0 %v1640
        %1650 = vmatprep.subr.bf16.mxu0 0
        %1651 = vmatpush1.bf16.msra.mxu0 %v1642
        %1652 = vmatprep.subr.bf16.mxu0 0
        %1653 = vmatpush1.bf16.msra.mxu0 0
        %1654 = vmatprep.subr.bf16.mxu0 0
        %1655 = vmatpush1.bf16.msra.mxu0 0
        %1656 = vmatprep.subr.bf16.mxu0 0
        %1657 = vmatpush1.bf16.msra.mxu0 0
        %1658 = vmatprep.subr.bf16.mxu0 0
        %1659 = vmatpush1.bf16.msra.mxu0 0
        %1660 = vmatprep.subr.bf16.mxu0 0
        %1661 = vmatpush1.bf16.msra.mxu0 0
        %1662 = vmatprep.subr.bf16.mxu0 0
        %1663 = vmatpush1.bf16.msra.mxu0 0
        %1664 = vmatprep.subr.bf16.mxu0 0
        %1665 = vmatpush1.bf16.msra.mxu0 0
        %1666 = vmatprep.subr.bf16.mxu0 0
        %1667 = vmatpush1.bf16.msra.mxu0 0
        %1668 = vmatprep.subr.bf16.mxu0 0
        %1669 = vmatpush1.bf16.msra.mxu0 0
        %1670 = vmatprep.subr.bf16.mxu0 0
        %1671 = vmatpush1.bf16.msra.mxu0 0
        %1672 = vmatprep.subr.bf16.mxu0 0
        %1673 = vmatpush1.bf16.msra.mxu0 0
        %1674 = vmatprep.subr.bf16.mxu0 0
        %1675 = vmatpush1.bf16.msra.mxu0 0
        %1676 = vmatprep.subr.bf16.mxu0 0
        %1677 = vmatpush1.bf16.msra.mxu0 0
        %1678 = vmatprep.subr.bf16.mxu0 0
        %1679 = vmatpush1.bf16.msra.mxu0 0
        %1680 = vmatprep.mubr.bf16.mxu0 0
        %1681 = vmatmul.mubr.bf16.gmra.mrb[0].mxu0 %v1646
        %v1682 = vpop.f32.mrb[0].mxu0
        %v1683 = vadd.f32 0.0, %v1682
        %v1684 = vpop.f32.mrb[0].mxu0
        %v1685 = vpop.f32.mrb[0].mxu0
        %v1686 = vadd.f32 0.0, %v1685
        %v1687 = vpop.f32.mrb[0].mxu0
        %1688 = vdwg.mxu0
        %v1689 = vlaneseq
        %v1690 = vshrl.u32 %v1689, 7
        %v1691 = vsub.s32 5, %v1690
        %v1692 = vrot.slane %v406, %v1691
        %v1693 = vadd.f32 %v1683, %v1692
        %v1694 = vadd.f32 %v1686, %v1692
        %v1695 = vlaneseq
        %v1696 = vshrl.u32 %v1695, 7
        %v1697 = vsub.s32 6, %v1696
        %v1698 = vrot.slane %v406, %v1697
        %1700 = vrot.lane.b32.xlu0 %v1698, 32
        %v1701 = vpop.permute.xlu0 %1700
        %v1703 = vadd.f32 %v1683, %v1701
        %v1704 = vadd.f32 %v1686, %v1701
        %v1705 = vpack.c.bf16 %v1633, %v1633
        %v1706 = vpack.c.bf16 %v1636, %v1636
        %v1707 = vpack.c.bf16 %v1693, %v1693
        %v1708 = vpack.c.bf16 %v1694, %v1694
        %v1709 = vpack.c.bf16 %v1703, %v1703
        %v1710 = vpack.c.bf16 %v1704, %v1704
        %v1712 = vsel %vm549, %v1705, 0
        %v1715 = vsel %vm549, %v1707, 0
        %1717 = vmatprep.subr.bf16.mxu0 0
        %1718 = vmatpush1.bf16.xpose.msra.mxu0 %v1715
        %1719 = vmatprep.subr.bf16.mxu0 0
        %1720 = vmatpush1.bf16.xpose.msra.mxu0 0
        %1721 = vmatprep.subr.bf16.mxu0 0
        %1722 = vmatpush1.bf16.xpose.msra.mxu0 0
        %1723 = vmatprep.subr.bf16.mxu0 0
        %1724 = vmatpush1.bf16.xpose.msra.mxu0 0
        %1725 = vmatprep.subr.bf16.mxu0 0
        %1726 = vmatpush1.bf16.xpose.msra.mxu0 0
        %1727 = vmatprep.subr.bf16.mxu0 0
        %1728 = vmatpush1.bf16.xpose.msra.mxu0 0
        %1729 = vmatprep.subr.bf16.mxu0 0
        %1730 = vmatpush1.bf16.xpose.msra.mxu0 0
        %1731 = vmatprep.subr.bf16.mxu0 0
        %1732 = vmatpush1.bf16.xpose.msra.mxu0 0
        %1733 = vmatprep.subr.bf16.mxu0 0
        %1734 = vmatpush1.bf16.xpose.msra.mxu0 0
        %1735 = vmatprep.subr.bf16.mxu0 0
        %1736 = vmatpush1.bf16.xpose.msra.mxu0 0
        %1737 = vmatprep.subr.bf16.mxu0 0
        %1738 = vmatpush1.bf16.xpose.msra.mxu0 0
        %1739 = vmatprep.subr.bf16.mxu0 0
        %1740 = vmatpush1.bf16.xpose.msra.mxu0 0
        %1741 = vmatprep.subr.bf16.mxu0 0
        %1742 = vmatpush1.bf16.xpose.msra.mxu0 0
        %1743 = vmatprep.subr.bf16.mxu0 0
        %1744 = vmatpush1.bf16.xpose.msra.mxu0 0
        %1745 = vmatprep.subr.bf16.mxu0 0
        %1746 = vmatpush1.bf16.xpose.msra.mxu0 0
        %1747 = vmatprep.subr.bf16.mxu0 0
        %1748 = vmatpush1.bf16.xpose.msra.mxu0 0
        %1749 = vmatprep.mubr.bf16.mxu0 0
        %1750 = vmatmul.mubr.bf16.gmra.mrb[0].mxu0 %v1712
        %v1751 = vpop.f32.mrb[0].mxu0
        %v1752 = vadd.f32 0.0, %v1751
        %v1753 = vpop.f32.mrb[0].mxu0
        %v1754 = vpop.f32.mrb[0].mxu0
        %v1755 = vpop.f32.mrb[0].mxu0
        %1756 = vdwg.mxu0
        %v1758 = vsel %vm549, %v1706, 0
        %v1761 = vsel %vm549, %v1708, 0
        %1763 = vmatprep.subr.bf16.mxu0 0
        %1764 = vmatpush1.bf16.xpose.msra.mxu0 %v1761
        %1765 = vmatprep.subr.bf16.mxu0 0
        %1766 = vmatpush1.bf16.xpose.msra.mxu0 0
        %1767 = vmatprep.subr.bf16.mxu0 0
        %1768 = vmatpush1.bf16.xpose.msra.mxu0 0
        %1769 = vmatprep.subr.bf16.mxu0 0
        %1770 = vmatpush1.bf16.xpose.msra.mxu0 0
        %1771 = vmatprep.subr.bf16.mxu0 0
        %1772 = vmatpush1.bf16.xpose.msra.mxu0 0
        %1773 = vmatprep.subr.bf16.mxu0 0
        %1774 = vmatpush1.bf16.xpose.msra.mxu0 0
        %1775 = vmatprep.subr.bf16.mxu0 0
        %1776 = vmatpush1.bf16.xpose.msra.mxu0 0
        %1777 = vmatprep.subr.bf16.mxu0 0
        %1778 = vmatpush1.bf16.xpose.msra.mxu0 0
        %1779 = vmatprep.subr.bf16.mxu0 0
        %1780 = vmatpush1.bf16.xpose.msra.mxu0 0
        %1781 = vmatprep.subr.bf16.mxu0 0
        %1782 = vmatpush1.bf16.xpose.msra.mxu0 0
        %1783 = vmatprep.subr.bf16.mxu0 0
        %1784 = vmatpush1.bf16.xpose.msra.mxu0 0
        %1785 = vmatprep.subr.bf16.mxu0 0
        %1786 = vmatpush1.bf16.xpose.msra.mxu0 0
        %1787 = vmatprep.subr.bf16.mxu0 0
        %1788 = vmatpush1.bf16.xpose.msra.mxu0 0
        %1789 = vmatprep.subr.bf16.mxu0 0
        %1790 = vmatpush1.bf16.xpose.msra.mxu0 0
        %1791 = vmatprep.subr.bf16.mxu0 0
        %1792 = vmatpush1.bf16.xpose.msra.mxu0 0
        %1793 = vmatprep.subr.bf16.mxu0 0
        %1794 = vmatpush1.bf16.xpose.msra.mxu0 0
        %1795 = vmatprep.mubr.bf16.mxu0 0
        %1796 = vmatmul.mubr.bf16.gmra.mrb[0].mxu0 %v1758
        %v1797 = vpop.f32.mrb[0].mxu0
        %v1798 = vadd.f32 0.0, %v1797
        %v1799 = vpop.f32.mrb[0].mxu0
        %v1800 = vpop.f32.mrb[0].mxu0
        %v1801 = vpop.f32.mrb[0].mxu0
        %1802 = vdwg.mxu0
        %v1803 = vmul.f32 %v1752, 0.35355338
        %v1804 = vmul.f32 %v1798, 0.35355338
        %v1805 = vsel %vm549, %v1803, -inf
        %1806 = vmax.xlane.f32.xlu0 %v1805
        %v1807 = vpop.xlane.xlu0 %1806
        %v1808 = vsel %vm549, %v1804, -inf
        %1809 = vmax.xlane.f32.xlu0 %v1808
        %v1810 = vpop.xlane.xlu0 %1809
        %v1811 = vsub.f32 %v1803, %v1807
        %v1812 = vsub.f32 %v1804, %v1810
        %v1813 = vmul.f32 %v1811, 1.442695
        %v1814 = vpow.pop %v1813
        %v1815 = vmul.f32 %v1812, 1.442695
        %v1816 = vpow.pop %v1815
        %v1817 = vsel %vm549, %v1814, 0.0
        %1818 = vadd.xlane.f32.xlu0 %v1817
        %v1819 = vpop.xlane.xlu0 %1818
        %v1820 = vsel %vm549, %v1816, 0.0
        %1821 = vadd.xlane.f32.xlu0 %v1820
        %v1822 = vpop.xlane.xlu0 %1821
        %v1823 = vrcp.pop %v1819
        %v1824 = vrcp.pop %v1822
        %v1825 = vmul.f32 %v1814, %v1823
        %v1826 = vmul.f32 %v1816, %v1824
        %v1827 = vpack.c.bf16 %v1825, %v1825
        %v1828 = vpack.c.bf16 %v1826, %v1826
        %1830 = vrot.lane.b32.xlu0 %v1709, 96
        %v1831 = vpop.permute.xlu0 %1830
        %v1833 = vsel %vm549, %v1827, 0
        %v1836 = vsel %vm676, %v1831, 0
        %1838 = vmatprep.subr.bf16.mxu0 0
        %1839 = vmatpush1.bf16.msra.mxu0 %v1836
        %1840 = vmatprep.subr.bf16.mxu0 0
        %1841 = vmatpush1.bf16.msra.mxu0 0
        %1842 = vmatprep.subr.bf16.mxu0 0
        %1843 = vmatpush1.bf16.msra.mxu0 0
        %1844 = vmatprep.subr.bf16.mxu0 0
        %1845 = vmatpush1.bf16.msra.mxu0 0
        %1846 = vmatprep.subr.bf16.mxu0 0
        %1847 = vmatpush1.bf16.msra.mxu0 0
        %1848 = vmatprep.subr.bf16.mxu0 0
        %1849 = vmatpush1.bf16.msra.mxu0 0
        %1850 = vmatprep.subr.bf16.mxu0 0
        %1851 = vmatpush1.bf16.msra.mxu0 0
        %1852 = vmatprep.subr.bf16.mxu0 0
        %1853 = vmatpush1.bf16.msra.mxu0 0
        %1854 = vmatprep.subr.bf16.mxu0 0
        %1855 = vmatpush1.bf16.msra.mxu0 0
        %1856 = vmatprep.subr.bf16.mxu0 0
        %1857 = vmatpush1.bf16.msra.mxu0 0
        %1858 = vmatprep.subr.bf16.mxu0 0
        %1859 = vmatpush1.bf16.msra.mxu0 0
        %1860 = vmatprep.subr.bf16.mxu0 0
        %1861 = vmatpush1.bf16.msra.mxu0 0
        %1862 = vmatprep.subr.bf16.mxu0 0
        %1863 = vmatpush1.bf16.msra.mxu0 0
        %1864 = vmatprep.subr.bf16.mxu0 0
        %1865 = vmatpush1.bf16.msra.mxu0 0
        %1866 = vmatprep.subr.bf16.mxu0 0
        %1867 = vmatpush1.bf16.msra.mxu0 0
        %1868 = vmatprep.subr.bf16.mxu0 0
        %1869 = vmatpush1.bf16.msra.mxu0 0
        %1870 = vmatprep.mubr.bf16.mxu0 0
        %1871 = vmatmul.mubr.bf16.gmra.mrb[0].mxu0 %v1833
        %v1872 = vpop.f32.mrb[0].mxu0
        %v1873 = vadd.f32 0.0, %v1872
        %v1874 = vpop.f32.mrb[0].mxu0
        %v1875 = vpop.f32.mrb[0].mxu0
        %v1876 = vpop.f32.mrb[0].mxu0
        %1877 = vdwg.mxu0
        %1879 = vrot.lane.b32.xlu0 %v1710, 96
        %v1880 = vpop.permute.xlu0 %1879
        %v1882 = vsel %vm549, %v1828, 0
        %v1885 = vsel %vm676, %v1880, 0
        %1887 = vmatprep.subr.bf16.mxu0 0
        %1888 = vmatpush1.bf16.msra.mxu0 %v1885
        %1889 = vmatprep.subr.bf16.mxu0 0
        %1890 = vmatpush1.bf16.msra.mxu0 0
        %1891 = vmatprep.subr.bf16.mxu0 0
        %1892 = vmatpush1.bf16.msra.mxu0 0
        %1893 = vmatprep.subr.bf16.mxu0 0
        %1894 = vmatpush1.bf16.msra.mxu0 0
        %1895 = vmatprep.subr.bf16.mxu0 0
        %1896 = vmatpush1.bf16.msra.mxu0 0
        %1897 = vmatprep.subr.bf16.mxu0 0
        %1898 = vmatpush1.bf16.msra.mxu0 0
        %1899 = vmatprep.subr.bf16.mxu0 0
        %1900 = vmatpush1.bf16.msra.mxu0 0
        %1901 = vmatprep.subr.bf16.mxu0 0
        %1902 = vmatpush1.bf16.msra.mxu0 0
        %1903 = vmatprep.subr.bf16.mxu0 0
        %1904 = vmatpush1.bf16.msra.mxu0 0
        %1905 = vmatprep.subr.bf16.mxu0 0
        %1906 = vmatpush1.bf16.msra.mxu0 0
        %1907 = vmatprep.subr.bf16.mxu0 0
        %1908 = vmatpush1.bf16.msra.mxu0 0
        %1909 = vmatprep.subr.bf16.mxu0 0
        %1910 = vmatpush1.bf16.msra.mxu0 0
        %1911 = vmatprep.subr.bf16.mxu0 0
        %1912 = vmatpush1.bf16.msra.mxu0 0
        %1913 = vmatprep.subr.bf16.mxu0 0
        %1914 = vmatpush1.bf16.msra.mxu0 0
        %1915 = vmatprep.subr.bf16.mxu0 0
        %1916 = vmatpush1.bf16.msra.mxu0 0
        %1917 = vmatprep.subr.bf16.mxu0 0
        %1918 = vmatpush1.bf16.msra.mxu0 0
        %1919 = vmatprep.mubr.bf16.mxu0 0
        %1920 = vmatmul.mubr.bf16.gmra.mrb[0].mxu0 %v1882
        %v1921 = vpop.f32.mrb[0].mxu0
        %v1922 = vadd.f32 0.0, %v1921
        %v1923 = vpop.f32.mrb[0].mxu0
        %v1924 = vpop.f32.mrb[0].mxu0
        %v1925 = vpop.f32.mrb[0].mxu0
        %1926 = vdwg.mxu0
        %1928 = vrot.lane.b32.xlu0 %v1705, 120
        %v1929 = vpop.permute.xlu0 %1928
        %1931 = vrot.lane.b32.xlu0 %v1707, 120
        %v1932 = vpop.permute.xlu0 %1931
        %v1934 = vsel %vm549, %v1929, 0
        %v1937 = vsel %vm549, %v1932, 0
        %1939 = vmatprep.subr.bf16.mxu0 0
        %1940 = vmatpush1.bf16.xpose.msra.mxu0 %v1937
        %1941 = vmatprep.subr.bf16.mxu0 0
        %1942 = vmatpush1.bf16.xpose.msra.mxu0 0
        %1943 = vmatprep.subr.bf16.mxu0 0
        %1944 = vmatpush1.bf16.xpose.msra.mxu0 0
        %1945 = vmatprep.subr.bf16.mxu0 0
        %1946 = vmatpush1.bf16.xpose.msra.mxu0 0
        %1947 = vmatprep.subr.bf16.mxu0 0
        %1948 = vmatpush1.bf16.xpose.msra.mxu0 0
        %1949 = vmatprep.subr.bf16.mxu0 0
        %1950 = vmatpush1.bf16.xpose.msra.mxu0 0
        %1951 = vmatprep.subr.bf16.mxu0 0
        %1952 = vmatpush1.bf16.xpose.msra.mxu0 0
        %1953 = vmatprep.subr.bf16.mxu0 0
        %1954 = vmatpush1.bf16.xpose.msra.mxu0 0
        %1955 = vmatprep.subr.bf16.mxu0 0
        %1956 = vmatpush1.bf16.xpose.msra.mxu0 0
        %1957 = vmatprep.subr.bf16.mxu0 0
        %1958 = vmatpush1.bf16.xpose.msra.mxu0 0
        %1959 = vmatprep.subr.bf16.mxu0 0
        %1960 = vmatpush1.bf16.xpose.msra.mxu0 0
        %1961 = vmatprep.subr.bf16.mxu0 0
        %1962 = vmatpush1.bf16.xpose.msra.mxu0 0
        %1963 = vmatprep.subr.bf16.mxu0 0
        %1964 = vmatpush1.bf16.xpose.msra.mxu0 0
        %1965 = vmatprep.subr.bf16.mxu0 0
        %1966 = vmatpush1.bf16.xpose.msra.mxu0 0
        %1967 = vmatprep.subr.bf16.mxu0 0
        %1968 = vmatpush1.bf16.xpose.msra.mxu0 0
        %1969 = vmatprep.subr.bf16.mxu0 0
        %1970 = vmatpush1.bf16.xpose.msra.mxu0 0
        %1971 = vmatprep.mubr.bf16.mxu0 0
        %1972 = vmatmul.mubr.bf16.gmra.mrb[0].mxu0 %v1934
        %v1973 = vpop.f32.mrb[0].mxu0
        %v1974 = vadd.f32 0.0, %v1973
        %v1975 = vpop.f32.mrb[0].mxu0
        %v1976 = vpop.f32.mrb[0].mxu0
        %v1977 = vpop.f32.mrb[0].mxu0
        %1978 = vdwg.mxu0
        %1980 = vrot.lane.b32.xlu0 %v1706, 120
        %v1981 = vpop.permute.xlu0 %1980
        %1983 = vrot.lane.b32.xlu0 %v1708, 120
        %v1984 = vpop.permute.xlu0 %1983
        %v1986 = vsel %vm549, %v1981, 0
        %v1989 = vsel %vm549, %v1984, 0
        %1991 = vmatprep.subr.bf16.mxu0 0
        %1992 = vmatpush1.bf16.xpose.msra.mxu0 %v1989
        %1993 = vmatprep.subr.bf16.mxu0 0
        %1994 = vmatpush1.bf16.xpose.msra.mxu0 0
        %1995 = vmatprep.subr.bf16.mxu0 0
        %1996 = vmatpush1.bf16.xpose.msra.mxu0 0
        %1997 = vmatprep.subr.bf16.mxu0 0
        %1998 = vmatpush1.bf16.xpose.msra.mxu0 0
        %1999 = vmatprep.subr.bf16.mxu0 0
        %2000 = vmatpush1.bf16.xpose.msra.mxu0 0
        %2001 = vmatprep.subr.bf16.mxu0 0
        %2002 = vmatpush1.bf16.xpose.msra.mxu0 0
        %2003 = vmatprep.subr.bf16.mxu0 0
        %2004 = vmatpush1.bf16.xpose.msra.mxu0 0
        %2005 = vmatprep.subr.bf16.mxu0 0
        %2006 = vmatpush1.bf16.xpose.msra.mxu0 0
        %2007 = vmatprep.subr.bf16.mxu0 0
        %2008 = vmatpush1.bf16.xpose.msra.mxu0 0
        %2009 = vmatprep.subr.bf16.mxu0 0
        %2010 = vmatpush1.bf16.xpose.msra.mxu0 0
        %2011 = vmatprep.subr.bf16.mxu0 0
        %2012 = vmatpush1.bf16.xpose.msra.mxu0 0
        %2013 = vmatprep.subr.bf16.mxu0 0
        %2014 = vmatpush1.bf16.xpose.msra.mxu0 0
        %2015 = vmatprep.subr.bf16.mxu0 0
        %2016 = vmatpush1.bf16.xpose.msra.mxu0 0
        %2017 = vmatprep.subr.bf16.mxu0 0
        %2018 = vmatpush1.bf16.xpose.msra.mxu0 0
        %2019 = vmatprep.subr.bf16.mxu0 0
        %2020 = vmatpush1.bf16.xpose.msra.mxu0 0
        %2021 = vmatprep.subr.bf16.mxu0 0
        %2022 = vmatpush1.bf16.xpose.msra.mxu0 0
        %2023 = vmatprep.mubr.bf16.mxu0 0
        %2024 = vmatmul.mubr.bf16.gmra.mrb[0].mxu0 %v1986
        %v2025 = vpop.f32.mrb[0].mxu0
        %v2026 = vadd.f32 0.0, %v2025
        %v2027 = vpop.f32.mrb[0].mxu0
        %v2028 = vpop.f32.mrb[0].mxu0
        %v2029 = vpop.f32.mrb[0].mxu0
        %2030 = vdwg.mxu0
        %v2031 = vmul.f32 %v1974, 0.35355338
        %v2032 = vmul.f32 %v2026, 0.35355338
        %v2033 = vsel %vm549, %v2031, -inf
        %2034 = vmax.xlane.f32.xlu0 %v2033
        %v2035 = vpop.xlane.xlu0 %2034
        %v2036 = vsel %vm549, %v2032, -inf
        %2037 = vmax.xlane.f32.xlu0 %v2036
        %v2038 = vpop.xlane.xlu0 %2037
        %v2039 = vsub.f32 %v2031, %v2035
        %v2040 = vsub.f32 %v2032, %v2038
        %v2041 = vmul.f32 %v2039, 1.442695
        %v2042 = vpow.pop %v2041
        %v2043 = vmul.f32 %v2040, 1.442695
        %v2044 = vpow.pop %v2043
        %v2045 = vsel %vm549, %v2042, 0.0
        %2046 = vadd.xlane.f32.xlu0 %v2045
        %v2047 = vpop.xlane.xlu0 %2046
        %v2048 = vsel %vm549, %v2044, 0.0
        %2049 = vadd.xlane.f32.xlu0 %v2048
        %v2050 = vpop.xlane.xlu0 %2049
        %v2051 = vrcp.pop %v2047
        %v2052 = vrcp.pop %v2050
        %v2053 = vmul.f32 %v2042, %v2051
        %v2054 = vmul.f32 %v2044, %v2052
        %v2055 = vpack.c.bf16 %v2053, %v2053
        %v2056 = vpack.c.bf16 %v2054, %v2054
        %2057 = vrot.lane.b32.xlu0 %v1709, 88
        %v2058 = vpop.permute.xlu0 %2057
        %v2060 = vsel %vm549, %v2055, 0
        %v2063 = vsel %vm676, %v2058, 0
        %2065 = vmatprep.subr.bf16.mxu0 0
        %2066 = vmatpush1.bf16.msra.mxu0 %v2063
        %2067 = vmatprep.subr.bf16.mxu0 0
        %2068 = vmatpush1.bf16.msra.mxu0 0
        %2069 = vmatprep.subr.bf16.mxu0 0
        %2070 = vmatpush1.bf16.msra.mxu0 0
        %2071 = vmatprep.subr.bf16.mxu0 0
        %2072 = vmatpush1.bf16.msra.mxu0 0
        %2073 = vmatprep.subr.bf16.mxu0 0
        %2074 = vmatpush1.bf16.msra.mxu0 0
        %2075 = vmatprep.subr.bf16.mxu0 0
        %2076 = vmatpush1.bf16.msra.mxu0 0
        %2077 = vmatprep.subr.bf16.mxu0 0
        %2078 = vmatpush1.bf16.msra.mxu0 0
        %2079 = vmatprep.subr.bf16.mxu0 0
        %2080 = vmatpush1.bf16.msra.mxu0 0
        %2081 = vmatprep.subr.bf16.mxu0 0
        %2082 = vmatpush1.bf16.msra.mxu0 0
        %2083 = vmatprep.subr.bf16.mxu0 0
        %2084 = vmatpush1.bf16.msra.mxu0 0
        %2085 = vmatprep.subr.bf16.mxu0 0
        %2086 = vmatpush1.bf16.msra.mxu0 0
        %2087 = vmatprep.subr.bf16.mxu0 0
        %2088 = vmatpush1.bf16.msra.mxu0 0
        %2089 = vmatprep.subr.bf16.mxu0 0
        %2090 = vmatpush1.bf16.msra.mxu0 0
        %2091 = vmatprep.subr.bf16.mxu0 0
        %2092 = vmatpush1.bf16.msra.mxu0 0
        %2093 = vmatprep.subr.bf16.mxu0 0
        %2094 = vmatpush1.bf16.msra.mxu0 0
        %2095 = vmatprep.subr.bf16.mxu0 0
        %2096 = vmatpush1.bf16.msra.mxu0 0
        %2097 = vmatprep.mubr.bf16.mxu0 0
        %2098 = vmatmul.mubr.bf16.gmra.mrb[0].mxu0 %v2060
        %v2099 = vpop.f32.mrb[0].mxu0
        %v2100 = vadd.f32 0.0, %v2099
        %v2101 = vpop.f32.mrb[0].mxu0
        %v2102 = vpop.f32.mrb[0].mxu0
        %v2103 = vpop.f32.mrb[0].mxu0
        %2104 = vdwg.mxu0
        %2105 = vrot.lane.b32.xlu0 %v1710, 88
        %v2106 = vpop.permute.xlu0 %2105
        %v2108 = vsel %vm549, %v2056, 0
        %v2111 = vsel %vm676, %v2106, 0
        %2113 = vmatprep.subr.bf16.mxu0 0
        %2114 = vmatpush1.bf16.msra.mxu0 %v2111
        %2115 = vmatprep.subr.bf16.mxu0 0
        %2116 = vmatpush1.bf16.msra.mxu0 0
        %2117 = vmatprep.subr.bf16.mxu0 0
        %2118 = vmatpush1.bf16.msra.mxu0 0
        %2119 = vmatprep.subr.bf16.mxu0 0
        %2120 = vmatpush1.bf16.msra.mxu0 0
        %2121 = vmatprep.subr.bf16.mxu0 0
        %2122 = vmatpush1.bf16.msra.mxu0 0
        %2123 = vmatprep.subr.bf16.mxu0 0
        %2124 = vmatpush1.bf16.msra.mxu0 0
        %2125 = vmatprep.subr.bf16.mxu0 0
        %2126 = vmatpush1.bf16.msra.mxu0 0
        %2127 = vmatprep.subr.bf16.mxu0 0
        %2128 = vmatpush1.bf16.msra.mxu0 0
        %2129 = vmatprep.subr.bf16.mxu0 0
        %2130 = vmatpush1.bf16.msra.mxu0 0
        %2131 = vmatprep.subr.bf16.mxu0 0
        %2132 = vmatpush1.bf16.msra.mxu0 0
        %2133 = vmatprep.subr.bf16.mxu0 0
        %2134 = vmatpush1.bf16.msra.mxu0 0
        %2135 = vmatprep.subr.bf16.mxu0 0
        %2136 = vmatpush1.bf16.msra.mxu0 0
        %2137 = vmatprep.subr.bf16.mxu0 0
        %2138 = vmatpush1.bf16.msra.mxu0 0
        %2139 = vmatprep.subr.bf16.mxu0 0
        %2140 = vmatpush1.bf16.msra.mxu0 0
        %2141 = vmatprep.subr.bf16.mxu0 0
        %2142 = vmatpush1.bf16.msra.mxu0 0
        %2143 = vmatprep.subr.bf16.mxu0 0
        %2144 = vmatpush1.bf16.msra.mxu0 0
        %2145 = vmatprep.mubr.bf16.mxu0 0
        %2146 = vmatmul.mubr.bf16.gmra.mrb[0].mxu0 %v2108
        %v2147 = vpop.f32.mrb[0].mxu0
        %v2148 = vadd.f32 0.0, %v2147
        %v2149 = vpop.f32.mrb[0].mxu0
        %v2150 = vpop.f32.mrb[0].mxu0
        %v2151 = vpop.f32.mrb[0].mxu0
        %2152 = vdwg.mxu0
        %2153 = vrot.lane.b32.xlu0 %v1705, 112
        %v2154 = vpop.permute.xlu0 %2153
        %2155 = vrot.lane.b32.xlu0 %v1707, 112
        %v2156 = vpop.permute.xlu0 %2155
        %v2158 = vsel %vm549, %v2154, 0
        %v2161 = vsel %vm549, %v2156, 0
        %2163 = vmatprep.subr.bf16.mxu0 0
        %2164 = vmatpush1.bf16.xpose.msra.mxu0 %v2161
        %2165 = vmatprep.subr.bf16.mxu0 0
        %2166 = vmatpush1.bf16.xpose.msra.mxu0 0
        %2167 = vmatprep.subr.bf16.mxu0 0
        %2168 = vmatpush1.bf16.xpose.msra.mxu0 0
        %2169 = vmatprep.subr.bf16.mxu0 0
        %2170 = vmatpush1.bf16.xpose.msra.mxu0 0
        %2171 = vmatprep.subr.bf16.mxu0 0
        %2172 = vmatpush1.bf16.xpose.msra.mxu0 0
        %2173 = vmatprep.subr.bf16.mxu0 0
        %2174 = vmatpush1.bf16.xpose.msra.mxu0 0
        %2175 = vmatprep.subr.bf16.mxu0 0
        %2176 = vmatpush1.bf16.xpose.msra.mxu0 0
        %2177 = vmatprep.subr.bf16.mxu0 0
        %2178 = vmatpush1.bf16.xpose.msra.mxu0 0
        %2179 = vmatprep.subr.bf16.mxu0 0
        %2180 = vmatpush1.bf16.xpose.msra.mxu0 0
        %2181 = vmatprep.subr.bf16.mxu0 0
        %2182 = vmatpush1.bf16.xpose.msra.mxu0 0
        %2183 = vmatprep.subr.bf16.mxu0 0
        %2184 = vmatpush1.bf16.xpose.msra.mxu0 0
        %2185 = vmatprep.subr.bf16.mxu0 0
        %2186 = vmatpush1.bf16.xpose.msra.mxu0 0
        %2187 = vmatprep.subr.bf16.mxu0 0
        %2188 = vmatpush1.bf16.xpose.msra.mxu0 0
        %2189 = vmatprep.subr.bf16.mxu0 0
        %2190 = vmatpush1.bf16.xpose.msra.mxu0 0
        %2191 = vmatprep.subr.bf16.mxu0 0
        %2192 = vmatpush1.bf16.xpose.msra.mxu0 0
        %2193 = vmatprep.subr.bf16.mxu0 0
        %2194 = vmatpush1.bf16.xpose.msra.mxu0 0
        %2195 = vmatprep.mubr.bf16.mxu0 0
        %2196 = vmatmul.mubr.bf16.gmra.mrb[0].mxu0 %v2158
        %v2197 = vpop.f32.mrb[0].mxu0
        %v2198 = vadd.f32 0.0, %v2197
        %v2199 = vpop.f32.mrb[0].mxu0
        %v2200 = vpop.f32.mrb[0].mxu0
        %v2201 = vpop.f32.mrb[0].mxu0
        %2202 = vdwg.mxu0
        %2203 = vrot.lane.b32.xlu0 %v1706, 112
        %v2204 = vpop.permute.xlu0 %2203
        %2205 = vrot.lane.b32.xlu0 %v1708, 112
        %v2206 = vpop.permute.xlu0 %2205
        %v2208 = vsel %vm549, %v2204, 0
        %v2211 = vsel %vm549, %v2206, 0
        %2213 = vmatprep.subr.bf16.mxu0 0
        %2214 = vmatpush1.bf16.xpose.msra.mxu0 %v2211
        %2215 = vmatprep.subr.bf16.mxu0 0
        %2216 = vmatpush1.bf16.xpose.msra.mxu0 0
        %2217 = vmatprep.subr.bf16.mxu0 0
        %2218 = vmatpush1.bf16.xpose.msra.mxu0 0
        %2219 = vmatprep.subr.bf16.mxu0 0
        %2220 = vmatpush1.bf16.xpose.msra.mxu0 0
        %2221 = vmatprep.subr.bf16.mxu0 0
        %2222 = vmatpush1.bf16.xpose.msra.mxu0 0
        %2223 = vmatprep.subr.bf16.mxu0 0
        %2224 = vmatpush1.bf16.xpose.msra.mxu0 0
        %2225 = vmatprep.subr.bf16.mxu0 0
        %2226 = vmatpush1.bf16.xpose.msra.mxu0 0
        %2227 = vmatprep.subr.bf16.mxu0 0
        %2228 = vmatpush1.bf16.xpose.msra.mxu0 0
        %2229 = vmatprep.subr.bf16.mxu0 0
        %2230 = vmatpush1.bf16.xpose.msra.mxu0 0
        %2231 = vmatprep.subr.bf16.mxu0 0
        %2232 = vmatpush1.bf16.xpose.msra.mxu0 0
        %2233 = vmatprep.subr.bf16.mxu0 0
        %2234 = vmatpush1.bf16.xpose.msra.mxu0 0
        %2235 = vmatprep.subr.bf16.mxu0 0
        %2236 = vmatpush1.bf16.xpose.msra.mxu0 0
        %2237 = vmatprep.subr.bf16.mxu0 0
        %2238 = vmatpush1.bf16.xpose.msra.mxu0 0
        %2239 = vmatprep.subr.bf16.mxu0 0
        %2240 = vmatpush1.bf16.xpose.msra.mxu0 0
        %2241 = vmatprep.subr.bf16.mxu0 0
        %2242 = vmatpush1.bf16.xpose.msra.mxu0 0
        %2243 = vmatprep.subr.bf16.mxu0 0
        %2244 = vmatpush1.bf16.xpose.msra.mxu0 0
        %2245 = vmatprep.mubr.bf16.mxu0 0
        %2246 = vmatmul.mubr.bf16.gmra.mrb[0].mxu0 %v2208
        %v2247 = vpop.f32.mrb[0].mxu0
        %v2248 = vadd.f32 0.0, %v2247
        %v2249 = vpop.f32.mrb[0].mxu0
        %v2250 = vpop.f32.mrb[0].mxu0
        %v2251 = vpop.f32.mrb[0].mxu0
        %2252 = vdwg.mxu0
        %v2253 = vmul.f32 %v2198, 0.35355338
        %v2254 = vmul.f32 %v2248, 0.35355338
        %v2255 = vsel %vm549, %v2253, -inf
        %2256 = vmax.xlane.f32.xlu0 %v2255
        %v2257 = vpop.xlane.xlu0 %2256
        %v2258 = vsel %vm549, %v2254, -inf
        %2259 = vmax.xlane.f32.xlu0 %v2258
        %v2260 = vpop.xlane.xlu0 %2259
        %v2261 = vsub.f32 %v2253, %v2257
        %v2262 = vsub.f32 %v2254, %v2260
        %v2263 = vmul.f32 %v2261, 1.442695
        %v2264 = vpow.pop %v2263
        %v2265 = vmul.f32 %v2262, 1.442695
        %v2266 = vpow.pop %v2265
        %v2267 = vsel %vm549, %v2264, 0.0
        %2268 = vadd.xlane.f32.xlu0 %v2267
        %v2269 = vpop.xlane.xlu0 %2268
        %v2270 = vsel %vm549, %v2266, 0.0
        %2271 = vadd.xlane.f32.xlu0 %v2270
        %v2272 = vpop.xlane.xlu0 %2271
        %v2273 = vrcp.pop %v2269
        %v2274 = vrcp.pop %v2272
        %v2275 = vmul.f32 %v2264, %v2273
        %v2276 = vmul.f32 %v2266, %v2274
        %v2277 = vpack.c.bf16 %v2275, %v2275
        %v2278 = vpack.c.bf16 %v2276, %v2276
        %2279 = vrot.lane.b32.xlu0 %v1709, 80
        %v2280 = vpop.permute.xlu0 %2279
        %v2282 = vsel %vm549, %v2277, 0
        %v2285 = vsel %vm676, %v2280, 0
        %2287 = vmatprep.subr.bf16.mxu0 0
        %2288 = vmatpush1.bf16.msra.mxu0 %v2285
        %2289 = vmatprep.subr.bf16.mxu0 0
        %2290 = vmatpush1.bf16.msra.mxu0 0
        %2291 = vmatprep.subr.bf16.mxu0 0
        %2292 = vmatpush1.bf16.msra.mxu0 0
        %2293 = vmatprep.subr.bf16.mxu0 0
        %2294 = vmatpush1.bf16.msra.mxu0 0
        %2295 = vmatprep.subr.bf16.mxu0 0
        %2296 = vmatpush1.bf16.msra.mxu0 0
        %2297 = vmatprep.subr.bf16.mxu0 0
        %2298 = vmatpush1.bf16.msra.mxu0 0
        %2299 = vmatprep.subr.bf16.mxu0 0
        %2300 = vmatpush1.bf16.msra.mxu0 0
        %2301 = vmatprep.subr.bf16.mxu0 0
        %2302 = vmatpush1.bf16.msra.mxu0 0
        %2303 = vmatprep.subr.bf16.mxu0 0
        %2304 = vmatpush1.bf16.msra.mxu0 0
        %2305 = vmatprep.subr.bf16.mxu0 0
        %2306 = vmatpush1.bf16.msra.mxu0 0
        %2307 = vmatprep.subr.bf16.mxu0 0
        %2308 = vmatpush1.bf16.msra.mxu0 0
        %2309 = vmatprep.subr.bf16.mxu0 0
        %2310 = vmatpush1.bf16.msra.mxu0 0
        %2311 = vmatprep.subr.bf16.mxu0 0
        %2312 = vmatpush1.bf16.msra.mxu0 0
        %2313 = vmatprep.subr.bf16.mxu0 0
        %2314 = vmatpush1.bf16.msra.mxu0 0
        %2315 = vmatprep.subr.bf16.mxu0 0
        %2316 = vmatpush1.bf16.msra.mxu0 0
        %2317 = vmatprep.subr.bf16.mxu0 0
        %2318 = vmatpush1.bf16.msra.mxu0 0
        %2319 = vmatprep.mubr.bf16.mxu0 0
        %2320 = vmatmul.mubr.bf16.gmra.mrb[0].mxu0 %v2282
        %v2321 = vpop.f32.mrb[0].mxu0
        %v2322 = vadd.f32 0.0, %v2321
        %v2323 = vpop.f32.mrb[0].mxu0
        %v2324 = vpop.f32.mrb[0].mxu0
        %v2325 = vpop.f32.mrb[0].mxu0
        %2326 = vdwg.mxu0
        %2327 = vrot.lane.b32.xlu0 %v1710, 80
        %v2328 = vpop.permute.xlu0 %2327
        %v2330 = vsel %vm549, %v2278, 0
        %v2333 = vsel %vm676, %v2328, 0
        %2335 = vmatprep.subr.bf16.mxu0 0
        %2336 = vmatpush1.bf16.msra.mxu0 %v2333
        %2337 = vmatprep.subr.bf16.mxu0 0
        %2338 = vmatpush1.bf16.msra.mxu0 0
        %2339 = vmatprep.subr.bf16.mxu0 0
        %2340 = vmatpush1.bf16.msra.mxu0 0
        %2341 = vmatprep.subr.bf16.mxu0 0
        %2342 = vmatpush1.bf16.msra.mxu0 0
        %2343 = vmatprep.subr.bf16.mxu0 0
        %2344 = vmatpush1.bf16.msra.mxu0 0
        %2345 = vmatprep.subr.bf16.mxu0 0
        %2346 = vmatpush1.bf16.msra.mxu0 0
        %2347 = vmatprep.subr.bf16.mxu0 0
        %2348 = vmatpush1.bf16.msra.mxu0 0
        %2349 = vmatprep.subr.bf16.mxu0 0
        %2350 = vmatpush1.bf16.msra.mxu0 0
        %2351 = vmatprep.subr.bf16.mxu0 0
        %2352 = vmatpush1.bf16.msra.mxu0 0
        %2353 = vmatprep.subr.bf16.mxu0 0
        %2354 = vmatpush1.bf16.msra.mxu0 0
        %2355 = vmatprep.subr.bf16.mxu0 0
        %2356 = vmatpush1.bf16.msra.mxu0 0
        %2357 = vmatprep.subr.bf16.mxu0 0
        %2358 = vmatpush1.bf16.msra.mxu0 0
        %2359 = vmatprep.subr.bf16.mxu0 0
        %2360 = vmatpush1.bf16.msra.mxu0 0
        %2361 = vmatprep.subr.bf16.mxu0 0
        %2362 = vmatpush1.bf16.msra.mxu0 0
        %2363 = vmatprep.subr.bf16.mxu0 0
        %2364 = vmatpush1.bf16.msra.mxu0 0
        %2365 = vmatprep.subr.bf16.mxu0 0
        %2366 = vmatpush1.bf16.msra.mxu0 0
        %2367 = vmatprep.mubr.bf16.mxu0 0
        %2368 = vmatmul.mubr.bf16.gmra.mrb[0].mxu0 %v2330
        %v2369 = vpop.f32.mrb[0].mxu0
        %v2370 = vadd.f32 0.0, %v2369
        %v2371 = vpop.f32.mrb[0].mxu0
        %v2372 = vpop.f32.mrb[0].mxu0
        %v2373 = vpop.f32.mrb[0].mxu0
        %2374 = vdwg.mxu0
        %2375 = vrot.lane.b32.xlu0 %v1705, 104
        %v2376 = vpop.permute.xlu0 %2375
        %2377 = vrot.lane.b32.xlu0 %v1707, 104
        %v2378 = vpop.permute.xlu0 %2377
        %v2380 = vsel %vm549, %v2376, 0
        %v2383 = vsel %vm549, %v2378, 0
        %2385 = vmatprep.subr.bf16.mxu0 0
        %2386 = vmatpush1.bf16.xpose.msra.mxu0 %v2383
        %2387 = vmatprep.subr.bf16.mxu0 0
        %2388 = vmatpush1.bf16.xpose.msra.mxu0 0
        %2389 = vmatprep.subr.bf16.mxu0 0
        %2390 = vmatpush1.bf16.xpose.msra.mxu0 0
        %2391 = vmatprep.subr.bf16.mxu0 0
        %2392 = vmatpush1.bf16.xpose.msra.mxu0 0
        %2393 = vmatprep.subr.bf16.mxu0 0
        %2394 = vmatpush1.bf16.xpose.msra.mxu0 0
        %2395 = vmatprep.subr.bf16.mxu0 0
        %2396 = vmatpush1.bf16.xpose.msra.mxu0 0
        %2397 = vmatprep.subr.bf16.mxu0 0
        %2398 = vmatpush1.bf16.xpose.msra.mxu0 0
        %2399 = vmatprep.subr.bf16.mxu0 0
        %2400 = vmatpush1.bf16.xpose.msra.mxu0 0
        %2401 = vmatprep.subr.bf16.mxu0 0
        %2402 = vmatpush1.bf16.xpose.msra.mxu0 0
        %2403 = vmatprep.subr.bf16.mxu0 0
        %2404 = vmatpush1.bf16.xpose.msra.mxu0 0
        %2405 = vmatprep.subr.bf16.mxu0 0
        %2406 = vmatpush1.bf16.xpose.msra.mxu0 0
        %2407 = vmatprep.subr.bf16.mxu0 0
        %2408 = vmatpush1.bf16.xpose.msra.mxu0 0
        %2409 = vmatprep.subr.bf16.mxu0 0
        %2410 = vmatpush1.bf16.xpose.msra.mxu0 0
        %2411 = vmatprep.subr.bf16.mxu0 0
        %2412 = vmatpush1.bf16.xpose.msra.mxu0 0
        %2413 = vmatprep.subr.bf16.mxu0 0
        %2414 = vmatpush1.bf16.xpose.msra.mxu0 0
        %2415 = vmatprep.subr.bf16.mxu0 0
        %2416 = vmatpush1.bf16.xpose.msra.mxu0 0
        %2417 = vmatprep.mubr.bf16.mxu0 0
        %2418 = vmatmul.mubr.bf16.gmra.mrb[0].mxu0 %v2380
        %v2419 = vpop.f32.mrb[0].mxu0
        %v2420 = vadd.f32 0.0, %v2419
        %v2421 = vpop.f32.mrb[0].mxu0
        %v2422 = vpop.f32.mrb[0].mxu0
        %v2423 = vpop.f32.mrb[0].mxu0
        %2424 = vdwg.mxu0
        %2425 = vrot.lane.b32.xlu0 %v1706, 104
        %v2426 = vpop.permute.xlu0 %2425
        %2427 = vrot.lane.b32.xlu0 %v1708, 104
        %v2428 = vpop.permute.xlu0 %2427
        %v2430 = vsel %vm549, %v2426, 0
        %v2433 = vsel %vm549, %v2428, 0
        %2435 = vmatprep.subr.bf16.mxu0 0
        %2436 = vmatpush1.bf16.xpose.msra.mxu0 %v2433
        %2437 = vmatprep.subr.bf16.mxu0 0
        %2438 = vmatpush1.bf16.xpose.msra.mxu0 0
        %2439 = vmatprep.subr.bf16.mxu0 0
        %2440 = vmatpush1.bf16.xpose.msra.mxu0 0
        %2441 = vmatprep.subr.bf16.mxu0 0
        %2442 = vmatpush1.bf16.xpose.msra.mxu0 0
        %2443 = vmatprep.subr.bf16.mxu0 0
        %2444 = vmatpush1.bf16.xpose.msra.mxu0 0
        %2445 = vmatprep.subr.bf16.mxu0 0
        %2446 = vmatpush1.bf16.xpose.msra.mxu0 0
        %2447 = vmatprep.subr.bf16.mxu0 0
        %2448 = vmatpush1.bf16.xpose.msra.mxu0 0
        %2449 = vmatprep.subr.bf16.mxu0 0
        %2450 = vmatpush1.bf16.xpose.msra.mxu0 0
        %2451 = vmatprep.subr.bf16.mxu0 0
        %2452 = vmatpush1.bf16.xpose.msra.mxu0 0
        %2453 = vmatprep.subr.bf16.mxu0 0
        %2454 = vmatpush1.bf16.xpose.msra.mxu0 0
        %2455 = vmatprep.subr.bf16.mxu0 0
        %2456 = vmatpush1.bf16.xpose.msra.mxu0 0
        %2457 = vmatprep.subr.bf16.mxu0 0
        %2458 = vmatpush1.bf16.xpose.msra.mxu0 0
        %2459 = vmatprep.subr.bf16.mxu0 0
        %2460 = vmatpush1.bf16.xpose.msra.mxu0 0
        %2461 = vmatprep.subr.bf16.mxu0 0
        %2462 = vmatpush1.bf16.xpose.msra.mxu0 0
        %2463 = vmatprep.subr.bf16.mxu0 0
        %2464 = vmatpush1.bf16.xpose.msra.mxu0 0
        %2465 = vmatprep.subr.bf16.mxu0 0
        %2466 = vmatpush1.bf16.xpose.msra.mxu0 0
        %2467 = vmatprep.mubr.bf16.mxu0 0
        %2468 = vmatmul.mubr.bf16.gmra.mrb[0].mxu0 %v2430
        %v2469 = vpop.f32.mrb[0].mxu0
        %v2470 = vadd.f32 0.0, %v2469
        %v2471 = vpop.f32.mrb[0].mxu0
        %v2472 = vpop.f32.mrb[0].mxu0
        %v2473 = vpop.f32.mrb[0].mxu0
        %2474 = vdwg.mxu0
        %v2475 = vmul.f32 %v2420, 0.35355338
        %v2476 = vmul.f32 %v2470, 0.35355338
        %v2477 = vsel %vm549, %v2475, -inf
        %2478 = vmax.xlane.f32.xlu0 %v2477
        %v2479 = vpop.xlane.xlu0 %2478
        %v2480 = vsel %vm549, %v2476, -inf
        %2481 = vmax.xlane.f32.xlu0 %v2480
        %v2482 = vpop.xlane.xlu0 %2481
        %v2483 = vsub.f32 %v2475, %v2479
        %v2484 = vsub.f32 %v2476, %v2482
        %v2485 = vmul.f32 %v2483, 1.442695
        %v2486 = vpow.pop %v2485
        %v2487 = vmul.f32 %v2484, 1.442695
        %v2488 = vpow.pop %v2487
        %v2489 = vsel %vm549, %v2486, 0.0
        %2490 = vadd.xlane.f32.xlu0 %v2489
        %v2491 = vpop.xlane.xlu0 %2490
        %v2492 = vsel %vm549, %v2488, 0.0
        %2493 = vadd.xlane.f32.xlu0 %v2492
        %v2494 = vpop.xlane.xlu0 %2493
        %v2495 = vrcp.pop %v2491
        %v2496 = vrcp.pop %v2494
        %v2497 = vmul.f32 %v2486, %v2495
        %v2498 = vmul.f32 %v2488, %v2496
        %v2499 = vpack.c.bf16 %v2497, %v2497
        %v2500 = vpack.c.bf16 %v2498, %v2498
        %2501 = vrot.lane.b32.xlu0 %v1709, 72
        %v2502 = vpop.permute.xlu0 %2501
        %v2504 = vsel %vm549, %v2499, 0
        %v2507 = vsel %vm676, %v2502, 0
        %2509 = vmatprep.subr.bf16.mxu0 0
        %2510 = vmatpush1.bf16.msra.mxu0 %v2507
        %2511 = vmatprep.subr.bf16.mxu0 0
        %2512 = vmatpush1.bf16.msra.mxu0 0
        %2513 = vmatprep.subr.bf16.mxu0 0
        %2514 = vmatpush1.bf16.msra.mxu0 0
        %2515 = vmatprep.subr.bf16.mxu0 0
        %2516 = vmatpush1.bf16.msra.mxu0 0
        %2517 = vmatprep.subr.bf16.mxu0 0
        %2518 = vmatpush1.bf16.msra.mxu0 0
        %2519 = vmatprep.subr.bf16.mxu0 0
        %2520 = vmatpush1.bf16.msra.mxu0 0
        %2521 = vmatprep.subr.bf16.mxu0 0
        %2522 = vmatpush1.bf16.msra.mxu0 0
        %2523 = vmatprep.subr.bf16.mxu0 0
        %2524 = vmatpush1.bf16.msra.mxu0 0
        %2525 = vmatprep.subr.bf16.mxu0 0
        %2526 = vmatpush1.bf16.msra.mxu0 0
        %2527 = vmatprep.subr.bf16.mxu0 0
        %2528 = vmatpush1.bf16.msra.mxu0 0
        %2529 = vmatprep.subr.bf16.mxu0 0
        %2530 = vmatpush1.bf16.msra.mxu0 0
        %2531 = vmatprep.subr.bf16.mxu0 0
        %2532 = vmatpush1.bf16.msra.mxu0 0
        %2533 = vmatprep.subr.bf16.mxu0 0
        %2534 = vmatpush1.bf16.msra.mxu0 0
        %2535 = vmatprep.subr.bf16.mxu0 0
        %2536 = vmatpush1.bf16.msra.mxu0 0
        %2537 = vmatprep.subr.bf16.mxu0 0
        %2538 = vmatpush1.bf16.msra.mxu0 0
        %2539 = vmatprep.subr.bf16.mxu0 0
        %2540 = vmatpush1.bf16.msra.mxu0 0
        %2541 = vmatprep.mubr.bf16.mxu0 0
        %2542 = vmatmul.mubr.bf16.gmra.mrb[0].mxu0 %v2504
        %v2543 = vpop.f32.mrb[0].mxu0
        %v2544 = vadd.f32 0.0, %v2543
        %v2545 = vpop.f32.mrb[0].mxu0
        %v2546 = vpop.f32.mrb[0].mxu0
        %v2547 = vpop.f32.mrb[0].mxu0
        %2548 = vdwg.mxu0
        %2549 = vrot.lane.b32.xlu0 %v1710, 72
        %v2550 = vpop.permute.xlu0 %2549
        %v2552 = vsel %vm549, %v2500, 0
        %v2555 = vsel %vm676, %v2550, 0
        %2557 = vmatprep.subr.bf16.mxu0 0
        %2558 = vmatpush1.bf16.msra.mxu0 %v2555
        %2559 = vmatprep.subr.bf16.mxu0 0
        %2560 = vmatpush1.bf16.msra.mxu0 0
        %2561 = vmatprep.subr.bf16.mxu0 0
        %2562 = vmatpush1.bf16.msra.mxu0 0
        %2563 = vmatprep.subr.bf16.mxu0 0
        %2564 = vmatpush1.bf16.msra.mxu0 0
        %2565 = vmatprep.subr.bf16.mxu0 0
        %2566 = vmatpush1.bf16.msra.mxu0 0
        %2567 = vmatprep.subr.bf16.mxu0 0
        %2568 = vmatpush1.bf16.msra.mxu0 0
        %2569 = vmatprep.subr.bf16.mxu0 0
        %2570 = vmatpush1.bf16.msra.mxu0 0
        %2571 = vmatprep.subr.bf16.mxu0 0
        %2572 = vmatpush1.bf16.msra.mxu0 0
        %2573 = vmatprep.subr.bf16.mxu0 0
        %2574 = vmatpush1.bf16.msra.mxu0 0
        %2575 = vmatprep.subr.bf16.mxu0 0
        %2576 = vmatpush1.bf16.msra.mxu0 0
        %2577 = vmatprep.subr.bf16.mxu0 0
        %2578 = vmatpush1.bf16.msra.mxu0 0
        %2579 = vmatprep.subr.bf16.mxu0 0
        %2580 = vmatpush1.bf16.msra.mxu0 0
        %2581 = vmatprep.subr.bf16.mxu0 0
        %2582 = vmatpush1.bf16.msra.mxu0 0
        %2583 = vmatprep.subr.bf16.mxu0 0
        %2584 = vmatpush1.bf16.msra.mxu0 0
        %2585 = vmatprep.subr.bf16.mxu0 0
        %2586 = vmatpush1.bf16.msra.mxu0 0
        %2587 = vmatprep.subr.bf16.mxu0 0
        %2588 = vmatpush1.bf16.msra.mxu0 0
        %2589 = vmatprep.mubr.bf16.mxu0 0
        %2590 = vmatmul.mubr.bf16.gmra.mrb[0].mxu0 %v2552
        %v2591 = vpop.f32.mrb[0].mxu0
        %v2592 = vadd.f32 0.0, %v2591
        %v2593 = vpop.f32.mrb[0].mxu0
        %v2594 = vpop.f32.mrb[0].mxu0
        %v2595 = vpop.f32.mrb[0].mxu0
        %2596 = vdwg.mxu0
        %2599 = vrot.lane.b32.xlu0 %v2100, 8
        %v2600 = vpop.permute.xlu0 %2599
        %2601 = vrot.lane.b32.xlu0 %v2148, 8
        %v2602 = vpop.permute.xlu0 %2601
        %2607 = vrot.lane.b32.xlu0 %v2322, 16
        %v2608 = vpop.permute.xlu0 %2607
        %2609 = vrot.lane.b32.xlu0 %v2370, 16
        %v2610 = vpop.permute.xlu0 %2609
        %2615 = vrot.lane.b32.xlu0 %v2544, 24
        %v2616 = vpop.permute.xlu0 %2615
        %2617 = vrot.lane.b32.xlu0 %v2592, 24
        %v2618 = vpop.permute.xlu0 %2617
        %v2621 = vsel %vm549, %v1873, %v2600
        %v2622 = vsel %vm549, %v1922, %v2602
        %v2623 = vsel %vm1471, %v2621, %v2608
        %v2624 = vsel %vm1471, %v2622, %v2610
        %v2625 = vsel %vm1474, %v2623, %v2616
        %v2626 = vsel %vm1474, %v2624, %v2618
        %v2627 = vpack.c.bf16 %v2626, %v2625
        %v2628 = vlaneseq
        %v2629 = vshrl.u32 %v2628, 7
        %v2630 = vsub.s32 7, %v2629
        %v2631 = vrot.slane %v406, %v2630
        %2632 = vrot.lane.b32.xlu0 %v1591, 32
        %v2633 = vpop.permute.xlu0 %2632
        %2634 = vrot.lane.b32.xlu0 %v1592, 32
        %v2635 = vpop.permute.xlu0 %2634
        %v2639 = vsel %vm435, %v2627, 0
        %2641 = vmatprep.subr.bf16.mxu0 0
        %2642 = vmatpush1.bf16.msra.mxu0 %v2633
        %2643 = vmatprep.subr.bf16.mxu0 0
        %2644 = vmatpush1.bf16.msra.mxu0 %v2635
        %2645 = vmatprep.subr.bf16.mxu0 0
        %2646 = vmatpush1.bf16.msra.mxu0 0
        %2647 = vmatprep.subr.bf16.mxu0 0
        %2648 = vmatpush1.bf16.msra.mxu0 0
        %2649 = vmatprep.subr.bf16.mxu0 0
        %2650 = vmatpush1.bf16.msra.mxu0 0
        %2651 = vmatprep.subr.bf16.mxu0 0
        %2652 = vmatpush1.bf16.msra.mxu0 0
        %2653 = vmatprep.subr.bf16.mxu0 0
        %2654 = vmatpush1.bf16.msra.mxu0 0
        %2655 = vmatprep.subr.bf16.mxu0 0
        %2656 = vmatpush1.bf16.msra.mxu0 0
        %2657 = vmatprep.subr.bf16.mxu0 0
        %2658 = vmatpush1.bf16.msra.mxu0 0
        %2659 = vmatprep.subr.bf16.mxu0 0
        %2660 = vmatpush1.bf16.msra.mxu0 0
        %2661 = vmatprep.subr.bf16.mxu0 0
        %2662 = vmatpush1.bf16.msra.mxu0 0
        %2663 = vmatprep.subr.bf16.mxu0 0
        %2664 = vmatpush1.bf16.msra.mxu0 0
        %2665 = vmatprep.subr.bf16.mxu0 0
        %2666 = vmatpush1.bf16.msra.mxu0 0
        %2667 = vmatprep.subr.bf16.mxu0 0
        %2668 = vmatpush1.bf16.msra.mxu0 0
        %2669 = vmatprep.subr.bf16.mxu0 0
        %2670 = vmatpush1.bf16.msra.mxu0 0
        %2671 = vmatprep.subr.bf16.mxu0 0
        %2672 = vmatpush1.bf16.msra.mxu0 0
        %2673 = vmatprep.mubr.bf16.mxu0 0
        %2674 = vmatmul.mubr.bf16.gmra.mrb[0].mxu0 %v2639
        %v2675 = vpop.f32.mrb[0].mxu0
        %v2676 = vadd.f32 %v2631, %v2675
        %v2677 = vpop.f32.mrb[0].mxu0
        %v2678 = vpop.f32.mrb[0].mxu0
        %v2679 = vadd.f32 %v2631, %v2678
        %v2680 = vpop.f32.mrb[0].mxu0
        %2681 = vdwg.mxu0
        %v2682 = vadd.f32 %v1571, %v2676
        %v2683 = vadd.f32 %v1572, %v2679
        %v2684 = vsel %vm435, %v2682, 0.0
        %2685 = vadd.xlane.f32.xlu0 %v2684
        %v2686 = vpop.xlane.xlu0 %2685
        %v2687 = vsel %vm435, %v2683, 0.0
        %2688 = vadd.xlane.f32.xlu0 %v2687
        %v2689 = vpop.xlane.xlu0 %2688
        %v2690 = vmul.f32 %v2686, %v1540
        %v2691 = vmul.f32 %v2689, %v1540
        %v2692 = vsub.f32 %v2682, %v2690
        %v2693 = vsub.f32 %v2683, %v2691
        %v2694 = vmul.f32 %v2692, %v2692
        %v2695 = vmul.f32 %v2693, %v2693
        %v2696 = vsel %vm435, %v2694, 0.0
        %2697 = vadd.xlane.f32.xlu0 %v2696
        %v2698 = vpop.xlane.xlu0 %2697
        %v2699 = vsel %vm435, %v2695, 0.0
        %2700 = vadd.xlane.f32.xlu0 %v2699
        %v2701 = vpop.xlane.xlu0 %2700
        %v2702 = vmul.f32 %v2698, %v1540
        %v2703 = vmul.f32 %v2701, %v1540
        %v2704 = vadd.f32 %v2702, 1e-05
        %v2705 = vadd.f32 %v2703, 1e-05
        %v2706 = vrsqrt.pop %v2704
        %v2707 = vrsqrt.pop %v2705
        %v2708 = vmul.f32 %v2692, %v2706
        %v2709 = vmul.f32 %v2693, %v2707
        %v2710 = vlaneseq
        %v2711 = vshrl.u32 %v2710, 7
        %v2712 = vsub.s32 4, %v2711
        %v2713 = vrot.slane %v407, %v2712
        %v2714 = vmul.f32 %v2708, %v2713
        %v2715 = vmul.f32 %v2709, %v2713
        %v2716 = vlaneseq
        %v2717 = vshrl.u32 %v2716, 7
        %v2718 = vsub.s32 5, %v2717
        %v2719 = vrot.slane %v407, %v2718
        %v2720 = vadd.f32 %v2714, %v2719
        %v2721 = vadd.f32 %v2715, %v2719
        %v2722 = vpack.c.bf16 %v2721, %v2720
        %v2723 = vld [vmem:[%s386] sm:$0xf]
        %v2724 = vld [vmem:[%s386 + $0x4] sm:$0xf]
        %v2725 = vld [vmem:[%s386 + $0x8] sm:$0xf]
        %v2726 = vld [vmem:[%s386 + $0xc] sm:$0xf]
        %v2727 = vlaneseq
        %v2728 = vshrl.u32 %v2727, 7
        %v2729 = vsub.s32 0, %v2728
        %v2730 = vrot.slane %v407, %v2729
        %v2735 = vunpack.c.l.b16 %v2723
        %v2736 = vunpack.c.l.b16 %v2724
        %v2737 = vunpack.c.l.b16 %v2725
        %v2738 = vunpack.c.l.b16 %v2726
        %v2739 = vpack.c.b16 %v2736, %v2735
        %v2740 = vpack.c.b16 %v2738, %v2737
        %v2744 = vsel %vm435, %v2722, 0
        %2746 = vmatprep.subr.bf16.mxu0 0
        %2747 = vmatpush1.bf16.msra.mxu0 %v2739
        %2748 = vmatprep.subr.bf16.mxu0 0
        %2749 = vmatpush1.bf16.msra.mxu0 %v2740
        %2750 = vmatprep.subr.bf16.mxu0 0
        %2751 = vmatpush1.bf16.msra.mxu0 0
        %2752 = vmatprep.subr.bf16.mxu0 0
        %2753 = vmatpush1.bf16.msra.mxu0 0
        %2754 = vmatprep.subr.bf16.mxu0 0
        %2755 = vmatpush1.bf16.msra.mxu0 0
        %2756 = vmatprep.subr.bf16.mxu0 0
        %2757 = vmatpush1.bf16.msra.mxu0 0
        %2758 = vmatprep.subr.bf16.mxu0 0
        %2759 = vmatpush1.bf16.msra.mxu0 0
        %2760 = vmatprep.subr.bf16.mxu0 0
        %2761 = vmatpush1.bf16.msra.mxu0 0
        %2762 = vmatprep.subr.bf16.mxu0 0
        %2763 = vmatpush1.bf16.msra.mxu0 0
        %2764 = vmatprep.subr.bf16.mxu0 0
        %2765 = vmatpush1.bf16.msra.mxu0 0
        %2766 = vmatprep.subr.bf16.mxu0 0
        %2767 = vmatpush1.bf16.msra.mxu0 0
        %2768 = vmatprep.subr.bf16.mxu0 0
        %2769 = vmatpush1.bf16.msra.mxu0 0
        %2770 = vmatprep.subr.bf16.mxu0 0
        %2771 = vmatpush1.bf16.msra.mxu0 0
        %2772 = vmatprep.subr.bf16.mxu0 0
        %2773 = vmatpush1.bf16.msra.mxu0 0
        %2774 = vmatprep.subr.bf16.mxu0 0
        %2775 = vmatpush1.bf16.msra.mxu0 0
        %2776 = vmatprep.subr.bf16.mxu0 0
        %2777 = vmatpush1.bf16.msra.mxu0 0
        %2778 = vmatprep.mubr.bf16.mxu0 0
        %2779 = vmatmul.mubr.bf16.gmra.mrb[0].mxu0 %v2744
        %v2780 = vpop.f32.mrb[0].mxu0
        %v2781 = vadd.f32 %v2730, %v2780
        %v2782 = vpop.f32.mrb[0].mxu0
        %v2783 = vpop.f32.mrb[0].mxu0
        %v2784 = vadd.f32 %v2730, %v2783
        %v2785 = vpop.f32.mrb[0].mxu0
        %2786 = vdwg.mxu0
        %v2787 = vmax.f32 %v2781, 0.0
        %v2788 = vmax.f32 %v2784, 0.0
        %v2789 = vpack.c.bf16 %v2788, %v2787
        %v2790 = vld [vmem:[%s391] sm:$0xf]
        %v2791 = vld [vmem:[%s391 + $0x4] sm:$0xf]
        %v2792 = vld [vmem:[%s391 + $0x8] sm:$0xf]
        %v2793 = vld [vmem:[%s391 + $0xc] sm:$0xf]
        %v2794 = vld [vmem:[%s391 + $0x10] sm:$0xf]
        %v2795 = vld [vmem:[%s391 + $0x14] sm:$0xf]
        %v2796 = vld [vmem:[%s391 + $0x18] sm:$0xf]
        %v2797 = vld [vmem:[%s391 + $0x1c] sm:$0xf]
        %v2798 = vlaneseq
        %v2799 = vshrl.u32 %v2798, 7
        %v2800 = vsub.s32 1, %v2799
        %v2801 = vrot.slane %v407, %v2800
        %v2810 = vunpack.c.l.b16 %v2790
        %v2811 = vunpack.c.l.b16 %v2791
        %v2812 = vunpack.c.l.b16 %v2792
        %v2813 = vunpack.c.l.b16 %v2793
        %v2814 = vunpack.c.l.b16 %v2794
        %v2815 = vunpack.c.l.b16 %v2795
        %v2816 = vunpack.c.l.b16 %v2796
        %v2817 = vunpack.c.l.b16 %v2797
        %v2818 = vpack.c.b16 %v2811, %v2810
        %v2819 = vpack.c.b16 %v2813, %v2812
        %v2820 = vpack.c.b16 %v2815, %v2814
        %v2821 = vpack.c.b16 %v2817, %v2816
        %vm2826 = vcmask 523264
        %v2828 = vsel %vm2826, %v2789, 0
        %2830 = vmatprep.subr.bf16.mxu0 0
        %2831 = vmatpush1.bf16.msra.mxu0 %v2818
        %2832 = vmatprep.subr.bf16.mxu0 0
        %2833 = vmatpush1.bf16.msra.mxu0 %v2819
        %2834 = vmatprep.subr.bf16.mxu0 0
        %2835 = vmatpush1.bf16.msra.mxu0 %v2820
        %2836 = vmatprep.subr.bf16.mxu0 0
        %2837 = vmatpush1.bf16.msra.mxu0 %v2821
        %2838 = vmatprep.subr.bf16.mxu0 0
        %2839 = vmatpush1.bf16.msra.mxu0 0
        %2840 = vmatprep.subr.bf16.mxu0 0
        %2841 = vmatpush1.bf16.msra.mxu0 0
        %2842 = vmatprep.subr.bf16.mxu0 0
        %2843 = vmatpush1.bf16.msra.mxu0 0
        %2844 = vmatprep.subr.bf16.mxu0 0
        %2845 = vmatpush1.bf16.msra.mxu0 0
        %2846 = vmatprep.subr.bf16.mxu0 0
        %2847 = vmatpush1.bf16.msra.mxu0 0
        %2848 = vmatprep.subr.bf16.mxu0 0
        %2849 = vmatpush1.bf16.msra.mxu0 0
        %2850 = vmatprep.subr.bf16.mxu0 0
        %2851 = vmatpush1.bf16.msra.mxu0 0
        %2852 = vmatprep.subr.bf16.mxu0 0
        %2853 = vmatpush1.bf16.msra.mxu0 0
        %2854 = vmatprep.subr.bf16.mxu0 0
        %2855 = vmatpush1.bf16.msra.mxu0 0
        %2856 = vmatprep.subr.bf16.mxu0 0
        %2857 = vmatpush1.bf16.msra.mxu0 0
        %2858 = vmatprep.subr.bf16.mxu0 0
        %2859 = vmatpush1.bf16.msra.mxu0 0
        %2860 = vmatprep.subr.bf16.mxu0 0
        %2861 = vmatpush1.bf16.msra.mxu0 0
        %2862 = vmatprep.mubr.bf16.mxu0 0
        %2863 = vmatmul.mubr.bf16.gmra.mrb[0].mxu0 %v2828
        %v2864 = vpop.f32.mrb[0].mxu0
        %v2865 = vadd.f32 %v2801, %v2864
        %v2866 = vpop.f32.mrb[0].mxu0
        %v2867 = vpop.f32.mrb[0].mxu0
        %v2868 = vadd.f32 %v2801, %v2867
        %v2869 = vpop.f32.mrb[0].mxu0
        %2870 = vdwg.mxu0
        %v2871 = vadd.f32 %v2720, %v2865
        %v2872 = vadd.f32 %v2721, %v2868
        %v2873 = vsel %vm435, %v2871, 0.0
        %2874 = vadd.xlane.f32.xlu0 %v2873
        %v2875 = vpop.xlane.xlu0 %2874
        %v2876 = vsel %vm435, %v2872, 0.0
        %2877 = vadd.xlane.f32.xlu0 %v2876
        %v2878 = vpop.xlane.xlu0 %2877
        %v2879 = vmul.f32 %v2875, %v1540
        %v2880 = vmul.f32 %v2878, %v1540
        %v2881 = vsub.f32 %v2871, %v2879
        %v2882 = vsub.f32 %v2872, %v2880
        %v2883 = vmul.f32 %v2881, %v2881
        %v2884 = vmul.f32 %v2882, %v2882
        %v2885 = vsel %vm435, %v2883, 0.0
        %2886 = vadd.xlane.f32.xlu0 %v2885
        %v2887 = vpop.xlane.xlu0 %2886
        %v2888 = vsel %vm435, %v2884, 0.0
        %2889 = vadd.xlane.f32.xlu0 %v2888
        %v2890 = vpop.xlane.xlu0 %2889
        %v2891 = vmul.f32 %v2887, %v1540
        %v2892 = vmul.f32 %v2890, %v1540
        %v2893 = vadd.f32 %v2891, 1e-05
        %v2894 = vadd.f32 %v2892, 1e-05
        %v2895 = vrsqrt.pop %v2893
        %v2896 = vrsqrt.pop %v2894
        %v2897 = vmul.f32 %v2881, %v2895
        %v2898 = vmul.f32 %v2882, %v2896
        %v2899 = vlaneseq
        %v2900 = vshrl.u32 %v2899, 7
        %v2901 = vsub.s32 6, %v2900
        %v2902 = vrot.slane %v407, %v2901
        %v2903 = vmul.f32 %v2897, %v2902
        %v2904 = vmul.f32 %v2898, %v2902
        %v2905 = vlaneseq
        %v2906 = vshrl.u32 %v2905, 7
        %v2907 = vsub.s32 7, %v2906
        %v2908 = vrot.slane %v407, %v2907
        %v2909 = vadd.f32 %v2903, %v2908
        %v2910 = vadd.f32 %v2904, %v2908
        %2911 = vst.msk [vmem:[#allocation2] sm:$0xff] %vm435, %v2909
        %2912 = vst.msk [vmem:[#allocation2 + $0x8] sm:$0xff] %vm435, %v2910
        %p2913 = scmp.eq.s32.totalorder %s21, 1
        // Predicated region
        $region65: #{tpu_custom_call.1} parent=47 // pred_check
          %p2914 = pneg %p2913
        $region66: #{tpu_custom_call.1} parent=47 // pred_check_branch
          %2916 = sbr.rel (%p2914) target = $region68
        $region67: #{tpu_custom_call.1} parent=47 // pred_region
          %2917 = vst.msk [vmem:[#allocation9] sm:$0xff] %vm435, %v2909
          %2918 = vst.msk [vmem:[#allocation9 + $0x8] sm:$0xff] %vm435, %v2910
        $region68: #{tpu_custom_call.1} parent=47 // pred_fallthru
          _
        // Predicated region
        $region69: #{tpu_custom_call.1} parent=47 // pred_check
          %p2919 = pneg %p206
        $region70: #{tpu_custom_call.1} parent=47 // pred_check_branch
          %2921 = sbr.rel (%p2919) target = $region72
        $region71: #{tpu_custom_call.1} parent=47 // pred_region
          %s2923 = ssub.s32 256, 256
          %2924 = vsyncadd [#allocation5], %s2923
          %s2925 = sshll.u32 [#allocation9], 4
          %s2926 = int_to_ptr.vmem [resolvable:$true] %s2925
          %2931 = dma.vmem_to_hbm [thread:$0]  %s2926, 256, %s7, [#allocation5], 128, 128, 8
        $region72: #{tpu_custom_call.1} parent=47 // pred_fallthru
          _
        // Predicated region
        $region73: #{tpu_custom_call.1} parent=47 // pred_check
          %p2932 = pneg %p206
        $region74: #{tpu_custom_call.1} parent=47 // pred_check_branch
          %2934 = sbr.rel (%p2932) target = $region76
        $region75: #{tpu_custom_call.1} parent=47 // pred_region
          %2935 = dma.done [#allocation5], 256
        $region76: #{tpu_custom_call.1} parent=47 // pred_fallthru
          _
      $region48: #{tpu_custom_call.1} parent=5 // pred_fallthru
        _
      %p2936 = scmp.le.s32.totalorder 2, %s16
      // Predicated region
      $region77: #{tpu_custom_call.1} parent=5 // pred_check
        %p2937 = pneg %p2936
      $region78: #{tpu_custom_call.1} parent=5 // pred_check_branch
        %2939 = sbr.rel (%p2937) target = $region80
      $region79: #{tpu_custom_call.1} parent=5 // pred_region
        %s2940 = ssub.s32 %s16, 2
      $region80: #{tpu_custom_call.1} parent=5 // pred_fallthru
        _
    $region6: #{tpu_custom_call.1} parent=1 // loop_footer
      %s20 = sadd.s32 1, %s16
    $region7: #{tpu_custom_call.1} parent=1 // loop_footer_branch
      %15 = sbr.rel target = $region3
    $region8: #{tpu_custom_call.1} parent=1 // loop_exit
      _
    %2941 = vsyncpa [#allocation4], 1
    %s2942 = scalar_lea.sflag [#allocation4], 1
    %2943 = vsyncpa %s2942, 1
    %2944 = vsyncpa [#allocation7], 1
    %2945 = vsyncpa [#allocation5], 1
    %s2946 = scalar_lea.sflag [#allocation5], 1
    %2947 = vsyncpa %s2946, 1

</llo_original>
